<compile_context>
chip_gen: v7x
topology: tpu7x:2x2x1
jax: 0.10.0
libtpu: 0.0.40
codegen_flags: <defaults>
</compile_context>

<pallas_src>
import math

import jax
import jax.numpy as jnp
import numpy as np
from jax.experimental import pallas as pl
from jax.experimental.pallas import tpu as pltpu

EPS = 1e-5


def _choose_block_batch(batch, lq, target_rows=256, min_grid_steps=4):
    """Pick the batch-block size (bblk).

    Preference order:
      * keep >= min_grid_steps grid steps (4 => two pipelined steps per v7x TensorCore;
        relaxed to 2 then 1 when the batch is too small),
      * within that, the largest divisor of `batch` with bblk * Lq <= target_rows
        (256 fills the 256-tall v6e/v7x MXU; use target_rows=128 / min_grid_steps=2
        when tuning for single-TC v5e).
    """
    for min_steps in (min_grid_steps, 2, 1):
        best = 0
        for d in range(1, batch + 1):
            if batch % d:
                continue
            if d * lq > max(target_rows, lq):
                continue
            if batch // d < min_steps:
                continue
            best = max(best, d)
        if best:
            return best
    return 1


def _make_kernel(bblk, lq, lk, embed_dim, num_heads,
                 has_pe_tgt, has_pe_mem, has_mask, need_weights, compute_dtype):
    head_dim = embed_dim // num_heads
    scale = 1.0 / math.sqrt(head_dim)
    mq = bblk * lq
    f32 = jnp.float32
    exact_recip = (compute_dtype == jnp.float32)

    def kernel(*refs):
        it = iter(refs)
        tgt_ref = next(it)                        # (Bblk, Lq, E)  native dtype
        mem_ref = next(it)                        # (Bblk, Lk, E)
        peq_ref = next(it) if has_pe_tgt else None
        pek_ref = next(it) if has_pe_mem else None
        mask_ref = next(it) if has_mask else None
        gq_ref, bq_ref = next(it), next(it)       # norm_q gamma / beta  (1, E)
        gk_ref, bk_ref = next(it), next(it)       # norm_k gamma / beta  (1, E)
        wq_ref, wk_ref, wv_ref = next(it), next(it), next(it)      # (E, E) pre-transposed
        biq_ref, bik_ref, biv_ref = next(it), next(it), next(it)   # (1, E)
        wo_ref, bo_ref = next(it), next(it)       # (E, E) pre-transposed, (1, E)
        out_ref = next(it)                        # (Bblk, Lq, E)
        attn_ref = next(it) if need_weights else None   # (Bblk, Lq, Lk)

        tgt = tgt_ref[...].astype(f32)
        mem = mem_ref[...].astype(f32)

        def layernorm(x, g, b):
            mu = jnp.mean(x, axis=-1, keepdims=True)
            # Single-pass variance: mean(x*x) - mu*mu (clamped for safety).
            var = jnp.maximum(jnp.mean(x * x, axis=-1, keepdims=True) - mu * mu, 0.0)
            return (x - mu) * jax.lax.rsqrt(var + EPS) * g + b

        q2 = layernorm(tgt, gq_ref[0], bq_ref[0])
        if has_pe_tgt:
            q2 = q2 + peq_ref[...].astype(f32)
        k2 = layernorm(mem, gk_ref[0], bk_ref[0])
        if has_pe_mem:
            k2 = k2 + pek_ref[...].astype(f32)

        # Fat in-projections: fold (Bblk, L) into the MXU M dimension.
        # Value path uses the RAW mem (like the PyTorch module).
        q2f = q2.reshape(mq, embed_dim).astype(compute_dtype)
        k2f = k2.reshape(bblk * lk, embed_dim).astype(compute_dtype)
        vmf = mem.reshape(bblk * lk, embed_dim).astype(compute_dtype)

        q = jnp.dot(q2f, wq_ref[...], preferred_element_type=f32) + biq_ref[0]
        k = jnp.dot(k2f, wk_ref[...], preferred_element_type=f32) + bik_ref[0]
        v = jnp.dot(vmf, wv_ref[...], preferred_element_type=f32) + biv_ref[0]

        # One cast each to the MXU dtype for the attention matmuls (f32 accumulation).
        q_c = q.astype(compute_dtype)
        k_c = k.astype(compute_dtype)
        v_c = v.astype(compute_dtype)

        mask = mask_ref[...].astype(f32) if has_mask else None   # additive (Lq, Lk)

        if need_weights:
            attn_sum = jnp.zeros((bblk, lq, lk), f32)
        out_acc = jnp.zeros((mq, embed_dim), f32)

        # TODO(synk): a fully head-batched formulation ('bqhd,bkhd->bhqk') needs a
        # dot_general with two (non-leading) batch dims, which Mosaic may not lower;
        # keep the single-leading-batch-dim einsum per head (known-good) and fold the
        # head concat into the output projection instead of a scratch writeback.
        for h in range(num_heads):                 # static unroll over heads
            sl = slice(h * head_dim, (h + 1) * head_dim)
            qh = q_c[:, sl].reshape(bblk, lq, head_dim)
            kh = k_c[:, sl].reshape(bblk, lk, head_dim)
            vh = v_c[:, sl].reshape(bblk, lk, head_dim)

            s = jnp.einsum("bqd,bkd->bqk", qh, kh,
                           preferred_element_type=f32) * scale
            if has_mask:
                s = s + mask
            s = s - jnp.max(s, axis=-1, keepdims=True)
            p = jnp.exp(s)
            denom = jnp.sum(p, axis=-1, keepdims=True)
            if exact_recip:
                p = p / denom
            else:
                p = p * pl.reciprocal(denom, approx=True)
            if need_weights:
                attn_sum = attn_sum + p

            ctx_h = jnp.einsum("bqk,bkd->bqd", p.astype(compute_dtype), vh,
                               preferred_element_type=f32)
            # Head "concat" folded into the output projection: (Mq, D) @ (D, E)
            # against a D-aligned sublane row-slice of wo (no masked lane stores,
            # no VMEM scratch).
            wo_h = wo_ref[h * head_dim:(h + 1) * head_dim, :]
            out_acc = out_acc + jnp.dot(
                ctx_h.reshape(mq, head_dim).astype(compute_dtype),
                wo_h, preferred_element_type=f32)

        out = out_acc + bo_ref[0]
        # dropout(p=0) is identity; residual with the raw tgt.
        out_ref[...] = (out.reshape(bblk, lq, embed_dim) + tgt).astype(out_ref.dtype)

        if need_weights:   # need_weights + average_attn_weights=True (PyTorch default)
            attn_ref[...] = attn_sum * (1.0 / num_heads)

    return kernel


def cross_attn(tgt, mem, params, mask=None, pe_tgt=None, pe_mem=None,
               num_heads=8, need_weights=True, compute_dtype=jnp.bfloat16,
               block_batch=None, target_rows=256, min_grid_steps=4):
    B, Lq, E = tgt.shape
    _, Lk, _ = mem.shape
    assert E % num_heads == 0

    has_pe_tgt = pe_tgt is not None
    has_pe_mem = pe_mem is not None
    has_mask = mask is not None

    bblk = block_batch if block_batch is not None else _choose_block_batch(
        B, Lq, target_rows=target_rows, min_grid_steps=min_grid_steps)
    if B % bblk:
        raise ValueError(f"block_batch={bblk} must divide batch={B}")
    grid = (B // bblk,)

    f32 = jnp.float32
    cdt = compute_dtype
    # Split / transpose packed in_proj like PyTorch: in_proj_weight is (3E, E).
    wq_t = params["in_proj_weight"][:E].T.astype(cdt)
    wk_t = params["in_proj_weight"][E:2 * E].T.astype(cdt)
    wv_t = params["in_proj_weight"][2 * E:].T.astype(cdt)
    biq = params["in_proj_bias"][:E].reshape(1, E).astype(f32)
    bik = params["in_proj_bias"][E:2 * E].reshape(1, E).astype(f32)
    biv = params["in_proj_bias"][2 * E:].reshape(1, E).astype(f32)
    wo_t = params["out_proj_weight"].T.astype(cdt)
    bo = params["out_proj_bias"].reshape(1, E).astype(f32)
    gq = params["norm_q_weight"].reshape(1, E).astype(f32)
    bq = params["norm_q_bias"].reshape(1, E).astype(f32)
    gk = params["norm_k_weight"].reshape(1, E).astype(f32)
    bk = params["norm_k_bias"].reshape(1, E).astype(f32)

    kernel = _make_kernel(bblk, Lq, Lk, E, num_heads,
                          has_pe_tgt, has_pe_mem, has_mask, need_weights, cdt)

    blk_q = pl.BlockSpec((bblk, Lq, E), lambda b: (b, 0, 0))
    blk_k = pl.BlockSpec((bblk, Lk, E), lambda b: (b, 0, 0))
    const_mat = pl.BlockSpec((E, E), lambda b: (0, 0))
    const_vec = pl.BlockSpec((1, E), lambda b: (0, 0))

    # Streamed operands stay in their native dtype (bf16 callers get half the DMA bytes);
    # the kernel upcasts to f32 internally.
    inputs = [tgt, mem]
    in_specs = [blk_q, blk_k]
    if has_pe_tgt:
        inputs.append(pe_tgt); in_specs.append(blk_q)
    if has_pe_mem:
        inputs.append(pe_mem); in_specs.append(blk_k)
    if has_mask:
        inputs.append(mask.astype(f32))
        in_specs.append(pl.BlockSpec((Lq, Lk), lambda b: (0, 0)))
    inputs += [gq, bq, gk, bk, wq_t, wk_t, wv_t, biq, bik, biv, wo_t, bo]
    in_specs += [const_vec] * 4 + [const_mat] * 3 + [const_vec] * 3 + [const_mat, const_vec]

    out_shape = [jax.ShapeDtypeStruct((B, Lq, E), tgt.dtype)]
    out_specs = [pl.BlockSpec((bblk, Lq, E), lambda b: (b, 0, 0))]
    if need_weights:
        out_shape.append(jax.ShapeDtypeStruct((B, Lq, Lk), f32))
        out_specs.append(pl.BlockSpec((bblk, Lq, Lk), lambda b: (b, 0, 0)))

    results = pl.pallas_call(
        kernel,
        out_shape=tuple(out_shape),
        grid_spec=pltpu.PrefetchScalarGridSpec(
            num_scalar_prefetch=0,
            grid=grid,
            in_specs=in_specs,
            out_specs=tuple(out_specs),
        ),
        compiler_params=pltpu.CompilerParams(dimension_semantics=("parallel",)),
    )(*inputs)

    out = results[0]
    attn = results[1] if need_weights else None
    return out, attn


def cross_attn_reference(tgt, mem, params, mask=None, pe_tgt=None, pe_mem=None,
                         num_heads=8):
    """Pure-JAX reference mirroring the PyTorch module, for verification."""
    B, Lq, E = tgt.shape
    _, Lk, _ = mem.shape
    D = E // num_heads

    def ln(x, g, b):
        mu = jnp.mean(x, axis=-1, keepdims=True)
        var = jnp.mean((x - mu) ** 2, axis=-1, keepdims=True)
        return (x - mu) / jnp.sqrt(var + EPS) * g + b

    q2 = ln(tgt, params["norm_q_weight"], params["norm_q_bias"])
    k2 = ln(mem, params["norm_k_weight"], params["norm_k_bias"])
    if pe_tgt is not None:
        q2 = q2 + pe_tgt
    if pe_mem is not None:
        k2 = k2 + pe_mem

    wq = params["in_proj_weight"][:E]
    wk = params["in_proj_weight"][E:2 * E]
    wv = params["in_proj_weight"][2 * E:]
    bq = params["in_proj_bias"][:E]
    bk = params["in_proj_bias"][E:2 * E]
    bv = params["in_proj_bias"][2 * E:]

    q = q2 @ wq.T + bq
    k = k2 @ wk.T + bk
    v = mem @ wv.T + bv

    qh = q.reshape(B, Lq, num_heads, D).transpose(0, 2, 1, 3)
    kh = k.reshape(B, Lk, num_heads, D).transpose(0, 2, 1, 3)
    vh = v.reshape(B, Lk, num_heads, D).transpose(0, 2, 1, 3)

    s = jnp.einsum("bhqd,bhkd->bhqk", qh, kh) / jnp.sqrt(D)
    if mask is not None:
        s = s + mask
    p = jax.nn.softmax(s, axis=-1)
    ctx = jnp.einsum("bhqk,bhkd->bhqd", p, vh)
    ctx = ctx.transpose(0, 2, 1, 3).reshape(B, Lq, E)
    out = ctx @ params["out_proj_weight"].T + params["out_proj_bias"]
    return out + tgt, jnp.mean(p, axis=1)


if __name__ == "__main__":
    B, Lq, Lk = 4, 8, 16
    E, H = 256, 8

    key = jax.random.PRNGKey(0)
    keys = jax.random.split(key, 9)

    params = {
        "norm_q_weight": 1.0 + 0.1 * jax.random.normal(keys[0], (E,), jnp.float32),
        "norm_q_bias": 0.1 * jax.random.normal(keys[1], (E,), jnp.float32),
        "norm_k_weight": jnp.ones((E,), jnp.float32),
        "norm_k_bias": jnp.zeros((E,), jnp.float32),
        "in_proj_weight": 0.02 * jax.random.normal(keys[2], (3 * E, E), jnp.float32),
        "in_proj_bias": 0.02 * jax.random.normal(keys[3], (3 * E,), jnp.float32),
        "out_proj_weight": 0.02 * jax.random.normal(keys[4], (E, E), jnp.float32),
        "out_proj_bias": 0.02 * jax.random.normal(keys[5], (E,), jnp.float32),
    }

    tgt = jax.random.normal(keys[6], (B, Lq, E), jnp.float32)
    mem = jax.random.normal(keys[7], (B, Lk, E), jnp.float32)
    extra = jax.random.split(keys[8], 3)
    pe_tgt = 0.1 * jax.random.normal(extra[0], (B, Lq, E), jnp.float32)
    pe_mem = 0.1 * jax.random.normal(extra[1], (B, Lk, E), jnp.float32)
    mask = jnp.where(jax.random.uniform(extra[2], (Lq, Lk)) < 0.2,
                     -1e9, 0.0).astype(jnp.float32)

    # 1) f32 compute path (exact softmax division), with positional encodings, no mask.
    out, attn = cross_attn(tgt, mem, params, mask=None, pe_tgt=pe_tgt, pe_mem=pe_mem,
                           num_heads=H, compute_dtype=jnp.float32)
    jax.block_until_ready((out, attn))
    ref_out, ref_attn = cross_attn_reference(tgt, mem, params, mask=None,
                                             pe_tgt=pe_tgt, pe_mem=pe_mem, num_heads=H)
    np.testing.assert_allclose(np.asarray(out), np.asarray(ref_out), rtol=2e-3, atol=2e-3)
    np.testing.assert_allclose(np.asarray(attn), np.asarray(ref_attn), rtol=2e-3, atol=2e-3)

    # 2) bf16 MXU path (default), with mask + positional encodings (looser tolerance).
    out_bf, attn_bf = cross_attn(tgt, mem, params, mask=mask, pe_tgt=pe_tgt, pe_mem=pe_mem,
                                 num_heads=H, compute_dtype=jnp.bfloat16)
    jax.block_until_ready((out_bf, attn_bf))
    ref_out2, ref_attn2 = cross_attn_reference(tgt, mem, params, mask=mask,
                                               pe_tgt=pe_tgt, pe_mem=pe_mem, num_heads=H)
    np.testing.assert_allclose(np.asarray(out_bf), np.asarray(ref_out2), rtol=3e-2, atol=3e-2)
    np.testing.assert_allclose(np.asarray(attn_bf), np.asarray(ref_attn2), rtol=3e-2, atol=1e-2)

    # 3) fast path: no PE / no mask / no attention-weights output (skips those DMAs
    #    and the lane-sparse attn writeback).
    out_fast, attn_none = cross_attn(tgt, mem, params, num_heads=H, need_weights=False)
    jax.block_until_ready(out_fast)
    assert attn_none is None
    ref_out3, _ = cross_attn_reference(tgt, mem, params, num_heads=H)
    np.testing.assert_allclose(np.asarray(out_fast), np.asarray(ref_out3), rtol=3e-2, atol=3e-2)

    print("KERNEL_OK")
</pallas_src>

<mosaic_0001>
module attributes {stable_mosaic.version = 11 : i64} {
  func.func @kernel(%arg0: i32, %arg1: memref<1x8x256xf32, #tpu.memory_space<vmem>>, %arg2: memref<1x16x256xf32, #tpu.memory_space<vmem>>, %arg3: memref<1x8x256xf32, #tpu.memory_space<vmem>>, %arg4: memref<1x16x256xf32, #tpu.memory_space<vmem>>, %arg5: memref<1x256xf32, #tpu.memory_space<vmem>>, %arg6: memref<1x256xf32, #tpu.memory_space<vmem>>, %arg7: memref<1x256xf32, #tpu.memory_space<vmem>>, %arg8: memref<1x256xf32, #tpu.memory_space<vmem>>, %arg9: memref<256x256xf32, #tpu.memory_space<vmem>>, %arg10: memref<256x256xf32, #tpu.memory_space<vmem>>, %arg11: memref<256x256xf32, #tpu.memory_space<vmem>>, %arg12: memref<1x256xf32, #tpu.memory_space<vmem>>, %arg13: memref<1x256xf32, #tpu.memory_space<vmem>>, %arg14: memref<1x256xf32, #tpu.memory_space<vmem>>, %arg15: memref<256x256xf32, #tpu.memory_space<vmem>>, %arg16: memref<1x256xf32, #tpu.memory_space<vmem>>, %arg17: memref<1x8x256xf32, #tpu.memory_space<vmem>>, %arg18: memref<1x8x16xf32, #tpu.memory_space<vmem>>) attributes {dimension_semantics = [#tpu.dimension_semantics<parallel>], iteration_bounds = array<i64: 4>, scalar_prefetch = 0 : i64, scratch_operands = 0 : i64, tpu.core_type = #tpu.core_type<tc>, window_params = [{transform_indices = @transform_0, window_bounds = array<i64: 1, 8, 256>}, {transform_indices = @transform_1, window_bounds = array<i64: 1, 16, 256>}, {transform_indices = @transform_2, window_bounds = array<i64: 1, 8, 256>}, {transform_indices = @transform_3, window_bounds = array<i64: 1, 16, 256>}, {pipeline_mode = #tpu.pipeline_mode<synchronous>, transform_indices = @transform_4, window_bounds = array<i64: 1, 256>}, {pipeline_mode = #tpu.pipeline_mode<synchronous>, transform_indices = @transform_5, window_bounds = array<i64: 1, 256>}, {pipeline_mode = #tpu.pipeline_mode<synchronous>, transform_indices = @transform_6, window_bounds = array<i64: 1, 256>}, {pipeline_mode = #tpu.pipeline_mode<synchronous>, transform_indices = @transform_7, window_bounds = array<i64: 1, 256>}, {pipeline_mode = #tpu.pipeline_mode<synchronous>, transform_indices = @transform_8, window_bounds = array<i64: 256, 256>}, {pipeline_mode = #tpu.pipeline_mode<synchronous>, transform_indices = @transform_9, window_bounds = array<i64: 256, 256>}, {pipeline_mode = #tpu.pipeline_mode<synchronous>, transform_indices = @transform_10, window_bounds = array<i64: 256, 256>}, {pipeline_mode = #tpu.pipeline_mode<synchronous>, transform_indices = @transform_11, window_bounds = array<i64: 1, 256>}, {pipeline_mode = #tpu.pipeline_mode<synchronous>, transform_indices = @transform_12, window_bounds = array<i64: 1, 256>}, {pipeline_mode = #tpu.pipeline_mode<synchronous>, transform_indices = @transform_13, window_bounds = array<i64: 1, 256>}, {pipeline_mode = #tpu.pipeline_mode<synchronous>, transform_indices = @transform_14, window_bounds = array<i64: 256, 256>}, {pipeline_mode = #tpu.pipeline_mode<synchronous>, transform_indices = @transform_15, window_bounds = array<i64: 1, 256>}, {transform_indices = @transform_16, window_bounds = array<i64: 1, 8, 256>}, {transform_indices = @transform_17, window_bounds = array<i64: 1, 8, 16>}]} {
    %c0 = arith.constant 0 : index
    %c0_0 = arith.constant 0 : index
    %c0_1 = arith.constant 0 : index
    %0 = vector.load %arg1[%c0, %c0_0, %c0_1] : memref<1x8x256xf32, #tpu.memory_space<vmem>>, vector<1x8x256xf32>
    %c0_2 = arith.constant 0 : index
    %c0_3 = arith.constant 0 : index
    %c0_4 = arith.constant 0 : index
    %1 = vector.load %arg2[%c0_2, %c0_3, %c0_4] : memref<1x16x256xf32, #tpu.memory_space<vmem>>, vector<1x16x256xf32>
    %c0_5 = arith.constant 0 : index
    %c0_6 = arith.constant 0 : index
    %2 = vector.load %arg5[%c0_5, %c0_6] : memref<1x256xf32, #tpu.memory_space<vmem>>, vector<1x256xf32>
    %3 = vector.shape_cast %2 : vector<1x256xf32> to vector<256xf32>
    %c0_7 = arith.constant 0 : index
    %c0_8 = arith.constant 0 : index
    %4 = vector.load %arg6[%c0_7, %c0_8] : memref<1x256xf32, #tpu.memory_space<vmem>>, vector<1x256xf32>
    %5 = vector.shape_cast %4 : vector<1x256xf32> to vector<256xf32>
    %cst = arith.constant dense<0.000000e+00> : vector<1x8xf32>
    %6 = vector.multi_reduction <add>, %0, %cst [2] : vector<1x8x256xf32> to vector<1x8xf32>
    %7 = vector.shape_cast %6 : vector<1x8xf32> to vector<1x8x1xf32>
    %cst_9 = arith.constant 2.560000e+02 : f32
    %8 = vector.broadcast %cst_9 : f32 to vector<1x8x1xf32>
    %9 = arith.divf %7, %8 : vector<1x8x1xf32>
    %10 = arith.mulf %0, %0 : vector<1x8x256xf32>
    %cst_10 = arith.constant dense<0.000000e+00> : vector<1x8xf32>
    %11 = vector.multi_reduction <add>, %10, %cst_10 [2] : vector<1x8x256xf32> to vector<1x8xf32>
    %12 = vector.shape_cast %11 : vector<1x8xf32> to vector<1x8x1xf32>
    %cst_11 = arith.constant 2.560000e+02 : f32
    %13 = vector.broadcast %cst_11 : f32 to vector<1x8x1xf32>
    %14 = arith.divf %12, %13 : vector<1x8x1xf32>
    %15 = arith.mulf %9, %9 : vector<1x8x1xf32>
    %16 = arith.subf %14, %15 : vector<1x8x1xf32>
    %cst_12 = arith.constant 0.000000e+00 : f32
    %17 = vector.broadcast %cst_12 : f32 to vector<1x8x1xf32>
    %18 = arith.maximumf %16, %17 : vector<1x8x1xf32>
    %19 = vector.broadcast %9 : vector<1x8x1xf32> to vector<1x8x256xf32>
    %20 = arith.subf %0, %19 : vector<1x8x256xf32>
    %cst_13 = arith.constant 9.99999974E-6 : f32
    %21 = vector.broadcast %cst_13 : f32 to vector<1x8x1xf32>
    %22 = arith.addf %18, %21 : vector<1x8x1xf32>
    %23 = math.rsqrt %22 : vector<1x8x1xf32>
    %24 = vector.broadcast %23 : vector<1x8x1xf32> to vector<1x8x256xf32>
    %25 = arith.mulf %20, %24 : vector<1x8x256xf32>
    %26 = vector.shape_cast %3 : vector<256xf32> to vector<1x1x256xf32>
    %27 = vector.broadcast %26 : vector<1x1x256xf32> to vector<1x8x256xf32>
    %28 = arith.mulf %25, %27 : vector<1x8x256xf32>
    %29 = vector.shape_cast %5 : vector<256xf32> to vector<1x1x256xf32>
    %30 = vector.broadcast %29 : vector<1x1x256xf32> to vector<1x8x256xf32>
    %31 = arith.addf %28, %30 : vector<1x8x256xf32>
    %c0_14 = arith.constant 0 : index
    %c0_15 = arith.constant 0 : index
    %c0_16 = arith.constant 0 : index
    %32 = vector.load %arg3[%c0_14, %c0_15, %c0_16] : memref<1x8x256xf32, #tpu.memory_space<vmem>>, vector<1x8x256xf32>
    %33 = arith.addf %31, %32 : vector<1x8x256xf32>
    %c0_17 = arith.constant 0 : index
    %c0_18 = arith.constant 0 : index
    %34 = vector.load %arg7[%c0_17, %c0_18] : memref<1x256xf32, #tpu.memory_space<vmem>>, vector<1x256xf32>
    %35 = vector.shape_cast %34 : vector<1x256xf32> to vector<256xf32>
    %c0_19 = arith.constant 0 : index
    %c0_20 = arith.constant 0 : index
    %36 = vector.load %arg8[%c0_19, %c0_20] : memref<1x256xf32, #tpu.memory_space<vmem>>, vector<1x256xf32>
    %37 = vector.shape_cast %36 : vector<1x256xf32> to vector<256xf32>
    %cst_21 = arith.constant dense<0.000000e+00> : vector<1x16xf32>
    %38 = vector.multi_reduction <add>, %1, %cst_21 [2] : vector<1x16x256xf32> to vector<1x16xf32>
    %39 = vector.shape_cast %38 : vector<1x16xf32> to vector<1x16x1xf32>
    %cst_22 = arith.constant 2.560000e+02 : f32
    %40 = vector.broadcast %cst_22 : f32 to vector<1x16x1xf32>
    %41 = arith.divf %39, %40 : vector<1x16x1xf32>
    %42 = arith.mulf %1, %1 : vector<1x16x256xf32>
    %cst_23 = arith.constant dense<0.000000e+00> : vector<1x16xf32>
    %43 = vector.multi_reduction <add>, %42, %cst_23 [2] : vector<1x16x256xf32> to vector<1x16xf32>
    %44 = vector.shape_cast %43 : vector<1x16xf32> to vector<1x16x1xf32>
    %cst_24 = arith.constant 2.560000e+02 : f32
    %45 = vector.broadcast %cst_24 : f32 to vector<1x16x1xf32>
    %46 = arith.divf %44, %45 : vector<1x16x1xf32>
    %47 = arith.mulf %41, %41 : vector<1x16x1xf32>
    %48 = arith.subf %46, %47 : vector<1x16x1xf32>
    %cst_25 = arith.constant 0.000000e+00 : f32
    %49 = vector.broadcast %cst_25 : f32 to vector<1x16x1xf32>
    %50 = arith.maximumf %48, %49 : vector<1x16x1xf32>
    %51 = vector.broadcast %41 : vector<1x16x1xf32> to vector<1x16x256xf32>
    %52 = arith.subf %1, %51 : vector<1x16x256xf32>
    %cst_26 = arith.constant 9.99999974E-6 : f32
    %53 = vector.broadcast %cst_26 : f32 to vector<1x16x1xf32>
    %54 = arith.addf %50, %53 : vector<1x16x1xf32>
    %55 = math.rsqrt %54 : vector<1x16x1xf32>
    %56 = vector.broadcast %55 : vector<1x16x1xf32> to vector<1x16x256xf32>
    %57 = arith.mulf %52, %56 : vector<1x16x256xf32>
    %58 = vector.shape_cast %35 : vector<256xf32> to vector<1x1x256xf32>
    %59 = vector.broadcast %58 : vector<1x1x256xf32> to vector<1x16x256xf32>
    %60 = arith.mulf %57, %59 : vector<1x16x256xf32>
    %61 = vector.shape_cast %37 : vector<256xf32> to vector<1x1x256xf32>
    %62 = vector.broadcast %61 : vector<1x1x256xf32> to vector<1x16x256xf32>
    %63 = arith.addf %60, %62 : vector<1x16x256xf32>
    %c0_27 = arith.constant 0 : index
    %c0_28 = arith.constant 0 : index
    %c0_29 = arith.constant 0 : index
    %64 = vector.load %arg4[%c0_27, %c0_28, %c0_29] : memref<1x16x256xf32, #tpu.memory_space<vmem>>, vector<1x16x256xf32>
    %65 = arith.addf %63, %64 : vector<1x16x256xf32>
    %66 = vector.shape_cast %33 : vector<1x8x256xf32> to vector<8x256xf32>
    %67 = vector.shape_cast %65 : vector<1x16x256xf32> to vector<16x256xf32>
    %68 = vector.shape_cast %1 : vector<1x16x256xf32> to vector<16x256xf32>
    %c0_30 = arith.constant 0 : index
    %c0_31 = arith.constant 0 : index
    %69 = vector.load %arg9[%c0_30, %c0_31] : memref<256x256xf32, #tpu.memory_space<vmem>>, vector<256x256xf32>
    %cst_32 = arith.constant dense<0.000000e+00> : vector<8x256xf32>
    %70 = tpu.matmul %66, %69, %cst_32 {dimension_numbers = #tpu.dot_dimension_numbers<[1], [0], [0], [1], [0, 0, 1, 1], [], []>} : vector<8x256xf32>, vector<256x256xf32>, vector<8x256xf32> -> vector<8x256xf32>
    %c0_33 = arith.constant 0 : index
    %c0_34 = arith.constant 0 : index
    %71 = vector.load %arg12[%c0_33, %c0_34] : memref<1x256xf32, #tpu.memory_space<vmem>>, vector<1x256xf32>
    %72 = vector.shape_cast %71 : vector<1x256xf32> to vector<256xf32>
    %73 = vector.shape_cast %72 : vector<256xf32> to vector<1x256xf32>
    %74 = vector.broadcast %73 : vector<1x256xf32> to vector<8x256xf32>
    %75 = arith.addf %70, %74 : vector<8x256xf32>
    %c0_35 = arith.constant 0 : index
    %c0_36 = arith.constant 0 : index
    %76 = vector.load %arg10[%c0_35, %c0_36] : memref<256x256xf32, #tpu.memory_space<vmem>>, vector<256x256xf32>
    %cst_37 = arith.constant dense<0.000000e+00> : vector<16x256xf32>
    %77 = tpu.matmul %67, %76, %cst_37 {dimension_numbers = #tpu.dot_dimension_numbers<[1], [0], [0], [1], [0, 0, 1, 1], [], []>} : vector<16x256xf32>, vector<256x256xf32>, vector<16x256xf32> -> vector<16x256xf32>
    %c0_38 = arith.constant 0 : index
    %c0_39 = arith.constant 0 : index
    %78 = vector.load %arg13[%c0_38, %c0_39] : memref<1x256xf32, #tpu.memory_space<vmem>>, vector<1x256xf32>
    %79 = vector.shape_cast %78 : vector<1x256xf32> to vector<256xf32>
    %80 = vector.shape_cast %79 : vector<256xf32> to vector<1x256xf32>
    %81 = vector.broadcast %80 : vector<1x256xf32> to vector<16x256xf32>
    %82 = arith.addf %77, %81 : vector<16x256xf32>
    %c0_40 = arith.constant 0 : index
    %c0_41 = arith.constant 0 : index
    %83 = vector.load %arg11[%c0_40, %c0_41] : memref<256x256xf32, #tpu.memory_space<vmem>>, vector<256x256xf32>
    %cst_42 = arith.constant dense<0.000000e+00> : vector<16x256xf32>
    %84 = tpu.matmul %68, %83, %cst_42 {dimension_numbers = #tpu.dot_dimension_numbers<[1], [0], [0], [1], [0, 0, 1, 1], [], []>} : vector<16x256xf32>, vector<256x256xf32>, vector<16x256xf32> -> vector<16x256xf32>
    %c0_43 = arith.constant 0 : index
    %c0_44 = arith.constant 0 : index
    %85 = vector.load %arg14[%c0_43, %c0_44] : memref<1x256xf32, #tpu.memory_space<vmem>>, vector<1x256xf32>
    %86 = vector.shape_cast %85 : vector<1x256xf32> to vector<256xf32>
    %87 = vector.shape_cast %86 : vector<256xf32> to vector<1x256xf32>
    %88 = vector.broadcast %87 : vector<1x256xf32> to vector<16x256xf32>
    %89 = arith.addf %84, %88 : vector<16x256xf32>
    %cst_45 = arith.constant 0.000000e+00 : f32
    %90 = vector.broadcast %cst_45 : f32 to vector<1x8x16xf32>
    %cst_46 = arith.constant 0.000000e+00 : f32
    %91 = vector.broadcast %cst_46 : f32 to vector<8x256xf32>
    %92 = vector.extract_strided_slice %75 {offsets = [0, 0], sizes = [8, 32], strides = [1, 1]} : vector<8x256xf32> to vector<8x32xf32>
    %93 = vector.shape_cast %92 : vector<8x32xf32> to vector<1x8x32xf32>
    %94 = vector.extract_strided_slice %82 {offsets = [0, 0], sizes = [16, 32], strides = [1, 1]} : vector<16x256xf32> to vector<16x32xf32>
    %95 = vector.shape_cast %94 : vector<16x32xf32> to vector<1x16x32xf32>
    %96 = vector.extract_strided_slice %89 {offsets = [0, 0], sizes = [16, 32], strides = [1, 1]} : vector<16x256xf32> to vector<16x32xf32>
    %97 = vector.shape_cast %96 : vector<16x32xf32> to vector<1x16x32xf32>
    "tpu.trace_start"() <{level = 10 : i32, message = "bqd,bkd->bqk"}> : () -> ()
    %cst_47 = arith.constant dense<0.000000e+00> : vector<1x8x16xf32>
    %98 = tpu.matmul %93, %95, %cst_47 {dimension_numbers = #tpu.dot_dimension_numbers<[2], [2], [1], [1], [0, 0, 0, 1, 1, 1], [0], [0]>} : vector<1x8x32xf32>, vector<1x16x32xf32>, vector<1x8x16xf32> -> vector<1x8x16xf32>
    "tpu.trace_stop"() : () -> ()
    %cst_48 = arith.constant 0.176776692 : f32
    %99 = vector.broadcast %cst_48 : f32 to vector<1x8x16xf32>
    %100 = arith.mulf %98, %99 : vector<1x8x16xf32>
    %cst_49 = arith.constant dense<0xFF800000> : vector<1x8xf32>
    %101 = vector.multi_reduction <maximumf>, %100, %cst_49 [2] : vector<1x8x16xf32> to vector<1x8xf32>
    %102 = vector.shape_cast %101 : vector<1x8xf32> to vector<1x8x1xf32>
    %103 = vector.broadcast %102 : vector<1x8x1xf32> to vector<1x8x16xf32>
    %104 = arith.subf %100, %103 : vector<1x8x16xf32>
    %105 = math.exp %104 : vector<1x8x16xf32>
    %cst_50 = arith.constant dense<0.000000e+00> : vector<1x8xf32>
    %106 = vector.multi_reduction <add>, %105, %cst_50 [2] : vector<1x8x16xf32> to vector<1x8xf32>
    %107 = vector.shape_cast %106 : vector<1x8xf32> to vector<1x8x1xf32>
    %108 = vector.broadcast %107 : vector<1x8x1xf32> to vector<1x8x16xf32>
    %109 = arith.divf %105, %108 : vector<1x8x16xf32>
    %110 = arith.addf %90, %109 : vector<1x8x16xf32>
    "tpu.trace_start"() <{level = 10 : i32, message = "bqk,bkd->bqd"}> : () -> ()
    %cst_51 = arith.constant dense<0.000000e+00> : vector<1x8x32xf32>
    %111 = tpu.matmul %109, %97, %cst_51 {dimension_numbers = #tpu.dot_dimension_numbers<[2], [1], [1], [2], [0, 0, 0, 1, 1, 2], [0], [0]>} : vector<1x8x16xf32>, vector<1x16x32xf32>, vector<1x8x32xf32> -> vector<1x8x32xf32>
    "tpu.trace_stop"() : () -> ()
    %c0_52 = arith.constant 0 : index
    %c0_53 = arith.constant 0 : index
    %112 = vector.load %arg15[%c0_52, %c0_53] : memref<256x256xf32, #tpu.memory_space<vmem>>, vector<32x256xf32>
    %113 = vector.shape_cast %111 : vector<1x8x32xf32> to vector<8x32xf32>
    %cst_54 = arith.constant dense<0.000000e+00> : vector<8x256xf32>
    %114 = tpu.matmul %113, %112, %cst_54 {dimension_numbers = #tpu.dot_dimension_numbers<[1], [0], [0], [1], [0, 0, 1, 1], [], []>} : vector<8x32xf32>, vector<32x256xf32>, vector<8x256xf32> -> vector<8x256xf32>
    %115 = arith.addf %91, %114 : vector<8x256xf32>
    %116 = vector.extract_strided_slice %75 {offsets = [0, 32], sizes = [8, 32], strides = [1, 1]} : vector<8x256xf32> to vector<8x32xf32>
    %117 = vector.shape_cast %116 : vector<8x32xf32> to vector<1x8x32xf32>
    %118 = vector.extract_strided_slice %82 {offsets = [0, 32], sizes = [16, 32], strides = [1, 1]} : vector<16x256xf32> to vector<16x32xf32>
    %119 = vector.shape_cast %118 : vector<16x32xf32> to vector<1x16x32xf32>
    %120 = vector.extract_strided_slice %89 {offsets = [0, 32], sizes = [16, 32], strides = [1, 1]} : vector<16x256xf32> to vector<16x32xf32>
    %121 = vector.shape_cast %120 : vector<16x32xf32> to vector<1x16x32xf32>
    "tpu.trace_start"() <{level = 10 : i32, message = "bqd,bkd->bqk"}> : () -> ()
    %cst_55 = arith.constant dense<0.000000e+00> : vector<1x8x16xf32>
    %122 = tpu.matmul %117, %119, %cst_55 {dimension_numbers = #tpu.dot_dimension_numbers<[2], [2], [1], [1], [0, 0, 0, 1, 1, 1], [0], [0]>} : vector<1x8x32xf32>, vector<1x16x32xf32>, vector<1x8x16xf32> -> vector<1x8x16xf32>
    "tpu.trace_stop"() : () -> ()
    %cst_56 = arith.constant 0.176776692 : f32
    %123 = vector.broadcast %cst_56 : f32 to vector<1x8x16xf32>
    %124 = arith.mulf %122, %123 : vector<1x8x16xf32>
    %cst_57 = arith.constant dense<0xFF800000> : vector<1x8xf32>
    %125 = vector.multi_reduction <maximumf>, %124, %cst_57 [2] : vector<1x8x16xf32> to vector<1x8xf32>
    %126 = vector.shape_cast %125 : vector<1x8xf32> to vector<1x8x1xf32>
    %127 = vector.broadcast %126 : vector<1x8x1xf32> to vector<1x8x16xf32>
    %128 = arith.subf %124, %127 : vector<1x8x16xf32>
    %129 = math.exp %128 : vector<1x8x16xf32>
    %cst_58 = arith.constant dense<0.000000e+00> : vector<1x8xf32>
    %130 = vector.multi_reduction <add>, %129, %cst_58 [2] : vector<1x8x16xf32> to vector<1x8xf32>
    %131 = vector.shape_cast %130 : vector<1x8xf32> to vector<1x8x1xf32>
    %132 = vector.broadcast %131 : vector<1x8x1xf32> to vector<1x8x16xf32>
    %133 = arith.divf %129, %132 : vector<1x8x16xf32>
    %134 = arith.addf %110, %133 : vector<1x8x16xf32>
    "tpu.trace_start"() <{level = 10 : i32, message = "bqk,bkd->bqd"}> : () -> ()
    %cst_59 = arith.constant dense<0.000000e+00> : vector<1x8x32xf32>
    %135 = tpu.matmul %133, %121, %cst_59 {dimension_numbers = #tpu.dot_dimension_numbers<[2], [1], [1], [2], [0, 0, 0, 1, 1, 2], [0], [0]>} : vector<1x8x16xf32>, vector<1x16x32xf32>, vector<1x8x32xf32> -> vector<1x8x32xf32>
    "tpu.trace_stop"() : () -> ()
    %c32 = arith.constant 32 : index
    %c0_60 = arith.constant 0 : index
    %136 = vector.load %arg15[%c32, %c0_60] : memref<256x256xf32, #tpu.memory_space<vmem>>, vector<32x256xf32>
    %137 = vector.shape_cast %135 : vector<1x8x32xf32> to vector<8x32xf32>
    %cst_61 = arith.constant dense<0.000000e+00> : vector<8x256xf32>
    %138 = tpu.matmul %137, %136, %cst_61 {dimension_numbers = #tpu.dot_dimension_numbers<[1], [0], [0], [1], [0, 0, 1, 1], [], []>} : vector<8x32xf32>, vector<32x256xf32>, vector<8x256xf32> -> vector<8x256xf32>
    %139 = arith.addf %115, %138 : vector<8x256xf32>
    %140 = vector.extract_strided_slice %75 {offsets = [0, 64], sizes = [8, 32], strides = [1, 1]} : vector<8x256xf32> to vector<8x32xf32>
    %141 = vector.shape_cast %140 : vector<8x32xf32> to vector<1x8x32xf32>
    %142 = vector.extract_strided_slice %82 {offsets = [0, 64], sizes = [16, 32], strides = [1, 1]} : vector<16x256xf32> to vector<16x32xf32>
    %143 = vector.shape_cast %142 : vector<16x32xf32> to vector<1x16x32xf32>
    %144 = vector.extract_strided_slice %89 {offsets = [0, 64], sizes = [16, 32], strides = [1, 1]} : vector<16x256xf32> to vector<16x32xf32>
    %145 = vector.shape_cast %144 : vector<16x32xf32> to vector<1x16x32xf32>
    "tpu.trace_start"() <{level = 10 : i32, message = "bqd,bkd->bqk"}> : () -> ()
    %cst_62 = arith.constant dense<0.000000e+00> : vector<1x8x16xf32>
    %146 = tpu.matmul %141, %143, %cst_62 {dimension_numbers = #tpu.dot_dimension_numbers<[2], [2], [1], [1], [0, 0, 0, 1, 1, 1], [0], [0]>} : vector<1x8x32xf32>, vector<1x16x32xf32>, vector<1x8x16xf32> -> vector<1x8x16xf32>
    "tpu.trace_stop"() : () -> ()
    %cst_63 = arith.constant 0.176776692 : f32
    %147 = vector.broadcast %cst_63 : f32 to vector<1x8x16xf32>
    %148 = arith.mulf %146, %147 : vector<1x8x16xf32>
    %cst_64 = arith.constant dense<0xFF800000> : vector<1x8xf32>
    %149 = vector.multi_reduction <maximumf>, %148, %cst_64 [2] : vector<1x8x16xf32> to vector<1x8xf32>
    %150 = vector.shape_cast %149 : vector<1x8xf32> to vector<1x8x1xf32>
    %151 = vector.broadcast %150 : vector<1x8x1xf32> to vector<1x8x16xf32>
    %152 = arith.subf %148, %151 : vector<1x8x16xf32>
    %153 = math.exp %152 : vector<1x8x16xf32>
    %cst_65 = arith.constant dense<0.000000e+00> : vector<1x8xf32>
    %154 = vector.multi_reduction <add>, %153, %cst_65 [2] : vector<1x8x16xf32> to vector<1x8xf32>
    %155 = vector.shape_cast %154 : vector<1x8xf32> to vector<1x8x1xf32>
    %156 = vector.broadcast %155 : vector<1x8x1xf32> to vector<1x8x16xf32>
    %157 = arith.divf %153, %156 : vector<1x8x16xf32>
    %158 = arith.addf %134, %157 : vector<1x8x16xf32>
    "tpu.trace_start"() <{level = 10 : i32, message = "bqk,bkd->bqd"}> : () -> ()
    %cst_66 = arith.constant dense<0.000000e+00> : vector<1x8x32xf32>
    %159 = tpu.matmul %157, %145, %cst_66 {dimension_numbers = #tpu.dot_dimension_numbers<[2], [1], [1], [2], [0, 0, 0, 1, 1, 2], [0], [0]>} : vector<1x8x16xf32>, vector<1x16x32xf32>, vector<1x8x32xf32> -> vector<1x8x32xf32>
    "tpu.trace_stop"() : () -> ()
    %c64 = arith.constant 64 : index
    %c0_67 = arith.constant 0 : index
    %160 = vector.load %arg15[%c64, %c0_67] : memref<256x256xf32, #tpu.memory_space<vmem>>, vector<32x256xf32>
    %161 = vector.shape_cast %159 : vector<1x8x32xf32> to vector<8x32xf32>
    %cst_68 = arith.constant dense<0.000000e+00> : vector<8x256xf32>
    %162 = tpu.matmul %161, %160, %cst_68 {dimension_numbers = #tpu.dot_dimension_numbers<[1], [0], [0], [1], [0, 0, 1, 1], [], []>} : vector<8x32xf32>, vector<32x256xf32>, vector<8x256xf32> -> vector<8x256xf32>
    %163 = arith.addf %139, %162 : vector<8x256xf32>
    %164 = vector.extract_strided_slice %75 {offsets = [0, 96], sizes = [8, 32], strides = [1, 1]} : vector<8x256xf32> to vector<8x32xf32>
    %165 = vector.shape_cast %164 : vector<8x32xf32> to vector<1x8x32xf32>
    %166 = vector.extract_strided_slice %82 {offsets = [0, 96], sizes = [16, 32], strides = [1, 1]} : vector<16x256xf32> to vector<16x32xf32>
    %167 = vector.shape_cast %166 : vector<16x32xf32> to vector<1x16x32xf32>
    %168 = vector.extract_strided_slice %89 {offsets = [0, 96], sizes = [16, 32], strides = [1, 1]} : vector<16x256xf32> to vector<16x32xf32>
    %169 = vector.shape_cast %168 : vector<16x32xf32> to vector<1x16x32xf32>
    "tpu.trace_start"() <{level = 10 : i32, message = "bqd,bkd->bqk"}> : () -> ()
    %cst_69 = arith.constant dense<0.000000e+00> : vector<1x8x16xf32>
    %170 = tpu.matmul %165, %167, %cst_69 {dimension_numbers = #tpu.dot_dimension_numbers<[2], [2], [1], [1], [0, 0, 0, 1, 1, 1], [0], [0]>} : vector<1x8x32xf32>, vector<1x16x32xf32>, vector<1x8x16xf32> -> vector<1x8x16xf32>
    "tpu.trace_stop"() : () -> ()
    %cst_70 = arith.constant 0.176776692 : f32
    %171 = vector.broadcast %cst_70 : f32 to vector<1x8x16xf32>
    %172 = arith.mulf %170, %171 : vector<1x8x16xf32>
    %cst_71 = arith.constant dense<0xFF800000> : vector<1x8xf32>
    %173 = vector.multi_reduction <maximumf>, %172, %cst_71 [2] : vector<1x8x16xf32> to vector<1x8xf32>
    %174 = vector.shape_cast %173 : vector<1x8xf32> to vector<1x8x1xf32>
    %175 = vector.broadcast %174 : vector<1x8x1xf32> to vector<1x8x16xf32>
    %176 = arith.subf %172, %175 : vector<1x8x16xf32>
    %177 = math.exp %176 : vector<1x8x16xf32>
    %cst_72 = arith.constant dense<0.000000e+00> : vector<1x8xf32>
    %178 = vector.multi_reduction <add>, %177, %cst_72 [2] : vector<1x8x16xf32> to vector<1x8xf32>
    %179 = vector.shape_cast %178 : vector<1x8xf32> to vector<1x8x1xf32>
    %180 = vector.broadcast %179 : vector<1x8x1xf32> to vector<1x8x16xf32>
    %181 = arith.divf %177, %180 : vector<1x8x16xf32>
    %182 = arith.addf %158, %181 : vector<1x8x16xf32>
    "tpu.trace_start"() <{level = 10 : i32, message = "bqk,bkd->bqd"}> : () -> ()
    %cst_73 = arith.constant dense<0.000000e+00> : vector<1x8x32xf32>
    %183 = tpu.matmul %181, %169, %cst_73 {dimension_numbers = #tpu.dot_dimension_numbers<[2], [1], [1], [2], [0, 0, 0, 1, 1, 2], [0], [0]>} : vector<1x8x16xf32>, vector<1x16x32xf32>, vector<1x8x32xf32> -> vector<1x8x32xf32>
    "tpu.trace_stop"() : () -> ()
    %c96 = arith.constant 96 : index
    %c0_74 = arith.constant 0 : index
    %184 = vector.load %arg15[%c96, %c0_74] : memref<256x256xf32, #tpu.memory_space<vmem>>, vector<32x256xf32>
    %185 = vector.shape_cast %183 : vector<1x8x32xf32> to vector<8x32xf32>
    %cst_75 = arith.constant dense<0.000000e+00> : vector<8x256xf32>
    %186 = tpu.matmul %185, %184, %cst_75 {dimension_numbers = #tpu.dot_dimension_numbers<[1], [0], [0], [1], [0, 0, 1, 1], [], []>} : vector<8x32xf32>, vector<32x256xf32>, vector<8x256xf32> -> vector<8x256xf32>
    %187 = arith.addf %163, %186 : vector<8x256xf32>
    %188 = vector.extract_strided_slice %75 {offsets = [0, 128], sizes = [8, 32], strides = [1, 1]} : vector<8x256xf32> to vector<8x32xf32>
    %189 = vector.shape_cast %188 : vector<8x32xf32> to vector<1x8x32xf32>
    %190 = vector.extract_strided_slice %82 {offsets = [0, 128], sizes = [16, 32], strides = [1, 1]} : vector<16x256xf32> to vector<16x32xf32>
    %191 = vector.shape_cast %190 : vector<16x32xf32> to vector<1x16x32xf32>
    %192 = vector.extract_strided_slice %89 {offsets = [0, 128], sizes = [16, 32], strides = [1, 1]} : vector<16x256xf32> to vector<16x32xf32>
    %193 = vector.shape_cast %192 : vector<16x32xf32> to vector<1x16x32xf32>
    "tpu.trace_start"() <{level = 10 : i32, message = "bqd,bkd->bqk"}> : () -> ()
    %cst_76 = arith.constant dense<0.000000e+00> : vector<1x8x16xf32>
    %194 = tpu.matmul %189, %191, %cst_76 {dimension_numbers = #tpu.dot_dimension_numbers<[2], [2], [1], [1], [0, 0, 0, 1, 1, 1], [0], [0]>} : vector<1x8x32xf32>, vector<1x16x32xf32>, vector<1x8x16xf32> -> vector<1x8x16xf32>
    "tpu.trace_stop"() : () -> ()
    %cst_77 = arith.constant 0.176776692 : f32
    %195 = vector.broadcast %cst_77 : f32 to vector<1x8x16xf32>
    %196 = arith.mulf %194, %195 : vector<1x8x16xf32>
    %cst_78 = arith.constant dense<0xFF800000> : vector<1x8xf32>
    %197 = vector.multi_reduction <maximumf>, %196, %cst_78 [2] : vector<1x8x16xf32> to vector<1x8xf32>
    %198 = vector.shape_cast %197 : vector<1x8xf32> to vector<1x8x1xf32>
    %199 = vector.broadcast %198 : vector<1x8x1xf32> to vector<1x8x16xf32>
    %200 = arith.subf %196, %199 : vector<1x8x16xf32>
    %201 = math.exp %200 : vector<1x8x16xf32>
    %cst_79 = arith.constant dense<0.000000e+00> : vector<1x8xf32>
    %202 = vector.multi_reduction <add>, %201, %cst_79 [2] : vector<1x8x16xf32> to vector<1x8xf32>
    %203 = vector.shape_cast %202 : vector<1x8xf32> to vector<1x8x1xf32>
    %204 = vector.broadcast %203 : vector<1x8x1xf32> to vector<1x8x16xf32>
    %205 = arith.divf %201, %204 : vector<1x8x16xf32>
    %206 = arith.addf %182, %205 : vector<1x8x16xf32>
    "tpu.trace_start"() <{level = 10 : i32, message = "bqk,bkd->bqd"}> : () -> ()
    %cst_80 = arith.constant dense<0.000000e+00> : vector<1x8x32xf32>
    %207 = tpu.matmul %205, %193, %cst_80 {dimension_numbers = #tpu.dot_dimension_numbers<[2], [1], [1], [2], [0, 0, 0, 1, 1, 2], [0], [0]>} : vector<1x8x16xf32>, vector<1x16x32xf32>, vector<1x8x32xf32> -> vector<1x8x32xf32>
    "tpu.trace_stop"() : () -> ()
    %c128 = arith.constant 128 : index
    %c0_81 = arith.constant 0 : index
    %208 = vector.load %arg15[%c128, %c0_81] : memref<256x256xf32, #tpu.memory_space<vmem>>, vector<32x256xf32>
    %209 = vector.shape_cast %207 : vector<1x8x32xf32> to vector<8x32xf32>
    %cst_82 = arith.constant dense<0.000000e+00> : vector<8x256xf32>
    %210 = tpu.matmul %209, %208, %cst_82 {dimension_numbers = #tpu.dot_dimension_numbers<[1], [0], [0], [1], [0, 0, 1, 1], [], []>} : vector<8x32xf32>, vector<32x256xf32>, vector<8x256xf32> -> vector<8x256xf32>
    %211 = arith.addf %187, %210 : vector<8x256xf32>
    %212 = vector.extract_strided_slice %75 {offsets = [0, 160], sizes = [8, 32], strides = [1, 1]} : vector<8x256xf32> to vector<8x32xf32>
    %213 = vector.shape_cast %212 : vector<8x32xf32> to vector<1x8x32xf32>
    %214 = vector.extract_strided_slice %82 {offsets = [0, 160], sizes = [16, 32], strides = [1, 1]} : vector<16x256xf32> to vector<16x32xf32>
    %215 = vector.shape_cast %214 : vector<16x32xf32> to vector<1x16x32xf32>
    %216 = vector.extract_strided_slice %89 {offsets = [0, 160], sizes = [16, 32], strides = [1, 1]} : vector<16x256xf32> to vector<16x32xf32>
    %217 = vector.shape_cast %216 : vector<16x32xf32> to vector<1x16x32xf32>
    "tpu.trace_start"() <{level = 10 : i32, message = "bqd,bkd->bqk"}> : () -> ()
    %cst_83 = arith.constant dense<0.000000e+00> : vector<1x8x16xf32>
    %218 = tpu.matmul %213, %215, %cst_83 {dimension_numbers = #tpu.dot_dimension_numbers<[2], [2], [1], [1], [0, 0, 0, 1, 1, 1], [0], [0]>} : vector<1x8x32xf32>, vector<1x16x32xf32>, vector<1x8x16xf32> -> vector<1x8x16xf32>
    "tpu.trace_stop"() : () -> ()
    %cst_84 = arith.constant 0.176776692 : f32
    %219 = vector.broadcast %cst_84 : f32 to vector<1x8x16xf32>
    %220 = arith.mulf %218, %219 : vector<1x8x16xf32>
    %cst_85 = arith.constant dense<0xFF800000> : vector<1x8xf32>
    %221 = vector.multi_reduction <maximumf>, %220, %cst_85 [2] : vector<1x8x16xf32> to vector<1x8xf32>
    %222 = vector.shape_cast %221 : vector<1x8xf32> to vector<1x8x1xf32>
    %223 = vector.broadcast %222 : vector<1x8x1xf32> to vector<1x8x16xf32>
    %224 = arith.subf %220, %223 : vector<1x8x16xf32>
    %225 = math.exp %224 : vector<1x8x16xf32>
    %cst_86 = arith.constant dense<0.000000e+00> : vector<1x8xf32>
    %226 = vector.multi_reduction <add>, %225, %cst_86 [2] : vector<1x8x16xf32> to vector<1x8xf32>
    %227 = vector.shape_cast %226 : vector<1x8xf32> to vector<1x8x1xf32>
    %228 = vector.broadcast %227 : vector<1x8x1xf32> to vector<1x8x16xf32>
    %229 = arith.divf %225, %228 : vector<1x8x16xf32>
    %230 = arith.addf %206, %229 : vector<1x8x16xf32>
    "tpu.trace_start"() <{level = 10 : i32, message = "bqk,bkd->bqd"}> : () -> ()
    %cst_87 = arith.constant dense<0.000000e+00> : vector<1x8x32xf32>
    %231 = tpu.matmul %229, %217, %cst_87 {dimension_numbers = #tpu.dot_dimension_numbers<[2], [1], [1], [2], [0, 0, 0, 1, 1, 2], [0], [0]>} : vector<1x8x16xf32>, vector<1x16x32xf32>, vector<1x8x32xf32> -> vector<1x8x32xf32>
    "tpu.trace_stop"() : () -> ()
    %c160 = arith.constant 160 : index
    %c0_88 = arith.constant 0 : index
    %232 = vector.load %arg15[%c160, %c0_88] : memref<256x256xf32, #tpu.memory_space<vmem>>, vector<32x256xf32>
    %233 = vector.shape_cast %231 : vector<1x8x32xf32> to vector<8x32xf32>
    %cst_89 = arith.constant dense<0.000000e+00> : vector<8x256xf32>
    %234 = tpu.matmul %233, %232, %cst_89 {dimension_numbers = #tpu.dot_dimension_numbers<[1], [0], [0], [1], [0, 0, 1, 1], [], []>} : vector<8x32xf32>, vector<32x256xf32>, vector<8x256xf32> -> vector<8x256xf32>
    %235 = arith.addf %211, %234 : vector<8x256xf32>
    %236 = vector.extract_strided_slice %75 {offsets = [0, 192], sizes = [8, 32], strides = [1, 1]} : vector<8x256xf32> to vector<8x32xf32>
    %237 = vector.shape_cast %236 : vector<8x32xf32> to vector<1x8x32xf32>
    %238 = vector.extract_strided_slice %82 {offsets = [0, 192], sizes = [16, 32], strides = [1, 1]} : vector<16x256xf32> to vector<16x32xf32>
    %239 = vector.shape_cast %238 : vector<16x32xf32> to vector<1x16x32xf32>
    %240 = vector.extract_strided_slice %89 {offsets = [0, 192], sizes = [16, 32], strides = [1, 1]} : vector<16x256xf32> to vector<16x32xf32>
    %241 = vector.shape_cast %240 : vector<16x32xf32> to vector<1x16x32xf32>
    "tpu.trace_start"() <{level = 10 : i32, message = "bqd,bkd->bqk"}> : () -> ()
    %cst_90 = arith.constant dense<0.000000e+00> : vector<1x8x16xf32>
    %242 = tpu.matmul %237, %239, %cst_90 {dimension_numbers = #tpu.dot_dimension_numbers<[2], [2], [1], [1], [0, 0, 0, 1, 1, 1], [0], [0]>} : vector<1x8x32xf32>, vector<1x16x32xf32>, vector<1x8x16xf32> -> vector<1x8x16xf32>
    "tpu.trace_stop"() : () -> ()
    %cst_91 = arith.constant 0.176776692 : f32
    %243 = vector.broadcast %cst_91 : f32 to vector<1x8x16xf32>
    %244 = arith.mulf %242, %243 : vector<1x8x16xf32>
    %cst_92 = arith.constant dense<0xFF800000> : vector<1x8xf32>
    %245 = vector.multi_reduction <maximumf>, %244, %cst_92 [2] : vector<1x8x16xf32> to vector<1x8xf32>
    %246 = vector.shape_cast %245 : vector<1x8xf32> to vector<1x8x1xf32>
    %247 = vector.broadcast %246 : vector<1x8x1xf32> to vector<1x8x16xf32>
    %248 = arith.subf %244, %247 : vector<1x8x16xf32>
    %249 = math.exp %248 : vector<1x8x16xf32>
    %cst_93 = arith.constant dense<0.000000e+00> : vector<1x8xf32>
    %250 = vector.multi_reduction <add>, %249, %cst_93 [2] : vector<1x8x16xf32> to vector<1x8xf32>
    %251 = vector.shape_cast %250 : vector<1x8xf32> to vector<1x8x1xf32>
    %252 = vector.broadcast %251 : vector<1x8x1xf32> to vector<1x8x16xf32>
    %253 = arith.divf %249, %252 : vector<1x8x16xf32>
    %254 = arith.addf %230, %253 : vector<1x8x16xf32>
    "tpu.trace_start"() <{level = 10 : i32, message = "bqk,bkd->bqd"}> : () -> ()
    %cst_94 = arith.constant dense<0.000000e+00> : vector<1x8x32xf32>
    %255 = tpu.matmul %253, %241, %cst_94 {dimension_numbers = #tpu.dot_dimension_numbers<[2], [1], [1], [2], [0, 0, 0, 1, 1, 2], [0], [0]>} : vector<1x8x16xf32>, vector<1x16x32xf32>, vector<1x8x32xf32> -> vector<1x8x32xf32>
    "tpu.trace_stop"() : () -> ()
    %c192 = arith.constant 192 : index
    %c0_95 = arith.constant 0 : index
    %256 = vector.load %arg15[%c192, %c0_95] : memref<256x256xf32, #tpu.memory_space<vmem>>, vector<32x256xf32>
    %257 = vector.shape_cast %255 : vector<1x8x32xf32> to vector<8x32xf32>
    %cst_96 = arith.constant dense<0.000000e+00> : vector<8x256xf32>
    %258 = tpu.matmul %257, %256, %cst_96 {dimension_numbers = #tpu.dot_dimension_numbers<[1], [0], [0], [1], [0, 0, 1, 1], [], []>} : vector<8x32xf32>, vector<32x256xf32>, vector<8x256xf32> -> vector<8x256xf32>
    %259 = arith.addf %235, %258 : vector<8x256xf32>
    %260 = vector.extract_strided_slice %75 {offsets = [0, 224], sizes = [8, 32], strides = [1, 1]} : vector<8x256xf32> to vector<8x32xf32>
    %261 = vector.shape_cast %260 : vector<8x32xf32> to vector<1x8x32xf32>
    %262 = vector.extract_strided_slice %82 {offsets = [0, 224], sizes = [16, 32], strides = [1, 1]} : vector<16x256xf32> to vector<16x32xf32>
    %263 = vector.shape_cast %262 : vector<16x32xf32> to vector<1x16x32xf32>
    %264 = vector.extract_strided_slice %89 {offsets = [0, 224], sizes = [16, 32], strides = [1, 1]} : vector<16x256xf32> to vector<16x32xf32>
    %265 = vector.shape_cast %264 : vector<16x32xf32> to vector<1x16x32xf32>
    "tpu.trace_start"() <{level = 10 : i32, message = "bqd,bkd->bqk"}> : () -> ()
    %cst_97 = arith.constant dense<0.000000e+00> : vector<1x8x16xf32>
    %266 = tpu.matmul %261, %263, %cst_97 {dimension_numbers = #tpu.dot_dimension_numbers<[2], [2], [1], [1], [0, 0, 0, 1, 1, 1], [0], [0]>} : vector<1x8x32xf32>, vector<1x16x32xf32>, vector<1x8x16xf32> -> vector<1x8x16xf32>
    "tpu.trace_stop"() : () -> ()
    %cst_98 = arith.constant 0.176776692 : f32
    %267 = vector.broadcast %cst_98 : f32 to vector<1x8x16xf32>
    %268 = arith.mulf %266, %267 : vector<1x8x16xf32>
    %cst_99 = arith.constant dense<0xFF800000> : vector<1x8xf32>
    %269 = vector.multi_reduction <maximumf>, %268, %cst_99 [2] : vector<1x8x16xf32> to vector<1x8xf32>
    %270 = vector.shape_cast %269 : vector<1x8xf32> to vector<1x8x1xf32>
    %271 = vector.broadcast %270 : vector<1x8x1xf32> to vector<1x8x16xf32>
    %272 = arith.subf %268, %271 : vector<1x8x16xf32>
    %273 = math.exp %272 : vector<1x8x16xf32>
    %cst_100 = arith.constant dense<0.000000e+00> : vector<1x8xf32>
    %274 = vector.multi_reduction <add>, %273, %cst_100 [2] : vector<1x8x16xf32> to vector<1x8xf32>
    %275 = vector.shape_cast %274 : vector<1x8xf32> to vector<1x8x1xf32>
    %276 = vector.broadcast %275 : vector<1x8x1xf32> to vector<1x8x16xf32>
    %277 = arith.divf %273, %276 : vector<1x8x16xf32>
    %278 = arith.addf %254, %277 : vector<1x8x16xf32>
    "tpu.trace_start"() <{level = 10 : i32, message = "bqk,bkd->bqd"}> : () -> ()
    %cst_101 = arith.constant dense<0.000000e+00> : vector<1x8x32xf32>
    %279 = tpu.matmul %277, %265, %cst_101 {dimension_numbers = #tpu.dot_dimension_numbers<[2], [1], [1], [2], [0, 0, 0, 1, 1, 2], [0], [0]>} : vector<1x8x16xf32>, vector<1x16x32xf32>, vector<1x8x32xf32> -> vector<1x8x32xf32>
    "tpu.trace_stop"() : () -> ()
    %c224 = arith.constant 224 : index
    %c0_102 = arith.constant 0 : index
    %280 = vector.load %arg15[%c224, %c0_102] : memref<256x256xf32, #tpu.memory_space<vmem>>, vector<32x256xf32>
    %281 = vector.shape_cast %279 : vector<1x8x32xf32> to vector<8x32xf32>
    %cst_103 = arith.constant dense<0.000000e+00> : vector<8x256xf32>
    %282 = tpu.matmul %281, %280, %cst_103 {dimension_numbers = #tpu.dot_dimension_numbers<[1], [0], [0], [1], [0, 0, 1, 1], [], []>} : vector<8x32xf32>, vector<32x256xf32>, vector<8x256xf32> -> vector<8x256xf32>
    %283 = arith.addf %259, %282 : vector<8x256xf32>
    %c0_104 = arith.constant 0 : index
    %c0_105 = arith.constant 0 : index
    %284 = vector.load %arg16[%c0_104, %c0_105] : memref<1x256xf32, #tpu.memory_space<vmem>>, vector<1x256xf32>
    %285 = vector.shape_cast %284 : vector<1x256xf32> to vector<256xf32>
    %286 = vector.shape_cast %285 : vector<256xf32> to vector<1x256xf32>
    %287 = vector.broadcast %286 : vector<1x256xf32> to vector<8x256xf32>
    %288 = arith.addf %283, %287 : vector<8x256xf32>
    %289 = vector.shape_cast %288 : vector<8x256xf32> to vector<1x8x256xf32>
    %290 = arith.addf %289, %0 : vector<1x8x256xf32>
    %c0_106 = arith.constant 0 : index
    %c0_107 = arith.constant 0 : index
    %c0_108 = arith.constant 0 : index
    %291 = vector.load %arg17[%c0_106, %c0_107, %c0_108] : memref<1x8x256xf32, #tpu.memory_space<vmem>>, vector<1x8x256xf32>
    tpu.vector_store %arg17[%c0_106, %c0_107, %c0_108], %290 {strides = array<i32>} : memref<1x8x256xf32, #tpu.memory_space<vmem>>, vector<1x8x256xf32>,
    %cst_109 = arith.constant 1.250000e-01 : f32
    %292 = vector.broadcast %cst_109 : f32 to vector<1x8x16xf32>
    %293 = arith.mulf %278, %292 : vector<1x8x16xf32>
    %c0_110 = arith.constant 0 : index
    %c0_111 = arith.constant 0 : index
    %c0_112 = arith.constant 0 : index
    %294 = vector.load %arg18[%c0_110, %c0_111, %c0_112] : memref<1x8x16xf32, #tpu.memory_space<vmem>>, vector<1x8x16xf32>
    tpu.vector_store %arg18[%c0_110, %c0_111, %c0_112], %293 {strides = array<i32>} : memref<1x8x16xf32, #tpu.memory_space<vmem>>, vector<1x8x16xf32>,
    return
  }
  func.func @transform_0(%arg0: i32) -> (i32, i32, i32) {
    %c0_i32 = arith.constant 0 : i32
    %c0_i32_0 = arith.constant 0 : i32
    %c0_i32_1 = arith.constant 0 : i32
    return %arg0, %c0_i32, %c0_i32_0 : i32, i32, i32
  }
  func.func @transform_1(%arg0: i32) -> (i32, i32, i32) {
    %c0_i32 = arith.constant 0 : i32
    %c0_i32_0 = arith.constant 0 : i32
    %c0_i32_1 = arith.constant 0 : i32
    return %arg0, %c0_i32, %c0_i32_0 : i32, i32, i32
  }
  func.func @transform_2(%arg0: i32) -> (i32, i32, i32) {
    %c0_i32 = arith.constant 0 : i32
    %c0_i32_0 = arith.constant 0 : i32
    %c0_i32_1 = arith.constant 0 : i32
    return %arg0, %c0_i32, %c0_i32_0 : i32, i32, i32
  }
  func.func @transform_3(%arg0: i32) -> (i32, i32, i32) {
    %c0_i32 = arith.constant 0 : i32
    %c0_i32_0 = arith.constant 0 : i32
    %c0_i32_1 = arith.constant 0 : i32
    return %arg0, %c0_i32, %c0_i32_0 : i32, i32, i32
  }
  func.func @transform_4(%arg0: i32) -> (i32, i32) {
    %c0_i32 = arith.constant 0 : i32
    %c0_i32_0 = arith.constant 0 : i32
    %c0_i32_1 = arith.constant 0 : i32
    return %c0_i32, %c0_i32_0 : i32, i32
  }
  func.func @transform_5(%arg0: i32) -> (i32, i32) {
    %c0_i32 = arith.constant 0 : i32
    %c0_i32_0 = arith.constant 0 : i32
    %c0_i32_1 = arith.constant 0 : i32
    return %c0_i32, %c0_i32_0 : i32, i32
  }
  func.func @transform_6(%arg0: i32) -> (i32, i32) {
    %c0_i32 = arith.constant 0 : i32
    %c0_i32_0 = arith.constant 0 : i32
    %c0_i32_1 = arith.constant 0 : i32
    return %c0_i32, %c0_i32_0 : i32, i32
  }
  func.func @transform_7(%arg0: i32) -> (i32, i32) {
    %c0_i32 = arith.constant 0 : i32
    %c0_i32_0 = arith.constant 0 : i32
    %c0_i32_1 = arith.constant 0 : i32
    return %c0_i32, %c0_i32_0 : i32, i32
  }
  func.func @transform_8(%arg0: i32) -> (i32, i32) {
    %c0_i32 = arith.constant 0 : i32
    %c0_i32_0 = arith.constant 0 : i32
    %c0_i32_1 = arith.constant 0 : i32
    return %c0_i32, %c0_i32_0 : i32, i32
  }
  func.func @transform_9(%arg0: i32) -> (i32, i32) {
    %c0_i32 = arith.constant 0 : i32
    %c0_i32_0 = arith.constant 0 : i32
    %c0_i32_1 = arith.constant 0 : i32
    return %c0_i32, %c0_i32_0 : i32, i32
  }
  func.func @transform_10(%arg0: i32) -> (i32, i32) {
    %c0_i32 = arith.constant 0 : i32
    %c0_i32_0 = arith.constant 0 : i32
    %c0_i32_1 = arith.constant 0 : i32
    return %c0_i32, %c0_i32_0 : i32, i32
  }
  func.func @transform_11(%arg0: i32) -> (i32, i32) {
    %c0_i32 = arith.constant 0 : i32
    %c0_i32_0 = arith.constant 0 : i32
    %c0_i32_1 = arith.constant 0 : i32
    return %c0_i32, %c0_i32_0 : i32, i32
  }
  func.func @transform_12(%arg0: i32) -> (i32, i32) {
    %c0_i32 = arith.constant 0 : i32
    %c0_i32_0 = arith.constant 0 : i32
    %c0_i32_1 = arith.constant 0 : i32
    return %c0_i32, %c0_i32_0 : i32, i32
  }
  func.func @transform_13(%arg0: i32) -> (i32, i32) {
    %c0_i32 = arith.constant 0 : i32
    %c0_i32_0 = arith.constant 0 : i32
    %c0_i32_1 = arith.constant 0 : i32
    return %c0_i32, %c0_i32_0 : i32, i32
  }
  func.func @transform_14(%arg0: i32) -> (i32, i32) {
    %c0_i32 = arith.constant 0 : i32
    %c0_i32_0 = arith.constant 0 : i32
    %c0_i32_1 = arith.constant 0 : i32
    return %c0_i32, %c0_i32_0 : i32, i32
  }
  func.func @transform_15(%arg0: i32) -> (i32, i32) {
    %c0_i32 = arith.constant 0 : i32
    %c0_i32_0 = arith.constant 0 : i32
    %c0_i32_1 = arith.constant 0 : i32
    return %c0_i32, %c0_i32_0 : i32, i32
  }
  func.func @transform_16(%arg0: i32) -> (i32, i32, i32) {
    %c0_i32 = arith.constant 0 : i32
    %c0_i32_0 = arith.constant 0 : i32
    %c0_i32_1 = arith.constant 0 : i32
    return %arg0, %c0_i32, %c0_i32_0 : i32, i32, i32
  }
  func.func @transform_17(%arg0: i32) -> (i32, i32, i32) {
    %c0_i32 = arith.constant 0 : i32
    %c0_i32_0 = arith.constant 0 : i32
    %c0_i32_1 = arith.constant 0 : i32
    return %arg0, %c0_i32, %c0_i32_0 : i32, i32, i32
  }
}

</mosaic_0001>

<llo_original>
// kernel: tpu_custom_call.1
$region0: #{tpu_custom_call.1}
  #allocation0 [shape = 'u32[]', space=smem, size = 0x4, offset = 0x4, fixed_abs, tag = 'smem constant byte address 0x4 - core index']
  #allocation1 [shape = 'u32[144,128]{1,0:T(1,128)}', space=vmem, size = 0x12000, scoped, tag = 'internal scratch']
  %s0 = inlined_call_operand.hbm [shape: f32[4,8,256], index: 0, kind: input, shape index: {}]
  %s1 = inlined_call_operand.hbm [shape: f32[4,16,256], index: 1, kind: input, shape index: {}]
  %s2 = inlined_call_operand.hbm [shape: f32[4,8,256], index: 2, kind: input, shape index: {}]
  %s3 = inlined_call_operand.hbm [shape: f32[4,16,256], index: 3, kind: input, shape index: {}]
  %s4 = inlined_call_operand.vmem [shape: f32[1,256], index: 4, kind: input, shape index: {}]
  %s5 = inlined_call_operand.vmem [shape: f32[1,256], index: 5, kind: input, shape index: {}]
  %s6 = inlined_call_operand.vmem [shape: f32[1,256], index: 6, kind: input, shape index: {}]
  %s7 = inlined_call_operand.vmem [shape: f32[1,256], index: 7, kind: input, shape index: {}]
  %s8 = inlined_call_operand.hbm [shape: f32[256,256], index: 8, kind: input, shape index: {}]
  %s9 = inlined_call_operand.hbm [shape: f32[256,256], index: 9, kind: input, shape index: {}]
  %s10 = inlined_call_operand.hbm [shape: f32[256,256], index: 10, kind: input, shape index: {}]
  %s11 = inlined_call_operand.vmem [shape: f32[1,256], index: 11, kind: input, shape index: {}]
  %s12 = inlined_call_operand.vmem [shape: f32[1,256], index: 12, kind: input, shape index: {}]
  %s13 = inlined_call_operand.vmem [shape: f32[1,256], index: 13, kind: input, shape index: {}]
  %s14 = inlined_call_operand.hbm [shape: f32[256,256], index: 14, kind: input, shape index: {}]
  %s15 = inlined_call_operand.vmem [shape: f32[1,256], index: 15, kind: input, shape index: {}]
  %s16 = inlined_call_operand.hbm [shape: f32[4,8,256], index: 16, kind: output, shape index: {0}]
  %s17 = inlined_call_operand.hbm [shape: f32[4,8,16], index: 17, kind: output, shape index: {1}]
  %18 = xla_tuple %s16, %s17
  %s19 = sld [smem:[#allocation0]]
  $region137: #{tpu_custom_call.1} parent=0
    _
  %s21 = ssub.s32 1, %s19
  %s22 = scalar_select 0, %s21, %s19
  $region1: #{tpu_custom_call.1} parent=0
    #allocation2 [shape = 'u8[16384]{0}', space=vmem, size = 0x4000, scoped, tag = 'input window, operand 0']
    #allocation3 [shape = 's32[2]{0}', space=sflag, size = 0x8, scoped, tag = 'scoped memory for tpu_custom_call.1']
    #allocation4 [shape = 's32[2]{0}', space=sflag, size = 0x8, scoped, tag = 'scoped memory for tpu_custom_call.1']
    #allocation5 [shape = 'u8[32768]{0}', space=vmem, size = 0x8000, scoped, tag = 'input window, operand 1']
    #allocation6 [shape = 's32[2]{0}', space=sflag, size = 0x8, scoped, tag = 'scoped memory for tpu_custom_call.1']
    #allocation7 [shape = 'u8[16384]{0}', space=vmem, size = 0x4000, scoped, tag = 'input window, operand 2']
    #allocation8 [shape = 'u8[32768]{0}', space=vmem, size = 0x8000, scoped, tag = 'input window, operand 3']
    #allocation9 [shape = 's32[2]{0}', space=sflag, size = 0x8, scoped, tag = 'scoped memory for tpu_custom_call.1']
    #allocation10 [shape = 'u8[262144]{0}', space=vmem, size = 0x40000, scoped, tag = 'input window, operand 8, single buffered']
    #allocation11 [shape = 'u8[262144]{0}', space=vmem, size = 0x40000, scoped, tag = 'input window, operand 9, single buffered']
    #allocation12 [shape = 's32[1]{0}', space=sflag, size = 0x4, scoped, tag = 'scoped memory for tpu_custom_call.1']
    #allocation13 [shape = 'u8[262144]{0}', space=vmem, size = 0x40000, scoped, tag = 'input window, operand 10, single buffered']
    #allocation14 [shape = 'u8[262144]{0}', space=vmem, size = 0x40000, scoped, tag = 'input window, operand 14, single buffered']
    #allocation15 [shape = 's32[1]{0}', space=sflag, size = 0x4, scoped, tag = 'scoped memory for tpu_custom_call.1']
    #allocation16 [shape = 'u8[16384]{0}', space=vmem, size = 0x4000, scoped, tag = 'output window, operand 0']
    #allocation17 [shape = 'u8[8192]{0}', space=vmem, size = 0x2000, scoped, tag = 'output window, operand 1']
    #allocation18 [shape = 's32[2]{0}', space=sflag, size = 0x8, scoped, tag = 'scoped memory for tpu_custom_call.1']
    %23 = vsyncpa [#allocation3], 0
    %s24 = scalar_lea.sflag [#allocation3], 1
    %25 = vsyncpa %s24, 0
    %26 = vsyncpa [#allocation6], 0
    %s27 = scalar_lea.sflag [#allocation6], 1
    %28 = vsyncpa %s27, 0
    %29 = vsyncpa [#allocation9], 0
    %s30 = scalar_lea.sflag [#allocation9], 1
    %31 = vsyncpa %s30, 0
    %32 = vsyncpa [#allocation12], 0
    %33 = vsyncpa [#allocation15], 0
    %34 = vsyncpa [#allocation4], 0
    %s35 = scalar_lea.sflag [#allocation4], 1
    %36 = vsyncpa %s35, 0
    %37 = vsyncpa [#allocation18], 0
    %s38 = scalar_lea.sflag [#allocation18], 1
    %39 = vsyncpa %s38, 0
    loop: start=0, step=1, limit=6
    $region2: #{tpu_custom_call.1} parent=1 // loop_pre_header
      _
    $region3: #{tpu_custom_call.1} parent=1 // loop_header
      %s41 = sphi 0, %s45
      %p42 = scmp.ge.s32.totalorder %s41, 6
      %s51 = sphi 0, %s53
      %s54 = sphi 0, %s51
      %s55 = sphi 0, %s54
      %s71 = sphi 0, %s55
      %s77 = sphi 0, %s79
      %s80 = sphi 0, %s77
      %s81 = sphi 0, %s80
      %s97 = sphi 0, %s81
      %s103 = sphi 0, %s105
      %s106 = sphi 0, %s103
      %s107 = sphi 0, %s106
      %s123 = sphi 0, %s107
      %s129 = sphi 0, %s131
      %s132 = sphi 0, %s129
      %s133 = sphi 0, %s132
      %s149 = sphi 0, %s133
      %s153 = sphi 0, %s153
      %s155 = sphi 0, %s153
      %s156 = sphi 0, %s155
      %s170 = sphi 0, %s156
      %s174 = sphi 0, %s174
      %s176 = sphi 0, %s174
      %s177 = sphi 0, %s176
      %s191 = sphi 0, %s177
      %s195 = sphi 0, %s195
      %s197 = sphi 0, %s195
      %s198 = sphi 0, %s197
      %s212 = sphi 0, %s198
      %s216 = sphi 0, %s216
      %s218 = sphi 0, %s216
      %s219 = sphi 0, %s218
      %s233 = sphi 0, %s219
      %s237 = sphi 0, %s237
      %s239 = sphi 0, %s237
      %s240 = sphi 0, %s239
      %s254 = sphi 0, %s240
      %s258 = sphi 0, %s258
      %s260 = sphi 0, %s258
      %s261 = sphi 0, %s260
      %s275 = sphi 0, %s261
      %s279 = sphi 0, %s279
      %s281 = sphi 0, %s279
      %s282 = sphi 0, %s281
      %s296 = sphi 0, %s282
      %s300 = sphi 0, %s300
      %s302 = sphi 0, %s300
      %s303 = sphi 0, %s302
      %s317 = sphi 0, %s303
      %s321 = sphi 0, %s321
      %s323 = sphi 0, %s321
      %s324 = sphi 0, %s323
      %s338 = sphi 0, %s324
      %s342 = sphi 0, %s342
      %s344 = sphi 0, %s342
      %s345 = sphi 0, %s344
      %s359 = sphi 0, %s345
      %s363 = sphi 0, %s363
      %s365 = sphi 0, %s363
      %s366 = sphi 0, %s365
      %s380 = sphi 0, %s366
      %s384 = sphi 0, %s384
      %s386 = sphi 0, %s384
      %s387 = sphi 0, %s386
      %s401 = sphi 0, %s387
      %s407 = sphi 0, %s409
      %s410 = sphi 0, %s407
      %s411 = sphi 0, %s410
      %s427 = sphi 0, %s411
      %s433 = sphi 0, %s435
      %s436 = sphi 0, %s433
      %s437 = sphi 0, %s436
      %s453 = sphi 0, %s437
    $region4: #{tpu_custom_call.1} parent=1 // loop_header_branch
      %44 = sbr.rel (%p42) target = $region8
    $region5: #{tpu_custom_call.1} parent=1 // loop_body
      %s46 = ssub.s32 %s41, 1
      %s47 = ssub.s32 %s41, 2
      %s48 = sadd.s32 %s41, 1
      %s49 = ssub.s32 %s41, %s48
      %p50 = scmp.eq.s32.totalorder %s49, 0
      %s52 = sadd.s32 %s51, 1
      %s53 = scalar_select %p50, %s51, %s52
      %p56 = pneg %p50
      %p57 = scmp.eq.s32.totalorder %s41, 3
      %p58 = por %p56, %p57
      %p59 = scmp.ne.s32.totalorder %s51, %s54
      %p60 = scmp.eq.s32.totalorder %s41, 0
      %p61 = por %p59, %p60
      %p62 = scmp.ne.s32.totalorder %s51, %s54
      %p63 = scmp.eq.s32.totalorder %s46, 3
      %p64 = por %p62, %p63
      %p65 = scmp.ne.s32.totalorder %s54, %s55
      %p66 = scmp.eq.s32.totalorder %s46, 0
      %p67 = por %p65, %p66
      %p68 = scmp.ne.s32.totalorder %s54, %s55
      %p69 = scmp.eq.s32.totalorder %s47, 3
      %p70 = por %p68, %p69
      %p72 = scmp.ne.s32.totalorder %s55, %s71
      %p73 = scmp.eq.s32.totalorder %s47, 0
      %p74 = por %p72, %p73
      %s75 = ssub.s32 %s41, %s48
      %p76 = scmp.eq.s32.totalorder %s75, 0
      %s78 = sadd.s32 %s77, 1
      %s79 = scalar_select %p76, %s77, %s78
      %p82 = pneg %p76
      %p83 = scmp.eq.s32.totalorder %s41, 3
      %p84 = por %p82, %p83
      %p85 = scmp.ne.s32.totalorder %s77, %s80
      %p86 = scmp.eq.s32.totalorder %s41, 0
      %p87 = por %p85, %p86
      %p88 = scmp.ne.s32.totalorder %s77, %s80
      %p89 = scmp.eq.s32.totalorder %s46, 3
      %p90 = por %p88, %p89
      %p91 = scmp.ne.s32.totalorder %s80, %s81
      %p92 = scmp.eq.s32.totalorder %s46, 0
      %p93 = por %p91, %p92
      %p94 = scmp.ne.s32.totalorder %s80, %s81
      %p95 = scmp.eq.s32.totalorder %s47, 3
      %p96 = por %p94, %p95
      %p98 = scmp.ne.s32.totalorder %s81, %s97
      %p99 = scmp.eq.s32.totalorder %s47, 0
      %p100 = por %p98, %p99
      %s101 = ssub.s32 %s41, %s48
      %p102 = scmp.eq.s32.totalorder %s101, 0
      %s104 = sadd.s32 %s103, 1
      %s105 = scalar_select %p102, %s103, %s104
      %p108 = pneg %p102
      %p109 = scmp.eq.s32.totalorder %s41, 3
      %p110 = por %p108, %p109
      %p111 = scmp.ne.s32.totalorder %s103, %s106
      %p112 = scmp.eq.s32.totalorder %s41, 0
      %p113 = por %p111, %p112
      %p114 = scmp.ne.s32.totalorder %s103, %s106
      %p115 = scmp.eq.s32.totalorder %s46, 3
      %p116 = por %p114, %p115
      %p117 = scmp.ne.s32.totalorder %s106, %s107
      %p118 = scmp.eq.s32.totalorder %s46, 0
      %p119 = por %p117, %p118
      %p120 = scmp.ne.s32.totalorder %s106, %s107
      %p121 = scmp.eq.s32.totalorder %s47, 3
      %p122 = por %p120, %p121
      %p124 = scmp.ne.s32.totalorder %s107, %s123
      %p125 = scmp.eq.s32.totalorder %s47, 0
      %p126 = por %p124, %p125
      %s127 = ssub.s32 %s41, %s48
      %p128 = scmp.eq.s32.totalorder %s127, 0
      %s130 = sadd.s32 %s129, 1
      %s131 = scalar_select %p128, %s129, %s130
      %p134 = pneg %p128
      %p135 = scmp.eq.s32.totalorder %s41, 3
      %p136 = por %p134, %p135
      %p137 = scmp.ne.s32.totalorder %s129, %s132
      %p138 = scmp.eq.s32.totalorder %s41, 0
      %p139 = por %p137, %p138
      %p140 = scmp.ne.s32.totalorder %s129, %s132
      %p141 = scmp.eq.s32.totalorder %s46, 3
      %p142 = por %p140, %p141
      %p143 = scmp.ne.s32.totalorder %s132, %s133
      %p144 = scmp.eq.s32.totalorder %s46, 0
      %p145 = por %p143, %p144
      %p146 = scmp.ne.s32.totalorder %s132, %s133
      %p147 = scmp.eq.s32.totalorder %s47, 3
      %p148 = por %p146, %p147
      %p150 = scmp.ne.s32.totalorder %s133, %s149
      %p151 = scmp.eq.s32.totalorder %s47, 0
      %p152 = por %p150, %p151
      %s154 = sadd.s32 %s153, 1
      %p157 = scmp.eq.s32.totalorder %s41, 3
      %p158 = scmp.ne.s32.totalorder %s153, %s155
      %p159 = scmp.eq.s32.totalorder %s41, 0
      %p160 = por %p158, %p159
      %p161 = scmp.ne.s32.totalorder %s153, %s155
      %p162 = scmp.eq.s32.totalorder %s46, 3
      %p163 = por %p161, %p162
      %p164 = scmp.ne.s32.totalorder %s155, %s156
      %p165 = scmp.eq.s32.totalorder %s46, 0
      %p166 = por %p164, %p165
      %p167 = scmp.ne.s32.totalorder %s155, %s156
      %p168 = scmp.eq.s32.totalorder %s47, 3
      %p169 = por %p167, %p168
      %p171 = scmp.ne.s32.totalorder %s156, %s170
      %p172 = scmp.eq.s32.totalorder %s47, 0
      %p173 = por %p171, %p172
      %s175 = sadd.s32 %s174, 1
      %p178 = scmp.eq.s32.totalorder %s41, 3
      %p179 = scmp.ne.s32.totalorder %s174, %s176
      %p180 = scmp.eq.s32.totalorder %s41, 0
      %p181 = por %p179, %p180
      %p182 = scmp.ne.s32.totalorder %s174, %s176
      %p183 = scmp.eq.s32.totalorder %s46, 3
      %p184 = por %p182, %p183
      %p185 = scmp.ne.s32.totalorder %s176, %s177
      %p186 = scmp.eq.s32.totalorder %s46, 0
      %p187 = por %p185, %p186
      %p188 = scmp.ne.s32.totalorder %s176, %s177
      %p189 = scmp.eq.s32.totalorder %s47, 3
      %p190 = por %p188, %p189
      %p192 = scmp.ne.s32.totalorder %s177, %s191
      %p193 = scmp.eq.s32.totalorder %s47, 0
      %p194 = por %p192, %p193
      %s196 = sadd.s32 %s195, 1
      %p199 = scmp.eq.s32.totalorder %s41, 3
      %p200 = scmp.ne.s32.totalorder %s195, %s197
      %p201 = scmp.eq.s32.totalorder %s41, 0
      %p202 = por %p200, %p201
      %p203 = scmp.ne.s32.totalorder %s195, %s197
      %p204 = scmp.eq.s32.totalorder %s46, 3
      %p205 = por %p203, %p204
      %p206 = scmp.ne.s32.totalorder %s197, %s198
      %p207 = scmp.eq.s32.totalorder %s46, 0
      %p208 = por %p206, %p207
      %p209 = scmp.ne.s32.totalorder %s197, %s198
      %p210 = scmp.eq.s32.totalorder %s47, 3
      %p211 = por %p209, %p210
      %p213 = scmp.ne.s32.totalorder %s198, %s212
      %p214 = scmp.eq.s32.totalorder %s47, 0
      %p215 = por %p213, %p214
      %s217 = sadd.s32 %s216, 1
      %p220 = scmp.eq.s32.totalorder %s41, 3
      %p221 = scmp.ne.s32.totalorder %s216, %s218
      %p222 = scmp.eq.s32.totalorder %s41, 0
      %p223 = por %p221, %p222
      %p224 = scmp.ne.s32.totalorder %s216, %s218
      %p225 = scmp.eq.s32.totalorder %s46, 3
      %p226 = por %p224, %p225
      %p227 = scmp.ne.s32.totalorder %s218, %s219
      %p228 = scmp.eq.s32.totalorder %s46, 0
      %p229 = por %p227, %p228
      %p230 = scmp.ne.s32.totalorder %s218, %s219
      %p231 = scmp.eq.s32.totalorder %s47, 3
      %p232 = por %p230, %p231
      %p234 = scmp.ne.s32.totalorder %s219, %s233
      %p235 = scmp.eq.s32.totalorder %s47, 0
      %p236 = por %p234, %p235
      %s238 = sadd.s32 %s237, 1
      %p241 = scmp.eq.s32.totalorder %s41, 3
      %p242 = scmp.ne.s32.totalorder %s237, %s239
      %p243 = scmp.eq.s32.totalorder %s41, 0
      %p244 = por %p242, %p243
      %p245 = scmp.ne.s32.totalorder %s237, %s239
      %p246 = scmp.eq.s32.totalorder %s46, 3
      %p247 = por %p245, %p246
      %p248 = scmp.ne.s32.totalorder %s239, %s240
      %p249 = scmp.eq.s32.totalorder %s46, 0
      %p250 = por %p248, %p249
      %p251 = scmp.ne.s32.totalorder %s239, %s240
      %p252 = scmp.eq.s32.totalorder %s47, 3
      %p253 = por %p251, %p252
      %p255 = scmp.ne.s32.totalorder %s240, %s254
      %p256 = scmp.eq.s32.totalorder %s47, 0
      %p257 = por %p255, %p256
      %s259 = sadd.s32 %s258, 1
      %p262 = scmp.eq.s32.totalorder %s41, 3
      %p263 = scmp.ne.s32.totalorder %s258, %s260
      %p264 = scmp.eq.s32.totalorder %s41, 0
      %p265 = por %p263, %p264
      %p266 = scmp.ne.s32.totalorder %s258, %s260
      %p267 = scmp.eq.s32.totalorder %s46, 3
      %p268 = por %p266, %p267
      %p269 = scmp.ne.s32.totalorder %s260, %s261
      %p270 = scmp.eq.s32.totalorder %s46, 0
      %p271 = por %p269, %p270
      %p272 = scmp.ne.s32.totalorder %s260, %s261
      %p273 = scmp.eq.s32.totalorder %s47, 3
      %p274 = por %p272, %p273
      %p276 = scmp.ne.s32.totalorder %s261, %s275
      %p277 = scmp.eq.s32.totalorder %s47, 0
      %p278 = por %p276, %p277
      %s280 = sadd.s32 %s279, 1
      %p283 = scmp.eq.s32.totalorder %s41, 3
      %p284 = scmp.ne.s32.totalorder %s279, %s281
      %p285 = scmp.eq.s32.totalorder %s41, 0
      %p286 = por %p284, %p285
      %p287 = scmp.ne.s32.totalorder %s279, %s281
      %p288 = scmp.eq.s32.totalorder %s46, 3
      %p289 = por %p287, %p288
      %p290 = scmp.ne.s32.totalorder %s281, %s282
      %p291 = scmp.eq.s32.totalorder %s46, 0
      %p292 = por %p290, %p291
      %p293 = scmp.ne.s32.totalorder %s281, %s282
      %p294 = scmp.eq.s32.totalorder %s47, 3
      %p295 = por %p293, %p294
      %p297 = scmp.ne.s32.totalorder %s282, %s296
      %p298 = scmp.eq.s32.totalorder %s47, 0
      %p299 = por %p297, %p298
      %s301 = sadd.s32 %s300, 1
      %p304 = scmp.eq.s32.totalorder %s41, 3
      %p305 = scmp.ne.s32.totalorder %s300, %s302
      %p306 = scmp.eq.s32.totalorder %s41, 0
      %p307 = por %p305, %p306
      %p308 = scmp.ne.s32.totalorder %s300, %s302
      %p309 = scmp.eq.s32.totalorder %s46, 3
      %p310 = por %p308, %p309
      %p311 = scmp.ne.s32.totalorder %s302, %s303
      %p312 = scmp.eq.s32.totalorder %s46, 0
      %p313 = por %p311, %p312
      %p314 = scmp.ne.s32.totalorder %s302, %s303
      %p315 = scmp.eq.s32.totalorder %s47, 3
      %p316 = por %p314, %p315
      %p318 = scmp.ne.s32.totalorder %s303, %s317
      %p319 = scmp.eq.s32.totalorder %s47, 0
      %p320 = por %p318, %p319
      %s322 = sadd.s32 %s321, 1
      %p325 = scmp.eq.s32.totalorder %s41, 3
      %p326 = scmp.ne.s32.totalorder %s321, %s323
      %p327 = scmp.eq.s32.totalorder %s41, 0
      %p328 = por %p326, %p327
      %p329 = scmp.ne.s32.totalorder %s321, %s323
      %p330 = scmp.eq.s32.totalorder %s46, 3
      %p331 = por %p329, %p330
      %p332 = scmp.ne.s32.totalorder %s323, %s324
      %p333 = scmp.eq.s32.totalorder %s46, 0
      %p334 = por %p332, %p333
      %p335 = scmp.ne.s32.totalorder %s323, %s324
      %p336 = scmp.eq.s32.totalorder %s47, 3
      %p337 = por %p335, %p336
      %p339 = scmp.ne.s32.totalorder %s324, %s338
      %p340 = scmp.eq.s32.totalorder %s47, 0
      %p341 = por %p339, %p340
      %s343 = sadd.s32 %s342, 1
      %p346 = scmp.eq.s32.totalorder %s41, 3
      %p347 = scmp.ne.s32.totalorder %s342, %s344
      %p348 = scmp.eq.s32.totalorder %s41, 0
      %p349 = por %p347, %p348
      %p350 = scmp.ne.s32.totalorder %s342, %s344
      %p351 = scmp.eq.s32.totalorder %s46, 3
      %p352 = por %p350, %p351
      %p353 = scmp.ne.s32.totalorder %s344, %s345
      %p354 = scmp.eq.s32.totalorder %s46, 0
      %p355 = por %p353, %p354
      %p356 = scmp.ne.s32.totalorder %s344, %s345
      %p357 = scmp.eq.s32.totalorder %s47, 3
      %p358 = por %p356, %p357
      %p360 = scmp.ne.s32.totalorder %s345, %s359
      %p361 = scmp.eq.s32.totalorder %s47, 0
      %p362 = por %p360, %p361
      %s364 = sadd.s32 %s363, 1
      %p367 = scmp.eq.s32.totalorder %s41, 3
      %p368 = scmp.ne.s32.totalorder %s363, %s365
      %p369 = scmp.eq.s32.totalorder %s41, 0
      %p370 = por %p368, %p369
      %p371 = scmp.ne.s32.totalorder %s363, %s365
      %p372 = scmp.eq.s32.totalorder %s46, 3
      %p373 = por %p371, %p372
      %p374 = scmp.ne.s32.totalorder %s365, %s366
      %p375 = scmp.eq.s32.totalorder %s46, 0
      %p376 = por %p374, %p375
      %p377 = scmp.ne.s32.totalorder %s365, %s366
      %p378 = scmp.eq.s32.totalorder %s47, 3
      %p379 = por %p377, %p378
      %p381 = scmp.ne.s32.totalorder %s366, %s380
      %p382 = scmp.eq.s32.totalorder %s47, 0
      %p383 = por %p381, %p382
      %s385 = sadd.s32 %s384, 1
      %p388 = scmp.eq.s32.totalorder %s41, 3
      %p389 = scmp.ne.s32.totalorder %s384, %s386
      %p390 = scmp.eq.s32.totalorder %s41, 0
      %p391 = por %p389, %p390
      %p392 = scmp.ne.s32.totalorder %s384, %s386
      %p393 = scmp.eq.s32.totalorder %s46, 3
      %p394 = por %p392, %p393
      %p395 = scmp.ne.s32.totalorder %s386, %s387
      %p396 = scmp.eq.s32.totalorder %s46, 0
      %p397 = por %p395, %p396
      %p398 = scmp.ne.s32.totalorder %s386, %s387
      %p399 = scmp.eq.s32.totalorder %s47, 3
      %p400 = por %p398, %p399
      %p402 = scmp.ne.s32.totalorder %s387, %s401
      %p403 = scmp.eq.s32.totalorder %s47, 0
      %p404 = por %p402, %p403
      %s405 = ssub.s32 %s41, %s48
      %p406 = scmp.eq.s32.totalorder %s405, 0
      %s408 = sadd.s32 %s407, 1
      %s409 = scalar_select %p406, %s407, %s408
      %p412 = pneg %p406
      %p413 = scmp.eq.s32.totalorder %s41, 3
      %p414 = por %p412, %p413
      %p415 = scmp.ne.s32.totalorder %s407, %s410
      %p416 = scmp.eq.s32.totalorder %s41, 0
      %p417 = por %p415, %p416
      %p418 = scmp.ne.s32.totalorder %s407, %s410
      %p419 = scmp.eq.s32.totalorder %s46, 3
      %p420 = por %p418, %p419
      %p421 = scmp.ne.s32.totalorder %s410, %s411
      %p422 = scmp.eq.s32.totalorder %s46, 0
      %p423 = por %p421, %p422
      %p424 = scmp.ne.s32.totalorder %s410, %s411
      %p425 = scmp.eq.s32.totalorder %s47, 3
      %p426 = por %p424, %p425
      %p428 = scmp.ne.s32.totalorder %s411, %s427
      %p429 = scmp.eq.s32.totalorder %s47, 0
      %p430 = por %p428, %p429
      %s431 = ssub.s32 %s41, %s48
      %p432 = scmp.eq.s32.totalorder %s431, 0
      %s434 = sadd.s32 %s433, 1
      %s435 = scalar_select %p432, %s433, %s434
      %p438 = pneg %p432
      %p439 = scmp.eq.s32.totalorder %s41, 3
      %p440 = por %p438, %p439
      %p441 = scmp.ne.s32.totalorder %s433, %s436
      %p442 = scmp.eq.s32.totalorder %s41, 0
      %p443 = por %p441, %p442
      %p444 = scmp.ne.s32.totalorder %s433, %s436
      %p445 = scmp.eq.s32.totalorder %s46, 3
      %p446 = por %p444, %p445
      %p447 = scmp.ne.s32.totalorder %s436, %s437
      %p448 = scmp.eq.s32.totalorder %s46, 0
      %p449 = por %p447, %p448
      %p450 = scmp.ne.s32.totalorder %s436, %s437
      %p451 = scmp.eq.s32.totalorder %s47, 3
      %p452 = por %p450, %p451
      %p454 = scmp.ne.s32.totalorder %s437, %s453
      %p455 = scmp.eq.s32.totalorder %s47, 0
      %p456 = por %p454, %p455
      %p457 = scmp.le.s32.totalorder 1, %s41
      %p458 = scmp.lt.s32.totalorder %s41, 5
      %p459 = pnand %p457, %p458
      %p460 = pneg %p459
      // Predicated region
      $region9: #{tpu_custom_call.1} parent=5 // pred_check
        _
      $region10: #{tpu_custom_call.1} parent=5 // pred_check_branch
        %462 = sbr.rel (%p459) target = $region12
      $region11: #{tpu_custom_call.1} parent=5 // pred_region
        %s463 = ssub.s32 %s41, 1
        // Predicated region
        $region13: #{tpu_custom_call.1} parent=11 // pred_check
          %p464 = pneg %p166
        $region14: #{tpu_custom_call.1} parent=11 // pred_check_branch
          %466 = sbr.rel (%p464) target = $region16
        $region15: #{tpu_custom_call.1} parent=11 // pred_region
          _
        $region16: #{tpu_custom_call.1} parent=11 // pred_fallthru
          _
        // Predicated region
        $region17: #{tpu_custom_call.1} parent=11 // pred_check
          %p467 = pneg %p187
        $region18: #{tpu_custom_call.1} parent=11 // pred_check_branch
          %469 = sbr.rel (%p467) target = $region20
        $region19: #{tpu_custom_call.1} parent=11 // pred_region
          _
        $region20: #{tpu_custom_call.1} parent=11 // pred_fallthru
          _
        // Predicated region
        $region21: #{tpu_custom_call.1} parent=11 // pred_check
          %p470 = pneg %p208
        $region22: #{tpu_custom_call.1} parent=11 // pred_check_branch
          %472 = sbr.rel (%p470) target = $region24
        $region23: #{tpu_custom_call.1} parent=11 // pred_region
          _
        $region24: #{tpu_custom_call.1} parent=11 // pred_fallthru
          _
        // Predicated region
        $region25: #{tpu_custom_call.1} parent=11 // pred_check
          %p473 = pneg %p229
        $region26: #{tpu_custom_call.1} parent=11 // pred_check_branch
          %475 = sbr.rel (%p473) target = $region28
        $region27: #{tpu_custom_call.1} parent=11 // pred_region
          _
        $region28: #{tpu_custom_call.1} parent=11 // pred_fallthru
          _
        // Predicated region
        $region29: #{tpu_custom_call.1} parent=11 // pred_check
          %p476 = pneg %p250
        $region30: #{tpu_custom_call.1} parent=11 // pred_check_branch
          %478 = sbr.rel (%p476) target = $region32
        $region31: #{tpu_custom_call.1} parent=11 // pred_region
          %s480 = ssub.s32 8192, 8192
          %481 = vsyncadd [#allocation9], %s480
          %s482 = sshll.u32 [#allocation10], 4
          %s483 = int_to_ptr.vmem [resolvable:$true] %s482
          %488 = dma.hbm_to_vmem [thread:$0]  %s8, 8192, %s483, [#allocation9], 256, 256, 16
        $region32: #{tpu_custom_call.1} parent=11 // pred_fallthru
          _
        // Predicated region
        $region33: #{tpu_custom_call.1} parent=11 // pred_check
          %p489 = pneg %p271
        $region34: #{tpu_custom_call.1} parent=11 // pred_check_branch
          %491 = sbr.rel (%p489) target = $region36
        $region35: #{tpu_custom_call.1} parent=11 // pred_region
          %s493 = ssub.s32 8192, 8192
          %494 = vsyncadd [#allocation12], %s493
          %s495 = sshll.u32 [#allocation11], 4
          %s496 = int_to_ptr.vmem [resolvable:$true] %s495
          %501 = dma.hbm_to_vmem [thread:$0]  %s9, 8192, %s496, [#allocation12], 256, 256, 16
        $region36: #{tpu_custom_call.1} parent=11 // pred_fallthru
          _
        // Predicated region
        $region37: #{tpu_custom_call.1} parent=11 // pred_check
          %p502 = pneg %p292
        $region38: #{tpu_custom_call.1} parent=11 // pred_check_branch
          %504 = sbr.rel (%p502) target = $region40
        $region39: #{tpu_custom_call.1} parent=11 // pred_region
          %s506 = ssub.s32 8192, 8192
          %507 = vsyncadd [#allocation12], %s506
          %s508 = sshll.u32 [#allocation13], 4
          %s509 = int_to_ptr.vmem [resolvable:$true] %s508
          %514 = dma.hbm_to_vmem [thread:$0]  %s10, 8192, %s509, [#allocation12], 256, 256, 16
        $region40: #{tpu_custom_call.1} parent=11 // pred_fallthru
          _
        // Predicated region
        $region41: #{tpu_custom_call.1} parent=11 // pred_check
          %p515 = pneg %p313
        $region42: #{tpu_custom_call.1} parent=11 // pred_check_branch
          %517 = sbr.rel (%p515) target = $region44
        $region43: #{tpu_custom_call.1} parent=11 // pred_region
          _
        $region44: #{tpu_custom_call.1} parent=11 // pred_fallthru
          _
        // Predicated region
        $region45: #{tpu_custom_call.1} parent=11 // pred_check
          %p518 = pneg %p334
        $region46: #{tpu_custom_call.1} parent=11 // pred_check_branch
          %520 = sbr.rel (%p518) target = $region48
        $region47: #{tpu_custom_call.1} parent=11 // pred_region
          _
        $region48: #{tpu_custom_call.1} parent=11 // pred_fallthru
          _
        // Predicated region
        $region49: #{tpu_custom_call.1} parent=11 // pred_check
          %p521 = pneg %p355
        $region50: #{tpu_custom_call.1} parent=11 // pred_check_branch
          %523 = sbr.rel (%p521) target = $region52
        $region51: #{tpu_custom_call.1} parent=11 // pred_region
          _
        $region52: #{tpu_custom_call.1} parent=11 // pred_fallthru
          _
        // Predicated region
        $region53: #{tpu_custom_call.1} parent=11 // pred_check
          %p524 = pneg %p376
        $region54: #{tpu_custom_call.1} parent=11 // pred_check_branch
          %526 = sbr.rel (%p524) target = $region56
        $region55: #{tpu_custom_call.1} parent=11 // pred_region
          %s528 = ssub.s32 8192, 8192
          %529 = vsyncadd [#allocation15], %s528
          %s530 = sshll.u32 [#allocation14], 4
          %s531 = int_to_ptr.vmem [resolvable:$true] %s530
          %536 = dma.hbm_to_vmem [thread:$0]  %s14, 8192, %s531, [#allocation15], 256, 256, 16
        $region56: #{tpu_custom_call.1} parent=11 // pred_fallthru
          _
        // Predicated region
        $region57: #{tpu_custom_call.1} parent=11 // pred_check
          %p537 = pneg %p397
        $region58: #{tpu_custom_call.1} parent=11 // pred_check_branch
          %539 = sbr.rel (%p537) target = $region60
        $region59: #{tpu_custom_call.1} parent=11 // pred_region
          _
        $region60: #{tpu_custom_call.1} parent=11 // pred_fallthru
          _
      $region12: #{tpu_custom_call.1} parent=5 // pred_fallthru
        _
      %p540 = scmp.lt.s32.totalorder %s41, 4
      // Predicated region
      $region61: #{tpu_custom_call.1} parent=5 // pred_check
        %p541 = pneg %p540
      $region62: #{tpu_custom_call.1} parent=5 // pred_check_branch
        %543 = sbr.rel (%p541) target = $region64
      $region63: #{tpu_custom_call.1} parent=5 // pred_region
        // Predicated region
        $region65: #{tpu_custom_call.1} parent=63 // pred_check
          %p544 = pneg %p61
        $region66: #{tpu_custom_call.1} parent=63 // pred_check_branch
          %546 = sbr.rel (%p544) target = $region68
        $region67: #{tpu_custom_call.1} parent=63 // pred_region
          %s547 = sand.u32 %s51, 1
          %s548 = scalar_lea.sflag [#allocation3], %s547
          %s549 = sand.u32 %s51, 1
          %s550 = smul.addr %s549, 16
          %s551 = scalar_lea.vmem [#allocation2], %s550
          %s553 = ssub.s32 256, 256
          %554 = vsyncadd %s548, %s553
          %s555 = smul.addr %s41, 2
          %s556 = smul.addr %s555, 128
          %s557 = scalar_lea.hbm %s0, %s556
          %s559 = sshll.u32 %s551, 4
          %s560 = int_to_ptr.vmem [resolvable:$true] %s559
          %562 = dma.hbm_to_vmem [thread:$0]  %s557, 256, %s560, %s548
        $region68: #{tpu_custom_call.1} parent=63 // pred_fallthru
          _
        // Predicated region
        $region69: #{tpu_custom_call.1} parent=63 // pred_check
          %p563 = pneg %p87
        $region70: #{tpu_custom_call.1} parent=63 // pred_check_branch
          %565 = sbr.rel (%p563) target = $region72
        $region71: #{tpu_custom_call.1} parent=63 // pred_region
          %s566 = sand.u32 %s41, 1
          %s567 = scalar_lea.sflag [#allocation6], %s566
          %s568 = sand.u32 %s77, 1
          %s569 = smul.addr %s568, 32
          %s570 = scalar_lea.vmem [#allocation5], %s569
          %s572 = ssub.s32 512, 512
          %573 = vsyncadd %s567, %s572
          %s574 = smul.addr %s41, 4
          %s575 = smul.addr %s574, 128
          %s576 = scalar_lea.hbm %s1, %s575
          %s577 = sshll.u32 %s570, 4
          %s578 = int_to_ptr.vmem [resolvable:$true] %s577
          %583 = dma.hbm_to_vmem [thread:$0]  %s576, 512, %s578, %s567, 256, 256, 16
        $region72: #{tpu_custom_call.1} parent=63 // pred_fallthru
          _
        // Predicated region
        $region73: #{tpu_custom_call.1} parent=63 // pred_check
          %p584 = pneg %p113
        $region74: #{tpu_custom_call.1} parent=63 // pred_check_branch
          %586 = sbr.rel (%p584) target = $region76
        $region75: #{tpu_custom_call.1} parent=63 // pred_region
          %s587 = sand.u32 %s41, 1
          %s588 = scalar_lea.sflag [#allocation6], %s587
          %s589 = sand.u32 %s103, 1
          %s590 = smul.addr %s589, 16
          %s591 = scalar_lea.vmem [#allocation7], %s590
          %s593 = ssub.s32 256, 256
          %594 = vsyncadd %s588, %s593
          %s595 = smul.addr %s41, 2
          %s596 = smul.addr %s595, 128
          %s597 = scalar_lea.hbm %s2, %s596
          %s599 = sshll.u32 %s591, 4
          %s600 = int_to_ptr.vmem [resolvable:$true] %s599
          %602 = dma.hbm_to_vmem [thread:$0]  %s597, 256, %s600, %s588
        $region76: #{tpu_custom_call.1} parent=63 // pred_fallthru
          _
        // Predicated region
        $region77: #{tpu_custom_call.1} parent=63 // pred_check
          %p603 = pneg %p139
        $region78: #{tpu_custom_call.1} parent=63 // pred_check_branch
          %605 = sbr.rel (%p603) target = $region80
        $region79: #{tpu_custom_call.1} parent=63 // pred_region
          %s606 = sand.u32 %s41, 1
          %s607 = scalar_lea.sflag [#allocation9], %s606
          %s608 = sand.u32 %s129, 1
          %s609 = smul.addr %s608, 32
          %s610 = scalar_lea.vmem [#allocation8], %s609
          %s612 = ssub.s32 512, 512
          %613 = vsyncadd %s607, %s612
          %s614 = smul.addr %s41, 4
          %s615 = smul.addr %s614, 128
          %s616 = scalar_lea.hbm %s3, %s615
          %s617 = sshll.u32 %s610, 4
          %s618 = int_to_ptr.vmem [resolvable:$true] %s617
          %623 = dma.hbm_to_vmem [thread:$0]  %s616, 512, %s618, %s607, 256, 256, 16
        $region80: #{tpu_custom_call.1} parent=63 // pred_fallthru
          _
      $region64: #{tpu_custom_call.1} parent=5 // pred_fallthru
        _
      %p624 = scmp.le.s32.totalorder 1, %s41
      %p625 = scmp.lt.s32.totalorder %s41, 5
      %p626 = pnand %p624, %p625
      %p627 = pneg %p626
      // Predicated region
      $region81: #{tpu_custom_call.1} parent=5 // pred_check
        _
      $region82: #{tpu_custom_call.1} parent=5 // pred_check_branch
        %629 = sbr.rel (%p626) target = $region84
      $region83: #{tpu_custom_call.1} parent=5 // pred_region
        %s630 = ssub.s32 %s41, 1
        %s631 = sand.u32 %s54, 1
        %s632 = scalar_lea.sflag [#allocation3], %s631
        %s633 = sand.u32 %s54, 1
        %s634 = smul.addr %s633, 16
        %s635 = scalar_lea.vmem [#allocation2], %s634
        // Predicated region
        $region85: #{tpu_custom_call.1} parent=83 // pred_check
          %p636 = pneg %p67
        $region86: #{tpu_custom_call.1} parent=83 // pred_check_branch
          %638 = sbr.rel (%p636) target = $region88
        $region87: #{tpu_custom_call.1} parent=83 // pred_region
          %639 = dma.done %s632, 256
        $region88: #{tpu_custom_call.1} parent=83 // pred_fallthru
          _
        %s640 = sand.u32 %s46, 1
        %s641 = scalar_lea.sflag [#allocation6], %s640
        %s642 = sand.u32 %s80, 1
        %s643 = smul.addr %s642, 32
        %s644 = scalar_lea.vmem [#allocation5], %s643
        // Predicated region
        $region89: #{tpu_custom_call.1} parent=83 // pred_check
          %p645 = pneg %p93
        $region90: #{tpu_custom_call.1} parent=83 // pred_check_branch
          %647 = sbr.rel (%p645) target = $region92
        $region91: #{tpu_custom_call.1} parent=83 // pred_region
          %648 = dma.done %s641, 512
        $region92: #{tpu_custom_call.1} parent=83 // pred_fallthru
          _
        %s649 = sand.u32 %s46, 1
        %s650 = scalar_lea.sflag [#allocation6], %s649
        %s651 = sand.u32 %s106, 1
        %s652 = smul.addr %s651, 16
        %s653 = scalar_lea.vmem [#allocation7], %s652
        // Predicated region
        $region93: #{tpu_custom_call.1} parent=83 // pred_check
          %p654 = pneg %p119
        $region94: #{tpu_custom_call.1} parent=83 // pred_check_branch
          %656 = sbr.rel (%p654) target = $region96
        $region95: #{tpu_custom_call.1} parent=83 // pred_region
          %657 = dma.done %s650, 256
        $region96: #{tpu_custom_call.1} parent=83 // pred_fallthru
          _
        %s658 = sand.u32 %s46, 1
        %s659 = scalar_lea.sflag [#allocation9], %s658
        %s660 = sand.u32 %s132, 1
        %s661 = smul.addr %s660, 32
        %s662 = scalar_lea.vmem [#allocation8], %s661
        // Predicated region
        $region97: #{tpu_custom_call.1} parent=83 // pred_check
          %p663 = pneg %p145
        $region98: #{tpu_custom_call.1} parent=83 // pred_check_branch
          %665 = sbr.rel (%p663) target = $region100
        $region99: #{tpu_custom_call.1} parent=83 // pred_region
          %666 = dma.done %s659, 512
        $region100: #{tpu_custom_call.1} parent=83 // pred_fallthru
          _
        // Predicated region
        $region101: #{tpu_custom_call.1} parent=83 // pred_check
          %p667 = pneg %p250
        $region102: #{tpu_custom_call.1} parent=83 // pred_check_branch
          %669 = sbr.rel (%p667) target = $region104
        $region103: #{tpu_custom_call.1} parent=83 // pred_region
          %670 = dma.done [#allocation9], 8192
        $region104: #{tpu_custom_call.1} parent=83 // pred_fallthru
          _
        // Predicated region
        $region105: #{tpu_custom_call.1} parent=83 // pred_check
          %p671 = pneg %p271
        $region106: #{tpu_custom_call.1} parent=83 // pred_check_branch
          %673 = sbr.rel (%p671) target = $region108
        $region107: #{tpu_custom_call.1} parent=83 // pred_region
          %674 = dma.done [#allocation12], 8192
        $region108: #{tpu_custom_call.1} parent=83 // pred_fallthru
          _
        // Predicated region
        $region109: #{tpu_custom_call.1} parent=83 // pred_check
          %p675 = pneg %p292
        $region110: #{tpu_custom_call.1} parent=83 // pred_check_branch
          %677 = sbr.rel (%p675) target = $region112
        $region111: #{tpu_custom_call.1} parent=83 // pred_region
          %678 = dma.done [#allocation12], 8192
        $region112: #{tpu_custom_call.1} parent=83 // pred_fallthru
          _
        // Predicated region
        $region113: #{tpu_custom_call.1} parent=83 // pred_check
          %p679 = pneg %p376
        $region114: #{tpu_custom_call.1} parent=83 // pred_check_branch
          %681 = sbr.rel (%p679) target = $region116
        $region115: #{tpu_custom_call.1} parent=83 // pred_region
          %682 = dma.done [#allocation15], 8192
        $region116: #{tpu_custom_call.1} parent=83 // pred_fallthru
          _
        %s683 = sand.u32 %s54, 1
        %s684 = scalar_lea.sflag [#allocation3], %s683
        %s685 = sand.u32 %s54, 1
        %s686 = smul.addr %s685, 16
        %s687 = scalar_lea.vmem [#allocation2], %s686
        %p688 = pneg %p67
        %p689 = pneg %p64
        %s690 = sand.u32 %s46, 1
        %s691 = scalar_lea.sflag [#allocation6], %s690
        %s692 = sand.u32 %s80, 1
        %s693 = smul.addr %s692, 32
        %s694 = scalar_lea.vmem [#allocation5], %s693
        %p695 = pneg %p93
        %p696 = pneg %p90
        %s697 = sand.u32 %s46, 1
        %s698 = scalar_lea.sflag [#allocation6], %s697
        %s699 = sand.u32 %s106, 1
        %s700 = smul.addr %s699, 16
        %s701 = scalar_lea.vmem [#allocation7], %s700
        %p702 = pneg %p119
        %p703 = pneg %p116
        %s704 = sand.u32 %s46, 1
        %s705 = scalar_lea.sflag [#allocation9], %s704
        %s706 = sand.u32 %s132, 1
        %s707 = smul.addr %s706, 32
        %s708 = scalar_lea.vmem [#allocation8], %s707
        %p709 = pneg %p145
        %p710 = pneg %p142
        %p711 = pneg %p166
        %p712 = pneg %p163
        %p713 = pneg %p187
        %p714 = pneg %p184
        %p715 = pneg %p208
        %p716 = pneg %p205
        %p717 = pneg %p229
        %p718 = pneg %p226
        %p719 = pneg %p250
        %p720 = pneg %p247
        %p721 = pneg %p271
        %p722 = pneg %p268
        %p723 = pneg %p292
        %p724 = pneg %p289
        %p725 = pneg %p313
        %p726 = pneg %p310
        %p727 = pneg %p334
        %p728 = pneg %p331
        %p729 = pneg %p355
        %p730 = pneg %p352
        %p731 = pneg %p376
        %p732 = pneg %p373
        %p733 = pneg %p397
        %p734 = pneg %p394
        %p735 = pneg %p423
        %p736 = pneg %p420
        %s737 = sand.u32 %s410, 1
        %s738 = scalar_lea.sflag [#allocation4], %s737
        %s739 = sand.u32 %s410, 1
        %s740 = smul.addr %s739, 16
        %s741 = scalar_lea.vmem [#allocation16], %s740
        %p742 = pneg %p449
        %p743 = pneg %p446
        %s744 = sand.u32 %s436, 1
        %s745 = scalar_lea.sflag [#allocation18], %s744
        %s746 = sand.u32 %s436, 1
        %s747 = smul.addr %s746, 8
        %s748 = scalar_lea.vmem [#allocation17], %s747
        %v749 = vld [vmem:[%s635] sm:$0xff]
        %v750 = vld [vmem:[%s635 + $0x8] sm:$0xff]
        %v751 = vld [vmem:[%s644] sm:$0xff]
        %v752 = vld [vmem:[%s644 + $0x8] sm:$0xff]
        %v753 = vld [vmem:[%s644 + $0x10] sm:$0xff]
        %v754 = vld [vmem:[%s644 + $0x18] sm:$0xff]
        %v755 = vld [vmem:[%s4] sm:$0x3]
        %v756 = vld [vmem:[%s5] sm:$0x3]
        %v757 = vadd.f32 %v749, %v750
        %758 = vadd.xlane.f32.xlu0 %v757
        %v759 = vpop.xlane.xlu0 %758
        %v760 = vrcp.pop 256.0
        %v761 = vmul.f32 %v759, %v760
        %v762 = vmul.f32 %v749, %v749
        %v763 = vmul.f32 %v750, %v750
        %v764 = vadd.f32 %v762, %v763
        %765 = vadd.xlane.f32.xlu0 %v764
        %v766 = vpop.xlane.xlu0 %765
        %v767 = vmul.f32 %v766, %v760
        %v768 = vmul.f32 %v761, %v761
        %v769 = vsub.f32 %v767, %v768
        %v770 = vmax.f32 %v769, 0.0
        %v771 = vsub.f32 %v749, %v761
        %v772 = vsub.f32 %v750, %v761
        %v773 = vadd.f32 %v770, 1e-05
        %v774 = vrsqrt.pop %v773
        %v775 = vmul.f32 %v771, %v774
        %v776 = vmul.f32 %v772, %v774
        %v778 = vlaneseq
        %v779 = vshrl.u32 %v778, 7
        %v780 = vsub.s32 0, %v779
        %v781 = vrot.slane %v755, %v780
        %v782 = vlaneseq
        %v783 = vshrl.u32 %v782, 7
        %v784 = vsub.s32 1, %v783
        %v785 = vrot.slane %v755, %v784
        %v788 = vmul.f32 %v775, %v781
        %v789 = vmul.f32 %v776, %v785
        %v791 = vlaneseq
        %v792 = vshrl.u32 %v791, 7
        %v793 = vsub.s32 0, %v792
        %v794 = vrot.slane %v756, %v793
        %v795 = vlaneseq
        %v796 = vshrl.u32 %v795, 7
        %v797 = vsub.s32 1, %v796
        %v798 = vrot.slane %v756, %v797
        %v801 = vadd.f32 %v788, %v794
        %v802 = vadd.f32 %v789, %v798
        %v803 = vld [vmem:[%s653] sm:$0xff]
        %v804 = vld [vmem:[%s653 + $0x8] sm:$0xff]
        %v805 = vadd.f32 %v801, %v803
        %v806 = vadd.f32 %v802, %v804
        %v807 = vld [vmem:[%s6] sm:$0x3]
        %v808 = vld [vmem:[%s7] sm:$0x3]
        %v809 = vadd.f32 %v751, %v752
        %810 = vadd.xlane.f32.xlu0 %v809
        %v811 = vpop.xlane.xlu0 %810
        %v812 = vadd.f32 %v753, %v754
        %813 = vadd.xlane.f32.xlu0 %v812
        %v814 = vpop.xlane.xlu0 %813
        %v815 = vmul.f32 %v811, %v760
        %v816 = vmul.f32 %v814, %v760
        %v817 = vmul.f32 %v751, %v751
        %v818 = vmul.f32 %v752, %v752
        %v819 = vmul.f32 %v753, %v753
        %v820 = vmul.f32 %v754, %v754
        %v821 = vadd.f32 %v817, %v818
        %822 = vadd.xlane.f32.xlu0 %v821
        %v823 = vpop.xlane.xlu0 %822
        %v824 = vadd.f32 %v819, %v820
        %825 = vadd.xlane.f32.xlu0 %v824
        %v826 = vpop.xlane.xlu0 %825
        %v827 = vmul.f32 %v823, %v760
        %v828 = vmul.f32 %v826, %v760
        %v829 = vmul.f32 %v815, %v815
        %v830 = vmul.f32 %v816, %v816
        %v831 = vsub.f32 %v827, %v829
        %v832 = vsub.f32 %v828, %v830
        %v833 = vmax.f32 %v831, 0.0
        %v834 = vmax.f32 %v832, 0.0
        %v835 = vsub.f32 %v751, %v815
        %v836 = vsub.f32 %v752, %v815
        %v837 = vsub.f32 %v753, %v816
        %v838 = vsub.f32 %v754, %v816
        %v839 = vadd.f32 %v833, 1e-05
        %v840 = vadd.f32 %v834, 1e-05
        %v841 = vrsqrt.pop %v839
        %v842 = vrsqrt.pop %v840
        %v843 = vmul.f32 %v835, %v841
        %v844 = vmul.f32 %v836, %v841
        %v845 = vmul.f32 %v837, %v842
        %v846 = vmul.f32 %v838, %v842
        %v848 = vlaneseq
        %v849 = vshrl.u32 %v848, 7
        %v850 = vsub.s32 0, %v849
        %v851 = vrot.slane %v807, %v850
        %v852 = vlaneseq
        %v853 = vshrl.u32 %v852, 7
        %v854 = vsub.s32 1, %v853
        %v855 = vrot.slane %v807, %v854
        %v858 = vmul.f32 %v843, %v851
        %v859 = vmul.f32 %v844, %v855
        %v860 = vmul.f32 %v845, %v851
        %v861 = vmul.f32 %v846, %v855
        %v863 = vlaneseq
        %v864 = vshrl.u32 %v863, 7
        %v865 = vsub.s32 0, %v864
        %v866 = vrot.slane %v808, %v865
        %v867 = vlaneseq
        %v868 = vshrl.u32 %v867, 7
        %v869 = vsub.s32 1, %v868
        %v870 = vrot.slane %v808, %v869
        %v873 = vadd.f32 %v858, %v866
        %v874 = vadd.f32 %v859, %v870
        %v875 = vadd.f32 %v860, %v866
        %v876 = vadd.f32 %v861, %v870
        %v877 = vld [vmem:[%s662] sm:$0xff]
        %v878 = vld [vmem:[%s662 + $0x8] sm:$0xff]
        %v879 = vld [vmem:[%s662 + $0x10] sm:$0xff]
        %v880 = vld [vmem:[%s662 + $0x18] sm:$0xff]
        %v881 = vadd.f32 %v873, %v877
        %v882 = vadd.f32 %v874, %v878
        %v883 = vadd.f32 %v875, %v879
        %v884 = vadd.f32 %v876, %v880
        %v885 = vld [vmem:[#allocation10] sm:$0xff]
        %v886 = vld [vmem:[#allocation10 + $0x8] sm:$0xff]
        %v887 = vld [vmem:[#allocation10 + $0x10] sm:$0xff]
        %v888 = vld [vmem:[#allocation10 + $0x18] sm:$0xff]
        %v889 = vld [vmem:[#allocation10 + $0x20] sm:$0xff]
        %v890 = vld [vmem:[#allocation10 + $0x28] sm:$0xff]
        %v891 = vld [vmem:[#allocation10 + $0x30] sm:$0xff]
        %v892 = vld [vmem:[#allocation10 + $0x38] sm:$0xff]
        %v893 = vld [vmem:[#allocation10 + $0x40] sm:$0xff]
        %v894 = vld [vmem:[#allocation10 + $0x48] sm:$0xff]
        %v895 = vld [vmem:[#allocation10 + $0x50] sm:$0xff]
        %v896 = vld [vmem:[#allocation10 + $0x58] sm:$0xff]
        %v897 = vld [vmem:[#allocation10 + $0x60] sm:$0xff]
        %v898 = vld [vmem:[#allocation10 + $0x68] sm:$0xff]
        %v899 = vld [vmem:[#allocation10 + $0x70] sm:$0xff]
        %v900 = vld [vmem:[#allocation10 + $0x78] sm:$0xff]
        %v901 = vld [vmem:[#allocation10 + $0x80] sm:$0xff]
        %v902 = vld [vmem:[#allocation10 + $0x88] sm:$0xff]
        %v903 = vld [vmem:[#allocation10 + $0x90] sm:$0xff]
        %v904 = vld [vmem:[#allocation10 + $0x98] sm:$0xff]
        %v905 = vld [vmem:[#allocation10 + $0xa0] sm:$0xff]
        %v906 = vld [vmem:[#allocation10 + $0xa8] sm:$0xff]
        %v907 = vld [vmem:[#allocation10 + $0xb0] sm:$0xff]
        %v908 = vld [vmem:[#allocation10 + $0xb8] sm:$0xff]
        %v909 = vld [vmem:[#allocation10 + $0xc0] sm:$0xff]
        %v910 = vld [vmem:[#allocation10 + $0xc8] sm:$0xff]
        %v911 = vld [vmem:[#allocation10 + $0xd0] sm:$0xff]
        %v912 = vld [vmem:[#allocation10 + $0xd8] sm:$0xff]
        %v913 = vld [vmem:[#allocation10 + $0xe0] sm:$0xff]
        %v914 = vld [vmem:[#allocation10 + $0xe8] sm:$0xff]
        %v915 = vld [vmem:[#allocation10 + $0xf0] sm:$0xff]
        %v916 = vld [vmem:[#allocation10 + $0xf8] sm:$0xff]
        %v917 = vld [vmem:[#allocation10 + $0x100] sm:$0xff]
        %v918 = vld [vmem:[#allocation10 + $0x108] sm:$0xff]
        %v919 = vld [vmem:[#allocation10 + $0x110] sm:$0xff]
        %v920 = vld [vmem:[#allocation10 + $0x118] sm:$0xff]
        %v921 = vld [vmem:[#allocation10 + $0x120] sm:$0xff]
        %v922 = vld [vmem:[#allocation10 + $0x128] sm:$0xff]
        %v923 = vld [vmem:[#allocation10 + $0x130] sm:$0xff]
        %v924 = vld [vmem:[#allocation10 + $0x138] sm:$0xff]
        %v925 = vld [vmem:[#allocation10 + $0x140] sm:$0xff]
        %v926 = vld [vmem:[#allocation10 + $0x148] sm:$0xff]
        %v927 = vld [vmem:[#allocation10 + $0x150] sm:$0xff]
        %v928 = vld [vmem:[#allocation10 + $0x158] sm:$0xff]
        %v929 = vld [vmem:[#allocation10 + $0x160] sm:$0xff]
        %v930 = vld [vmem:[#allocation10 + $0x168] sm:$0xff]
        %v931 = vld [vmem:[#allocation10 + $0x170] sm:$0xff]
        %v932 = vld [vmem:[#allocation10 + $0x178] sm:$0xff]
        %v933 = vld [vmem:[#allocation10 + $0x180] sm:$0xff]
        %v934 = vld [vmem:[#allocation10 + $0x188] sm:$0xff]
        %v935 = vld [vmem:[#allocation10 + $0x190] sm:$0xff]
        %v936 = vld [vmem:[#allocation10 + $0x198] sm:$0xff]
        %v937 = vld [vmem:[#allocation10 + $0x1a0] sm:$0xff]
        %v938 = vld [vmem:[#allocation10 + $0x1a8] sm:$0xff]
        %v939 = vld [vmem:[#allocation10 + $0x1b0] sm:$0xff]
        %v940 = vld [vmem:[#allocation10 + $0x1b8] sm:$0xff]
        %v941 = vld [vmem:[#allocation10 + $0x1c0] sm:$0xff]
        %v942 = vld [vmem:[#allocation10 + $0x1c8] sm:$0xff]
        %v943 = vld [vmem:[#allocation10 + $0x1d0] sm:$0xff]
        %v944 = vld [vmem:[#allocation10 + $0x1d8] sm:$0xff]
        %v945 = vld [vmem:[#allocation10 + $0x1e0] sm:$0xff]
        %v946 = vld [vmem:[#allocation10 + $0x1e8] sm:$0xff]
        %v947 = vld [vmem:[#allocation10 + $0x1f0] sm:$0xff]
        %v948 = vld [vmem:[#allocation10 + $0x1f8] sm:$0xff]
        %v949 = vld [vmem:[%s11] sm:$0x3]
        %v951 = vlaneseq
        %v952 = vshrl.u32 %v951, 7
        %v953 = vsub.s32 0, %v952
        %v954 = vrot.slane %v949, %v953
        %v955 = vlaneseq
        %v956 = vshrl.u32 %v955, 7
        %v957 = vsub.s32 1, %v956
        %v958 = vrot.slane %v949, %v957
        %961 = vmatprep.subr.mxu0 %v886
        %962 = vmatpush1.msra.mxu0 %v885
        %963 = vmatprep.subr.mxu0 %v888
        %964 = vmatpush1.msra.mxu0 %v887
        %965 = vmatprep.subr.mxu0 %v890
        %966 = vmatpush1.msra.mxu0 %v889
        %967 = vmatprep.subr.mxu0 %v892
        %968 = vmatpush1.msra.mxu0 %v891
        %969 = vmatprep.subr.mxu0 %v894
        %970 = vmatpush1.msra.mxu0 %v893
        %971 = vmatprep.subr.mxu0 %v896
        %972 = vmatpush1.msra.mxu0 %v895
        %973 = vmatprep.subr.mxu0 %v898
        %974 = vmatpush1.msra.mxu0 %v897
        %975 = vmatprep.subr.mxu0 %v900
        %976 = vmatpush1.msra.mxu0 %v899
        %977 = vmatprep.subr.mxu0 %v902
        %978 = vmatpush1.msra.mxu0 %v901
        %979 = vmatprep.subr.mxu0 %v904
        %980 = vmatpush1.msra.mxu0 %v903
        %981 = vmatprep.subr.mxu0 %v906
        %982 = vmatpush1.msra.mxu0 %v905
        %983 = vmatprep.subr.mxu0 %v908
        %984 = vmatpush1.msra.mxu0 %v907
        %985 = vmatprep.subr.mxu0 %v910
        %986 = vmatpush1.msra.mxu0 %v909
        %987 = vmatprep.subr.mxu0 %v912
        %988 = vmatpush1.msra.mxu0 %v911
        %989 = vmatprep.subr.mxu0 %v914
        %990 = vmatpush1.msra.mxu0 %v913
        %991 = vmatprep.subr.mxu0 %v916
        %992 = vmatpush1.msra.mxu0 %v915
        %993 = vmatprep.subr.mxu0 %v918
        %994 = vmatpush1.msra.mxu0 %v917
        %995 = vmatprep.subr.mxu0 %v920
        %996 = vmatpush1.msra.mxu0 %v919
        %997 = vmatprep.subr.mxu0 %v922
        %998 = vmatpush1.msra.mxu0 %v921
        %999 = vmatprep.subr.mxu0 %v924
        %1000 = vmatpush1.msra.mxu0 %v923
        %1001 = vmatprep.subr.mxu0 %v926
        %1002 = vmatpush1.msra.mxu0 %v925
        %1003 = vmatprep.subr.mxu0 %v928
        %1004 = vmatpush1.msra.mxu0 %v927
        %1005 = vmatprep.subr.mxu0 %v930
        %1006 = vmatpush1.msra.mxu0 %v929
        %1007 = vmatprep.subr.mxu0 %v932
        %1008 = vmatpush1.msra.mxu0 %v931
        %1009 = vmatprep.subr.mxu0 %v934
        %1010 = vmatpush1.msra.mxu0 %v933
        %1011 = vmatprep.subr.mxu0 %v936
        %1012 = vmatpush1.msra.mxu0 %v935
        %1013 = vmatprep.subr.mxu0 %v938
        %1014 = vmatpush1.msra.mxu0 %v937
        %1015 = vmatprep.subr.mxu0 %v940
        %1016 = vmatpush1.msra.mxu0 %v939
        %1017 = vmatprep.subr.mxu0 %v942
        %1018 = vmatpush1.msra.mxu0 %v941
        %1019 = vmatprep.subr.mxu0 %v944
        %1020 = vmatpush1.msra.mxu0 %v943
        %1021 = vmatprep.subr.mxu0 %v946
        %1022 = vmatpush1.msra.mxu0 %v945
        %1023 = vmatprep.subr.mxu0 %v948
        %1024 = vmatpush1.msra.mxu0 %v947
        %1025 = vmatprep.mubr.f32.mxu0 %v806
        %1026 = vmatmul.mubr.f32.gmra.mrb[0].mxu0 %v805
        %v1027 = vpop.f32.mrb[0].mxu0
        %v1028 = vadd.f32 %v954, %v1027
        %v1029 = vpop.f32.mrb[0].mxu0
        %v1030 = vadd.f32 %v958, %v1029
        %1031 = vdwg.mxu0
        %v1032 = vld [vmem:[#allocation11] sm:$0xff]
        %v1033 = vld [vmem:[#allocation11 + $0x8] sm:$0xff]
        %v1034 = vld [vmem:[#allocation11 + $0x10] sm:$0xff]
        %v1035 = vld [vmem:[#allocation11 + $0x18] sm:$0xff]
        %v1036 = vld [vmem:[#allocation11 + $0x20] sm:$0xff]
        %v1037 = vld [vmem:[#allocation11 + $0x28] sm:$0xff]
        %v1038 = vld [vmem:[#allocation11 + $0x30] sm:$0xff]
        %v1039 = vld [vmem:[#allocation11 + $0x38] sm:$0xff]
        %v1040 = vld [vmem:[#allocation11 + $0x40] sm:$0xff]
        %v1041 = vld [vmem:[#allocation11 + $0x48] sm:$0xff]
        %v1042 = vld [vmem:[#allocation11 + $0x50] sm:$0xff]
        %v1043 = vld [vmem:[#allocation11 + $0x58] sm:$0xff]
        %v1044 = vld [vmem:[#allocation11 + $0x60] sm:$0xff]
        %v1045 = vld [vmem:[#allocation11 + $0x68] sm:$0xff]
        %v1046 = vld [vmem:[#allocation11 + $0x70] sm:$0xff]
        %v1047 = vld [vmem:[#allocation11 + $0x78] sm:$0xff]
        %v1048 = vld [vmem:[#allocation11 + $0x80] sm:$0xff]
        %v1049 = vld [vmem:[#allocation11 + $0x88] sm:$0xff]
        %v1050 = vld [vmem:[#allocation11 + $0x90] sm:$0xff]
        %v1051 = vld [vmem:[#allocation11 + $0x98] sm:$0xff]
        %v1052 = vld [vmem:[#allocation11 + $0xa0] sm:$0xff]
        %v1053 = vld [vmem:[#allocation11 + $0xa8] sm:$0xff]
        %v1054 = vld [vmem:[#allocation11 + $0xb0] sm:$0xff]
        %v1055 = vld [vmem:[#allocation11 + $0xb8] sm:$0xff]
        %v1056 = vld [vmem:[#allocation11 + $0xc0] sm:$0xff]
        %v1057 = vld [vmem:[#allocation11 + $0xc8] sm:$0xff]
        %v1058 = vld [vmem:[#allocation11 + $0xd0] sm:$0xff]
        %v1059 = vld [vmem:[#allocation11 + $0xd8] sm:$0xff]
        %v1060 = vld [vmem:[#allocation11 + $0xe0] sm:$0xff]
        %v1061 = vld [vmem:[#allocation11 + $0xe8] sm:$0xff]
        %v1062 = vld [vmem:[#allocation11 + $0xf0] sm:$0xff]
        %v1063 = vld [vmem:[#allocation11 + $0xf8] sm:$0xff]
        %v1064 = vld [vmem:[#allocation11 + $0x100] sm:$0xff]
        %v1065 = vld [vmem:[#allocation11 + $0x108] sm:$0xff]
        %v1066 = vld [vmem:[#allocation11 + $0x110] sm:$0xff]
        %v1067 = vld [vmem:[#allocation11 + $0x118] sm:$0xff]
        %v1068 = vld [vmem:[#allocation11 + $0x120] sm:$0xff]
        %v1069 = vld [vmem:[#allocation11 + $0x128] sm:$0xff]
        %v1070 = vld [vmem:[#allocation11 + $0x130] sm:$0xff]
        %v1071 = vld [vmem:[#allocation11 + $0x138] sm:$0xff]
        %v1072 = vld [vmem:[#allocation11 + $0x140] sm:$0xff]
        %v1073 = vld [vmem:[#allocation11 + $0x148] sm:$0xff]
        %v1074 = vld [vmem:[#allocation11 + $0x150] sm:$0xff]
        %v1075 = vld [vmem:[#allocation11 + $0x158] sm:$0xff]
        %v1076 = vld [vmem:[#allocation11 + $0x160] sm:$0xff]
        %v1077 = vld [vmem:[#allocation11 + $0x168] sm:$0xff]
        %v1078 = vld [vmem:[#allocation11 + $0x170] sm:$0xff]
        %v1079 = vld [vmem:[#allocation11 + $0x178] sm:$0xff]
        %v1080 = vld [vmem:[#allocation11 + $0x180] sm:$0xff]
        %v1081 = vld [vmem:[#allocation11 + $0x188] sm:$0xff]
        %v1082 = vld [vmem:[#allocation11 + $0x190] sm:$0xff]
        %v1083 = vld [vmem:[#allocation11 + $0x198] sm:$0xff]
        %v1084 = vld [vmem:[#allocation11 + $0x1a0] sm:$0xff]
        %v1085 = vld [vmem:[#allocation11 + $0x1a8] sm:$0xff]
        %v1086 = vld [vmem:[#allocation11 + $0x1b0] sm:$0xff]
        %v1087 = vld [vmem:[#allocation11 + $0x1b8] sm:$0xff]
        %v1088 = vld [vmem:[#allocation11 + $0x1c0] sm:$0xff]
        %v1089 = vld [vmem:[#allocation11 + $0x1c8] sm:$0xff]
        %v1090 = vld [vmem:[#allocation11 + $0x1d0] sm:$0xff]
        %v1091 = vld [vmem:[#allocation11 + $0x1d8] sm:$0xff]
        %v1092 = vld [vmem:[#allocation11 + $0x1e0] sm:$0xff]
        %v1093 = vld [vmem:[#allocation11 + $0x1e8] sm:$0xff]
        %v1094 = vld [vmem:[#allocation11 + $0x1f0] sm:$0xff]
        %v1095 = vld [vmem:[#allocation11 + $0x1f8] sm:$0xff]
        %v1096 = vld [vmem:[%s12] sm:$0x3]
        %v1098 = vlaneseq
        %v1099 = vshrl.u32 %v1098, 7
        %v1100 = vsub.s32 0, %v1099
        %v1101 = vrot.slane %v1096, %v1100
        %v1102 = vlaneseq
        %v1103 = vshrl.u32 %v1102, 7
        %v1104 = vsub.s32 1, %v1103
        %v1105 = vrot.slane %v1096, %v1104
        %1108 = vmatprep.subr.mxu0 %v1033
        %1109 = vmatpush1.msra.mxu0 %v1032
        %1110 = vmatprep.subr.mxu0 %v1035
        %1111 = vmatpush1.msra.mxu0 %v1034
        %1112 = vmatprep.subr.mxu0 %v1037
        %1113 = vmatpush1.msra.mxu0 %v1036
        %1114 = vmatprep.subr.mxu0 %v1039
        %1115 = vmatpush1.msra.mxu0 %v1038
        %1116 = vmatprep.subr.mxu0 %v1041
        %1117 = vmatpush1.msra.mxu0 %v1040
        %1118 = vmatprep.subr.mxu0 %v1043
        %1119 = vmatpush1.msra.mxu0 %v1042
        %1120 = vmatprep.subr.mxu0 %v1045
        %1121 = vmatpush1.msra.mxu0 %v1044
        %1122 = vmatprep.subr.mxu0 %v1047
        %1123 = vmatpush1.msra.mxu0 %v1046
        %1124 = vmatprep.subr.mxu0 %v1049
        %1125 = vmatpush1.msra.mxu0 %v1048
        %1126 = vmatprep.subr.mxu0 %v1051
        %1127 = vmatpush1.msra.mxu0 %v1050
        %1128 = vmatprep.subr.mxu0 %v1053
        %1129 = vmatpush1.msra.mxu0 %v1052
        %1130 = vmatprep.subr.mxu0 %v1055
        %1131 = vmatpush1.msra.mxu0 %v1054
        %1132 = vmatprep.subr.mxu0 %v1057
        %1133 = vmatpush1.msra.mxu0 %v1056
        %1134 = vmatprep.subr.mxu0 %v1059
        %1135 = vmatpush1.msra.mxu0 %v1058
        %1136 = vmatprep.subr.mxu0 %v1061
        %1137 = vmatpush1.msra.mxu0 %v1060
        %1138 = vmatprep.subr.mxu0 %v1063
        %1139 = vmatpush1.msra.mxu0 %v1062
        %1140 = vmatprep.subr.mxu0 %v1065
        %1141 = vmatpush1.msra.mxu0 %v1064
        %1142 = vmatprep.subr.mxu0 %v1067
        %1143 = vmatpush1.msra.mxu0 %v1066
        %1144 = vmatprep.subr.mxu0 %v1069
        %1145 = vmatpush1.msra.mxu0 %v1068
        %1146 = vmatprep.subr.mxu0 %v1071
        %1147 = vmatpush1.msra.mxu0 %v1070
        %1148 = vmatprep.subr.mxu0 %v1073
        %1149 = vmatpush1.msra.mxu0 %v1072
        %1150 = vmatprep.subr.mxu0 %v1075
        %1151 = vmatpush1.msra.mxu0 %v1074
        %1152 = vmatprep.subr.mxu0 %v1077
        %1153 = vmatpush1.msra.mxu0 %v1076
        %1154 = vmatprep.subr.mxu0 %v1079
        %1155 = vmatpush1.msra.mxu0 %v1078
        %1156 = vmatprep.subr.mxu0 %v1081
        %1157 = vmatpush1.msra.mxu0 %v1080
        %1158 = vmatprep.subr.mxu0 %v1083
        %1159 = vmatpush1.msra.mxu0 %v1082
        %1160 = vmatprep.subr.mxu0 %v1085
        %1161 = vmatpush1.msra.mxu0 %v1084
        %1162 = vmatprep.subr.mxu0 %v1087
        %1163 = vmatpush1.msra.mxu0 %v1086
        %1164 = vmatprep.subr.mxu0 %v1089
        %1165 = vmatpush1.msra.mxu0 %v1088
        %1166 = vmatprep.subr.mxu0 %v1091
        %1167 = vmatpush1.msra.mxu0 %v1090
        %1168 = vmatprep.subr.mxu0 %v1093
        %1169 = vmatpush1.msra.mxu0 %v1092
        %1170 = vmatprep.subr.mxu0 %v1095
        %1171 = vmatpush1.msra.mxu0 %v1094
        %1172 = vmatprep.mubr.f32.mxu0 %v882
        %1173 = vmatmul.mubr.f32.gmra.mrb[0].mxu0 %v881
        %v1174 = vpop.f32.mrb[0].mxu0
        %v1175 = vadd.f32 %v1101, %v1174
        %v1176 = vpop.f32.mrb[0].mxu0
        %v1177 = vadd.f32 %v1105, %v1176
        %1178 = vmatprep.mubr.f32.mxu0 %v884
        %1179 = vmatmul.mubr.f32.gmra.mrb[0].mxu0 %v883
        %v1180 = vpop.f32.mrb[0].mxu0
        %v1181 = vadd.f32 %v1101, %v1180
        %v1182 = vpop.f32.mrb[0].mxu0
        %v1183 = vadd.f32 %v1105, %v1182
        %1184 = vdwg.mxu0
        %v1185 = vld [vmem:[#allocation13] sm:$0xff]
        %v1186 = vld [vmem:[#allocation13 + $0x8] sm:$0xff]
        %v1187 = vld [vmem:[#allocation13 + $0x10] sm:$0xff]
        %v1188 = vld [vmem:[#allocation13 + $0x18] sm:$0xff]
        %v1189 = vld [vmem:[#allocation13 + $0x20] sm:$0xff]
        %v1190 = vld [vmem:[#allocation13 + $0x28] sm:$0xff]
        %v1191 = vld [vmem:[#allocation13 + $0x30] sm:$0xff]
        %v1192 = vld [vmem:[#allocation13 + $0x38] sm:$0xff]
        %v1193 = vld [vmem:[#allocation13 + $0x40] sm:$0xff]
        %v1194 = vld [vmem:[#allocation13 + $0x48] sm:$0xff]
        %v1195 = vld [vmem:[#allocation13 + $0x50] sm:$0xff]
        %v1196 = vld [vmem:[#allocation13 + $0x58] sm:$0xff]
        %v1197 = vld [vmem:[#allocation13 + $0x60] sm:$0xff]
        %v1198 = vld [vmem:[#allocation13 + $0x68] sm:$0xff]
        %v1199 = vld [vmem:[#allocation13 + $0x70] sm:$0xff]
        %v1200 = vld [vmem:[#allocation13 + $0x78] sm:$0xff]
        %v1201 = vld [vmem:[#allocation13 + $0x80] sm:$0xff]
        %v1202 = vld [vmem:[#allocation13 + $0x88] sm:$0xff]
        %v1203 = vld [vmem:[#allocation13 + $0x90] sm:$0xff]
        %v1204 = vld [vmem:[#allocation13 + $0x98] sm:$0xff]
        %v1205 = vld [vmem:[#allocation13 + $0xa0] sm:$0xff]
        %v1206 = vld [vmem:[#allocation13 + $0xa8] sm:$0xff]
        %v1207 = vld [vmem:[#allocation13 + $0xb0] sm:$0xff]
        %v1208 = vld [vmem:[#allocation13 + $0xb8] sm:$0xff]
        %v1209 = vld [vmem:[#allocation13 + $0xc0] sm:$0xff]
        %v1210 = vld [vmem:[#allocation13 + $0xc8] sm:$0xff]
        %v1211 = vld [vmem:[#allocation13 + $0xd0] sm:$0xff]
        %v1212 = vld [vmem:[#allocation13 + $0xd8] sm:$0xff]
        %v1213 = vld [vmem:[#allocation13 + $0xe0] sm:$0xff]
        %v1214 = vld [vmem:[#allocation13 + $0xe8] sm:$0xff]
        %v1215 = vld [vmem:[#allocation13 + $0xf0] sm:$0xff]
        %v1216 = vld [vmem:[#allocation13 + $0xf8] sm:$0xff]
        %v1217 = vld [vmem:[#allocation13 + $0x100] sm:$0xff]
        %v1218 = vld [vmem:[#allocation13 + $0x108] sm:$0xff]
        %v1219 = vld [vmem:[#allocation13 + $0x110] sm:$0xff]
        %v1220 = vld [vmem:[#allocation13 + $0x118] sm:$0xff]
        %v1221 = vld [vmem:[#allocation13 + $0x120] sm:$0xff]
        %v1222 = vld [vmem:[#allocation13 + $0x128] sm:$0xff]
        %v1223 = vld [vmem:[#allocation13 + $0x130] sm:$0xff]
        %v1224 = vld [vmem:[#allocation13 + $0x138] sm:$0xff]
        %v1225 = vld [vmem:[#allocation13 + $0x140] sm:$0xff]
        %v1226 = vld [vmem:[#allocation13 + $0x148] sm:$0xff]
        %v1227 = vld [vmem:[#allocation13 + $0x150] sm:$0xff]
        %v1228 = vld [vmem:[#allocation13 + $0x158] sm:$0xff]
        %v1229 = vld [vmem:[#allocation13 + $0x160] sm:$0xff]
        %v1230 = vld [vmem:[#allocation13 + $0x168] sm:$0xff]
        %v1231 = vld [vmem:[#allocation13 + $0x170] sm:$0xff]
        %v1232 = vld [vmem:[#allocation13 + $0x178] sm:$0xff]
        %v1233 = vld [vmem:[#allocation13 + $0x180] sm:$0xff]
        %v1234 = vld [vmem:[#allocation13 + $0x188] sm:$0xff]
        %v1235 = vld [vmem:[#allocation13 + $0x190] sm:$0xff]
        %v1236 = vld [vmem:[#allocation13 + $0x198] sm:$0xff]
        %v1237 = vld [vmem:[#allocation13 + $0x1a0] sm:$0xff]
        %v1238 = vld [vmem:[#allocation13 + $0x1a8] sm:$0xff]
        %v1239 = vld [vmem:[#allocation13 + $0x1b0] sm:$0xff]
        %v1240 = vld [vmem:[#allocation13 + $0x1b8] sm:$0xff]
        %v1241 = vld [vmem:[#allocation13 + $0x1c0] sm:$0xff]
        %v1242 = vld [vmem:[#allocation13 + $0x1c8] sm:$0xff]
        %v1243 = vld [vmem:[#allocation13 + $0x1d0] sm:$0xff]
        %v1244 = vld [vmem:[#allocation13 + $0x1d8] sm:$0xff]
        %v1245 = vld [vmem:[#allocation13 + $0x1e0] sm:$0xff]
        %v1246 = vld [vmem:[#allocation13 + $0x1e8] sm:$0xff]
        %v1247 = vld [vmem:[#allocation13 + $0x1f0] sm:$0xff]
        %v1248 = vld [vmem:[#allocation13 + $0x1f8] sm:$0xff]
        %v1249 = vld [vmem:[%s13] sm:$0x3]
        %v1251 = vlaneseq
        %v1252 = vshrl.u32 %v1251, 7
        %v1253 = vsub.s32 0, %v1252
        %v1254 = vrot.slane %v1249, %v1253
        %v1255 = vlaneseq
        %v1256 = vshrl.u32 %v1255, 7
        %v1257 = vsub.s32 1, %v1256
        %v1258 = vrot.slane %v1249, %v1257
        %1261 = vmatprep.subr.mxu0 %v1186
        %1262 = vmatpush1.msra.mxu0 %v1185
        %1263 = vmatprep.subr.mxu0 %v1188
        %1264 = vmatpush1.msra.mxu0 %v1187
        %1265 = vmatprep.subr.mxu0 %v1190
        %1266 = vmatpush1.msra.mxu0 %v1189
        %1267 = vmatprep.subr.mxu0 %v1192
        %1268 = vmatpush1.msra.mxu0 %v1191
        %1269 = vmatprep.subr.mxu0 %v1194
        %1270 = vmatpush1.msra.mxu0 %v1193
        %1271 = vmatprep.subr.mxu0 %v1196
        %1272 = vmatpush1.msra.mxu0 %v1195
        %1273 = vmatprep.subr.mxu0 %v1198
        %1274 = vmatpush1.msra.mxu0 %v1197
        %1275 = vmatprep.subr.mxu0 %v1200
        %1276 = vmatpush1.msra.mxu0 %v1199
        %1277 = vmatprep.subr.mxu0 %v1202
        %1278 = vmatpush1.msra.mxu0 %v1201
        %1279 = vmatprep.subr.mxu0 %v1204
        %1280 = vmatpush1.msra.mxu0 %v1203
        %1281 = vmatprep.subr.mxu0 %v1206
        %1282 = vmatpush1.msra.mxu0 %v1205
        %1283 = vmatprep.subr.mxu0 %v1208
        %1284 = vmatpush1.msra.mxu0 %v1207
        %1285 = vmatprep.subr.mxu0 %v1210
        %1286 = vmatpush1.msra.mxu0 %v1209
        %1287 = vmatprep.subr.mxu0 %v1212
        %1288 = vmatpush1.msra.mxu0 %v1211
        %1289 = vmatprep.subr.mxu0 %v1214
        %1290 = vmatpush1.msra.mxu0 %v1213
        %1291 = vmatprep.subr.mxu0 %v1216
        %1292 = vmatpush1.msra.mxu0 %v1215
        %1293 = vmatprep.subr.mxu0 %v1218
        %1294 = vmatpush1.msra.mxu0 %v1217
        %1295 = vmatprep.subr.mxu0 %v1220
        %1296 = vmatpush1.msra.mxu0 %v1219
        %1297 = vmatprep.subr.mxu0 %v1222
        %1298 = vmatpush1.msra.mxu0 %v1221
        %1299 = vmatprep.subr.mxu0 %v1224
        %1300 = vmatpush1.msra.mxu0 %v1223
        %1301 = vmatprep.subr.mxu0 %v1226
        %1302 = vmatpush1.msra.mxu0 %v1225
        %1303 = vmatprep.subr.mxu0 %v1228
        %1304 = vmatpush1.msra.mxu0 %v1227
        %1305 = vmatprep.subr.mxu0 %v1230
        %1306 = vmatpush1.msra.mxu0 %v1229
        %1307 = vmatprep.subr.mxu0 %v1232
        %1308 = vmatpush1.msra.mxu0 %v1231
        %1309 = vmatprep.subr.mxu0 %v1234
        %1310 = vmatpush1.msra.mxu0 %v1233
        %1311 = vmatprep.subr.mxu0 %v1236
        %1312 = vmatpush1.msra.mxu0 %v1235
        %1313 = vmatprep.subr.mxu0 %v1238
        %1314 = vmatpush1.msra.mxu0 %v1237
        %1315 = vmatprep.subr.mxu0 %v1240
        %1316 = vmatpush1.msra.mxu0 %v1239
        %1317 = vmatprep.subr.mxu0 %v1242
        %1318 = vmatpush1.msra.mxu0 %v1241
        %1319 = vmatprep.subr.mxu0 %v1244
        %1320 = vmatpush1.msra.mxu0 %v1243
        %1321 = vmatprep.subr.mxu0 %v1246
        %1322 = vmatpush1.msra.mxu0 %v1245
        %1323 = vmatprep.subr.mxu0 %v1248
        %1324 = vmatpush1.msra.mxu0 %v1247
        %1325 = vmatprep.mubr.f32.mxu0 %v752
        %1326 = vmatmul.mubr.f32.gmra.mrb[0].mxu0 %v751
        %v1327 = vpop.f32.mrb[0].mxu0
        %v1328 = vadd.f32 %v1254, %v1327
        %v1329 = vpop.f32.mrb[0].mxu0
        %v1330 = vadd.f32 %v1258, %v1329
        %1331 = vmatprep.mubr.f32.mxu0 %v754
        %1332 = vmatmul.mubr.f32.gmra.mrb[0].mxu0 %v753
        %v1333 = vpop.f32.mrb[0].mxu0
        %v1334 = vadd.f32 %v1254, %v1333
        %v1335 = vpop.f32.mrb[0].mxu0
        %v1336 = vadd.f32 %v1258, %v1335
        %1337 = vdwg.mxu0
        %vm1338 = vcmask 261120
        %v1340 = vsel %vm1338, %v1028, 0
        %v1343 = vsel %vm1338, %v1175, 0
        %v1346 = vsel %vm1338, %v1181, 0
        %1348 = vmatprep.subr.mxu0 0.0
        %1349 = vmatpush1.xpose.msra.mxu0 %v1343
        %1350 = vmatprep.subr.mxu0 0.0
        %1351 = vmatpush1.xpose.msra.mxu0 %v1346
        %1352 = vmatprep.subr.mxu0 0.0
        %1353 = vmatpush1.xpose.msra.mxu0 0.0
        %1354 = vmatprep.subr.mxu0 0.0
        %1355 = vmatpush1.xpose.msra.mxu0 0.0
        %1356 = vmatprep.subr.mxu0 0.0
        %1357 = vmatpush1.xpose.msra.mxu0 0.0
        %1358 = vmatprep.subr.mxu0 0.0
        %1359 = vmatpush1.xpose.msra.mxu0 0.0
        %1360 = vmatprep.subr.mxu0 0.0
        %1361 = vmatpush1.xpose.msra.mxu0 0.0
        %1362 = vmatprep.subr.mxu0 0.0
        %1363 = vmatpush1.xpose.msra.mxu0 0.0
        %1364 = vmatprep.subr.mxu0 0.0
        %1365 = vmatpush1.xpose.msra.mxu0 0.0
        %1366 = vmatprep.subr.mxu0 0.0
        %1367 = vmatpush1.xpose.msra.mxu0 0.0
        %1368 = vmatprep.subr.mxu0 0.0
        %1369 = vmatpush1.xpose.msra.mxu0 0.0
        %1370 = vmatprep.subr.mxu0 0.0
        %1371 = vmatpush1.xpose.msra.mxu0 0.0
        %1372 = vmatprep.subr.mxu0 0.0
        %1373 = vmatpush1.xpose.msra.mxu0 0.0
        %1374 = vmatprep.subr.mxu0 0.0
        %1375 = vmatpush1.xpose.msra.mxu0 0.0
        %1376 = vmatprep.subr.mxu0 0.0
        %1377 = vmatpush1.xpose.msra.mxu0 0.0
        %1378 = vmatprep.subr.mxu0 0.0
        %1379 = vmatpush1.xpose.msra.mxu0 0.0
        %1380 = vmatprep.subr.mxu0 0.0
        %1381 = vmatpush1.xpose.msra.mxu0 0.0
        %1382 = vmatprep.subr.mxu0 0.0
        %1383 = vmatpush1.xpose.msra.mxu0 0.0
        %1384 = vmatprep.subr.mxu0 0.0
        %1385 = vmatpush1.xpose.msra.mxu0 0.0
        %1386 = vmatprep.subr.mxu0 0.0
        %1387 = vmatpush1.xpose.msra.mxu0 0.0
        %1388 = vmatprep.subr.mxu0 0.0
        %1389 = vmatpush1.xpose.msra.mxu0 0.0
        %1390 = vmatprep.subr.mxu0 0.0
        %1391 = vmatpush1.xpose.msra.mxu0 0.0
        %1392 = vmatprep.subr.mxu0 0.0
        %1393 = vmatpush1.xpose.msra.mxu0 0.0
        %1394 = vmatprep.subr.mxu0 0.0
        %1395 = vmatpush1.xpose.msra.mxu0 0.0
        %1396 = vmatprep.subr.mxu0 0.0
        %1397 = vmatpush1.xpose.msra.mxu0 0.0
        %1398 = vmatprep.subr.mxu0 0.0
        %1399 = vmatpush1.xpose.msra.mxu0 0.0
        %1400 = vmatprep.subr.mxu0 0.0
        %1401 = vmatpush1.xpose.msra.mxu0 0.0
        %1402 = vmatprep.subr.mxu0 0.0
        %1403 = vmatpush1.xpose.msra.mxu0 0.0
        %1404 = vmatprep.subr.mxu0 0.0
        %1405 = vmatpush1.xpose.msra.mxu0 0.0
        %1406 = vmatprep.subr.mxu0 0.0
        %1407 = vmatpush1.xpose.msra.mxu0 0.0
        %1408 = vmatprep.subr.mxu0 0.0
        %1409 = vmatpush1.xpose.msra.mxu0 0.0
        %1410 = vmatprep.subr.mxu0 0.0
        %1411 = vmatpush1.xpose.msra.mxu0 0.0
        %1412 = vmatprep.mubr.f32.mxu0 0.0
        %1413 = vmatmul.mubr.f32.gmra.mrb[0].mxu0 %v1340
        %v1414 = vpop.f32.mrb[0].mxu0
        %v1415 = vadd.f32 0.0, %v1414
        %v1416 = vpop.f32.mrb[0].mxu0
        %1417 = vdwg.mxu0
        %v1418 = vmul.f32 %v1415, 0.17677669
        %vm1419 = vcmask 130048
        %v1420 = vsel %vm1419, %v1418, -inf
        %1421 = vmax.xlane.f32.xlu0 %v1420
        %v1422 = vpop.xlane.xlu0 %1421
        %v1423 = vsub.f32 %v1418, %v1422
        %v1424 = vmul.f32 %v1423, 1.442695
        %v1425 = vpow.pop %v1424
        %v1426 = vsel %vm1419, %v1425, 0.0
        %1427 = vadd.xlane.f32.xlu0 %v1426
        %v1428 = vpop.xlane.xlu0 %1427
        %v1429 = vrcp.pop %v1428
        %v1430 = vmul.f32 %v1425, %v1429
        %v1431 = vadd.f32 %v1430, 0.0
        %v1433 = vsel %vm1419, %v1430, 0
        %1435 = vmatprep.subr.mxu0 0.0
        %1436 = vmatpush1.msra.mxu0 %v1328
        %1437 = vmatprep.subr.mxu0 0.0
        %1438 = vmatpush1.msra.mxu0 %v1334
        %1439 = vmatprep.subr.mxu0 0.0
        %1440 = vmatpush1.msra.mxu0 0.0
        %1441 = vmatprep.subr.mxu0 0.0
        %1442 = vmatpush1.msra.mxu0 0.0
        %1443 = vmatprep.subr.mxu0 0.0
        %1444 = vmatpush1.msra.mxu0 0.0
        %1445 = vmatprep.subr.mxu0 0.0
        %1446 = vmatpush1.msra.mxu0 0.0
        %1447 = vmatprep.subr.mxu0 0.0
        %1448 = vmatpush1.msra.mxu0 0.0
        %1449 = vmatprep.subr.mxu0 0.0
        %1450 = vmatpush1.msra.mxu0 0.0
        %1451 = vmatprep.subr.mxu0 0.0
        %1452 = vmatpush1.msra.mxu0 0.0
        %1453 = vmatprep.subr.mxu0 0.0
        %1454 = vmatpush1.msra.mxu0 0.0
        %1455 = vmatprep.subr.mxu0 0.0
        %1456 = vmatpush1.msra.mxu0 0.0
        %1457 = vmatprep.subr.mxu0 0.0
        %1458 = vmatpush1.msra.mxu0 0.0
        %1459 = vmatprep.subr.mxu0 0.0
        %1460 = vmatpush1.msra.mxu0 0.0
        %1461 = vmatprep.subr.mxu0 0.0
        %1462 = vmatpush1.msra.mxu0 0.0
        %1463 = vmatprep.subr.mxu0 0.0
        %1464 = vmatpush1.msra.mxu0 0.0
        %1465 = vmatprep.subr.mxu0 0.0
        %1466 = vmatpush1.msra.mxu0 0.0
        %1467 = vmatprep.subr.mxu0 0.0
        %1468 = vmatpush1.msra.mxu0 0.0
        %1469 = vmatprep.subr.mxu0 0.0
        %1470 = vmatpush1.msra.mxu0 0.0
        %1471 = vmatprep.subr.mxu0 0.0
        %1472 = vmatpush1.msra.mxu0 0.0
        %1473 = vmatprep.subr.mxu0 0.0
        %1474 = vmatpush1.msra.mxu0 0.0
        %1475 = vmatprep.subr.mxu0 0.0
        %1476 = vmatpush1.msra.mxu0 0.0
        %1477 = vmatprep.subr.mxu0 0.0
        %1478 = vmatpush1.msra.mxu0 0.0
        %1479 = vmatprep.subr.mxu0 0.0
        %1480 = vmatpush1.msra.mxu0 0.0
        %1481 = vmatprep.subr.mxu0 0.0
        %1482 = vmatpush1.msra.mxu0 0.0
        %1483 = vmatprep.subr.mxu0 0.0
        %1484 = vmatpush1.msra.mxu0 0.0
        %1485 = vmatprep.subr.mxu0 0.0
        %1486 = vmatpush1.msra.mxu0 0.0
        %1487 = vmatprep.subr.mxu0 0.0
        %1488 = vmatpush1.msra.mxu0 0.0
        %1489 = vmatprep.subr.mxu0 0.0
        %1490 = vmatpush1.msra.mxu0 0.0
        %1491 = vmatprep.subr.mxu0 0.0
        %1492 = vmatpush1.msra.mxu0 0.0
        %1493 = vmatprep.subr.mxu0 0.0
        %1494 = vmatpush1.msra.mxu0 0.0
        %1495 = vmatprep.subr.mxu0 0.0
        %1496 = vmatpush1.msra.mxu0 0.0
        %1497 = vmatprep.subr.mxu0 0.0
        %1498 = vmatpush1.msra.mxu0 0.0
        %1499 = vmatprep.mubr.f32.mxu0 0.0
        %1500 = vmatmul.mubr.f32.gmra.mrb[0].mxu0 %v1433
        %v1501 = vpop.f32.mrb[0].mxu0
        %v1502 = vadd.f32 0.0, %v1501
        %v1503 = vpop.f32.mrb[0].mxu0
        %1504 = vdwg.mxu0
        %v1505 = vld [vmem:[#allocation14] sm:$0xff]
        %v1506 = vld [vmem:[#allocation14 + $0x8] sm:$0xff]
        %v1507 = vld [vmem:[#allocation14 + $0x10] sm:$0xff]
        %v1508 = vld [vmem:[#allocation14 + $0x18] sm:$0xff]
        %v1509 = vld [vmem:[#allocation14 + $0x20] sm:$0xff]
        %v1510 = vld [vmem:[#allocation14 + $0x28] sm:$0xff]
        %v1511 = vld [vmem:[#allocation14 + $0x30] sm:$0xff]
        %v1512 = vld [vmem:[#allocation14 + $0x38] sm:$0xff]
        %1513 = vrot.lane.b32.xlu0 %v1028, 96
        %v1514 = vpop.permute.xlu0 %1513
        %1515 = vrot.lane.b32.xlu0 %v1175, 96
        %v1516 = vpop.permute.xlu0 %1515
        %1517 = vrot.lane.b32.xlu0 %v1181, 96
        %v1518 = vpop.permute.xlu0 %1517
        %v1519 = vsel %vm1338, %v1514, 0
        %v1521 = vsel %vm1338, %v1516, 0
        %v1523 = vsel %vm1338, %v1518, 0
        %1525 = vmatprep.subr.mxu0 0.0
        %1526 = vmatpush1.xpose.msra.mxu0 %v1521
        %1527 = vmatprep.subr.mxu0 0.0
        %1528 = vmatpush1.xpose.msra.mxu0 %v1523
        %1529 = vmatprep.subr.mxu0 0.0
        %1530 = vmatpush1.xpose.msra.mxu0 0.0
        %1531 = vmatprep.subr.mxu0 0.0
        %1532 = vmatpush1.xpose.msra.mxu0 0.0
        %1533 = vmatprep.subr.mxu0 0.0
        %1534 = vmatpush1.xpose.msra.mxu0 0.0
        %1535 = vmatprep.subr.mxu0 0.0
        %1536 = vmatpush1.xpose.msra.mxu0 0.0
        %1537 = vmatprep.subr.mxu0 0.0
        %1538 = vmatpush1.xpose.msra.mxu0 0.0
        %1539 = vmatprep.subr.mxu0 0.0
        %1540 = vmatpush1.xpose.msra.mxu0 0.0
        %1541 = vmatprep.subr.mxu0 0.0
        %1542 = vmatpush1.xpose.msra.mxu0 0.0
        %1543 = vmatprep.subr.mxu0 0.0
        %1544 = vmatpush1.xpose.msra.mxu0 0.0
        %1545 = vmatprep.subr.mxu0 0.0
        %1546 = vmatpush1.xpose.msra.mxu0 0.0
        %1547 = vmatprep.subr.mxu0 0.0
        %1548 = vmatpush1.xpose.msra.mxu0 0.0
        %1549 = vmatprep.subr.mxu0 0.0
        %1550 = vmatpush1.xpose.msra.mxu0 0.0
        %1551 = vmatprep.subr.mxu0 0.0
        %1552 = vmatpush1.xpose.msra.mxu0 0.0
        %1553 = vmatprep.subr.mxu0 0.0
        %1554 = vmatpush1.xpose.msra.mxu0 0.0
        %1555 = vmatprep.subr.mxu0 0.0
        %1556 = vmatpush1.xpose.msra.mxu0 0.0
        %1557 = vmatprep.subr.mxu0 0.0
        %1558 = vmatpush1.xpose.msra.mxu0 0.0
        %1559 = vmatprep.subr.mxu0 0.0
        %1560 = vmatpush1.xpose.msra.mxu0 0.0
        %1561 = vmatprep.subr.mxu0 0.0
        %1562 = vmatpush1.xpose.msra.mxu0 0.0
        %1563 = vmatprep.subr.mxu0 0.0
        %1564 = vmatpush1.xpose.msra.mxu0 0.0
        %1565 = vmatprep.subr.mxu0 0.0
        %1566 = vmatpush1.xpose.msra.mxu0 0.0
        %1567 = vmatprep.subr.mxu0 0.0
        %1568 = vmatpush1.xpose.msra.mxu0 0.0
        %1569 = vmatprep.subr.mxu0 0.0
        %1570 = vmatpush1.xpose.msra.mxu0 0.0
        %1571 = vmatprep.subr.mxu0 0.0
        %1572 = vmatpush1.xpose.msra.mxu0 0.0
        %1573 = vmatprep.subr.mxu0 0.0
        %1574 = vmatpush1.xpose.msra.mxu0 0.0
        %1575 = vmatprep.subr.mxu0 0.0
        %1576 = vmatpush1.xpose.msra.mxu0 0.0
        %1577 = vmatprep.subr.mxu0 0.0
        %1578 = vmatpush1.xpose.msra.mxu0 0.0
        %1579 = vmatprep.subr.mxu0 0.0
        %1580 = vmatpush1.xpose.msra.mxu0 0.0
        %1581 = vmatprep.subr.mxu0 0.0
        %1582 = vmatpush1.xpose.msra.mxu0 0.0
        %1583 = vmatprep.subr.mxu0 0.0
        %1584 = vmatpush1.xpose.msra.mxu0 0.0
        %1585 = vmatprep.subr.mxu0 0.0
        %1586 = vmatpush1.xpose.msra.mxu0 0.0
        %1587 = vmatprep.subr.mxu0 0.0
        %1588 = vmatpush1.xpose.msra.mxu0 0.0
        %1589 = vmatprep.mubr.f32.mxu0 0.0
        %1590 = vmatmul.mubr.f32.gmra.mrb[0].mxu0 %v1519
        %v1591 = vpop.f32.mrb[0].mxu0
        %v1592 = vadd.f32 0.0, %v1591
        %v1593 = vpop.f32.mrb[0].mxu0
        %1594 = vdwg.mxu0
        %v1595 = vmul.f32 %v1592, 0.17677669
        %v1596 = vsel %vm1419, %v1595, -inf
        %1597 = vmax.xlane.f32.xlu0 %v1596
        %v1598 = vpop.xlane.xlu0 %1597
        %v1599 = vsub.f32 %v1595, %v1598
        %v1600 = vmul.f32 %v1599, 1.442695
        %v1601 = vpow.pop %v1600
        %v1602 = vsel %vm1419, %v1601, 0.0
        %1603 = vadd.xlane.f32.xlu0 %v1602
        %v1604 = vpop.xlane.xlu0 %1603
        %v1605 = vrcp.pop %v1604
        %v1606 = vmul.f32 %v1601, %v1605
        %v1607 = vadd.f32 %v1431, %v1606
        %1610 = vrot.lane.b32.xlu0 %v1328, 96
        %v1611 = vpop.permute.xlu0 %1610
        %1612 = vrot.lane.b32.xlu0 %v1334, 96
        %v1613 = vpop.permute.xlu0 %1612
        %v1617 = vsel %vm1419, %v1606, 0
        %1619 = vmatprep.subr.mxu0 0.0
        %1620 = vmatpush1.msra.mxu0 %v1611
        %1621 = vmatprep.subr.mxu0 0.0
        %1622 = vmatpush1.msra.mxu0 %v1613
        %1623 = vmatprep.subr.mxu0 0.0
        %1624 = vmatpush1.msra.mxu0 0.0
        %1625 = vmatprep.subr.mxu0 0.0
        %1626 = vmatpush1.msra.mxu0 0.0
        %1627 = vmatprep.subr.mxu0 0.0
        %1628 = vmatpush1.msra.mxu0 0.0
        %1629 = vmatprep.subr.mxu0 0.0
        %1630 = vmatpush1.msra.mxu0 0.0
        %1631 = vmatprep.subr.mxu0 0.0
        %1632 = vmatpush1.msra.mxu0 0.0
        %1633 = vmatprep.subr.mxu0 0.0
        %1634 = vmatpush1.msra.mxu0 0.0
        %1635 = vmatprep.subr.mxu0 0.0
        %1636 = vmatpush1.msra.mxu0 0.0
        %1637 = vmatprep.subr.mxu0 0.0
        %1638 = vmatpush1.msra.mxu0 0.0
        %1639 = vmatprep.subr.mxu0 0.0
        %1640 = vmatpush1.msra.mxu0 0.0
        %1641 = vmatprep.subr.mxu0 0.0
        %1642 = vmatpush1.msra.mxu0 0.0
        %1643 = vmatprep.subr.mxu0 0.0
        %1644 = vmatpush1.msra.mxu0 0.0
        %1645 = vmatprep.subr.mxu0 0.0
        %1646 = vmatpush1.msra.mxu0 0.0
        %1647 = vmatprep.subr.mxu0 0.0
        %1648 = vmatpush1.msra.mxu0 0.0
        %1649 = vmatprep.subr.mxu0 0.0
        %1650 = vmatpush1.msra.mxu0 0.0
        %1651 = vmatprep.subr.mxu0 0.0
        %1652 = vmatpush1.msra.mxu0 0.0
        %1653 = vmatprep.subr.mxu0 0.0
        %1654 = vmatpush1.msra.mxu0 0.0
        %1655 = vmatprep.subr.mxu0 0.0
        %1656 = vmatpush1.msra.mxu0 0.0
        %1657 = vmatprep.subr.mxu0 0.0
        %1658 = vmatpush1.msra.mxu0 0.0
        %1659 = vmatprep.subr.mxu0 0.0
        %1660 = vmatpush1.msra.mxu0 0.0
        %1661 = vmatprep.subr.mxu0 0.0
        %1662 = vmatpush1.msra.mxu0 0.0
        %1663 = vmatprep.subr.mxu0 0.0
        %1664 = vmatpush1.msra.mxu0 0.0
        %1665 = vmatprep.subr.mxu0 0.0
        %1666 = vmatpush1.msra.mxu0 0.0
        %1667 = vmatprep.subr.mxu0 0.0
        %1668 = vmatpush1.msra.mxu0 0.0
        %1669 = vmatprep.subr.mxu0 0.0
        %1670 = vmatpush1.msra.mxu0 0.0
        %1671 = vmatprep.subr.mxu0 0.0
        %1672 = vmatpush1.msra.mxu0 0.0
        %1673 = vmatprep.subr.mxu0 0.0
        %1674 = vmatpush1.msra.mxu0 0.0
        %1675 = vmatprep.subr.mxu0 0.0
        %1676 = vmatpush1.msra.mxu0 0.0
        %1677 = vmatprep.subr.mxu0 0.0
        %1678 = vmatpush1.msra.mxu0 0.0
        %1679 = vmatprep.subr.mxu0 0.0
        %1680 = vmatpush1.msra.mxu0 0.0
        %1681 = vmatprep.subr.mxu0 0.0
        %1682 = vmatpush1.msra.mxu0 0.0
        %1683 = vmatprep.mubr.f32.mxu0 0.0
        %1684 = vmatmul.mubr.f32.gmra.mrb[0].mxu0 %v1617
        %v1685 = vpop.f32.mrb[0].mxu0
        %v1686 = vadd.f32 0.0, %v1685
        %v1687 = vpop.f32.mrb[0].mxu0
        %1688 = vdwg.mxu0
        %v1689 = vld [vmem:[#allocation14 + $0x40] sm:$0xff]
        %v1690 = vld [vmem:[#allocation14 + $0x48] sm:$0xff]
        %v1691 = vld [vmem:[#allocation14 + $0x50] sm:$0xff]
        %v1692 = vld [vmem:[#allocation14 + $0x58] sm:$0xff]
        %v1693 = vld [vmem:[#allocation14 + $0x60] sm:$0xff]
        %v1694 = vld [vmem:[#allocation14 + $0x68] sm:$0xff]
        %v1695 = vld [vmem:[#allocation14 + $0x70] sm:$0xff]
        %v1696 = vld [vmem:[#allocation14 + $0x78] sm:$0xff]
        %v1698 = vsel %vm1338, %v1686, 0
        %1700 = vmatprep.subr.mxu0 %v1690
        %1701 = vmatpush1.msra.mxu0 %v1689
        %1702 = vmatprep.subr.mxu0 %v1692
        %1703 = vmatpush1.msra.mxu0 %v1691
        %1704 = vmatprep.subr.mxu0 %v1694
        %1705 = vmatpush1.msra.mxu0 %v1693
        %1706 = vmatprep.subr.mxu0 %v1696
        %1707 = vmatpush1.msra.mxu0 %v1695
        %1708 = vmatprep.subr.mxu0 0.0
        %1709 = vmatpush1.msra.mxu0 0.0
        %1710 = vmatprep.subr.mxu0 0.0
        %1711 = vmatpush1.msra.mxu0 0.0
        %1712 = vmatprep.subr.mxu0 0.0
        %1713 = vmatpush1.msra.mxu0 0.0
        %1714 = vmatprep.subr.mxu0 0.0
        %1715 = vmatpush1.msra.mxu0 0.0
        %1716 = vmatprep.subr.mxu0 0.0
        %1717 = vmatpush1.msra.mxu0 0.0
        %1718 = vmatprep.subr.mxu0 0.0
        %1719 = vmatpush1.msra.mxu0 0.0
        %1720 = vmatprep.subr.mxu0 0.0
        %1721 = vmatpush1.msra.mxu0 0.0
        %1722 = vmatprep.subr.mxu0 0.0
        %1723 = vmatpush1.msra.mxu0 0.0
        %1724 = vmatprep.subr.mxu0 0.0
        %1725 = vmatpush1.msra.mxu0 0.0
        %1726 = vmatprep.subr.mxu0 0.0
        %1727 = vmatpush1.msra.mxu0 0.0
        %1728 = vmatprep.subr.mxu0 0.0
        %1729 = vmatpush1.msra.mxu0 0.0
        %1730 = vmatprep.subr.mxu0 0.0
        %1731 = vmatpush1.msra.mxu0 0.0
        %1732 = vmatprep.subr.mxu0 0.0
        %1733 = vmatpush1.msra.mxu0 0.0
        %1734 = vmatprep.subr.mxu0 0.0
        %1735 = vmatpush1.msra.mxu0 0.0
        %1736 = vmatprep.subr.mxu0 0.0
        %1737 = vmatpush1.msra.mxu0 0.0
        %1738 = vmatprep.subr.mxu0 0.0
        %1739 = vmatpush1.msra.mxu0 0.0
        %1740 = vmatprep.subr.mxu0 0.0
        %1741 = vmatpush1.msra.mxu0 0.0
        %1742 = vmatprep.subr.mxu0 0.0
        %1743 = vmatpush1.msra.mxu0 0.0
        %1744 = vmatprep.subr.mxu0 0.0
        %1745 = vmatpush1.msra.mxu0 0.0
        %1746 = vmatprep.subr.mxu0 0.0
        %1747 = vmatpush1.msra.mxu0 0.0
        %1748 = vmatprep.subr.mxu0 0.0
        %1749 = vmatpush1.msra.mxu0 0.0
        %1750 = vmatprep.subr.mxu0 0.0
        %1751 = vmatpush1.msra.mxu0 0.0
        %1752 = vmatprep.subr.mxu0 0.0
        %1753 = vmatpush1.msra.mxu0 0.0
        %1754 = vmatprep.subr.mxu0 0.0
        %1755 = vmatpush1.msra.mxu0 0.0
        %1756 = vmatprep.subr.mxu0 0.0
        %1757 = vmatpush1.msra.mxu0 0.0
        %1758 = vmatprep.subr.mxu0 0.0
        %1759 = vmatpush1.msra.mxu0 0.0
        %1760 = vmatprep.subr.mxu0 0.0
        %1761 = vmatpush1.msra.mxu0 0.0
        %1762 = vmatprep.subr.mxu0 0.0
        %1763 = vmatpush1.msra.mxu0 0.0
        %1764 = vmatprep.mubr.f32.mxu0 0.0
        %1765 = vmatmul.mubr.f32.gmra.mrb[0].mxu0 %v1698
        %v1766 = vpop.f32.mrb[0].mxu0
        %v1767 = vadd.f32 0.0, %v1766
        %v1768 = vpop.f32.mrb[0].mxu0
        %v1769 = vadd.f32 0.0, %v1768
        %1770 = vdwg.mxu0
        %v1772 = vsel %vm1338, %v1502, 0
        %1774 = vmatprep.subr.mxu0 %v1506
        %1775 = vmatpush1.msra.mxu0 %v1505
        %1776 = vmatprep.subr.mxu0 %v1508
        %1777 = vmatpush1.msra.mxu0 %v1507
        %1778 = vmatprep.subr.mxu0 %v1510
        %1779 = vmatpush1.msra.mxu0 %v1509
        %1780 = vmatprep.subr.mxu0 %v1512
        %1781 = vmatpush1.msra.mxu0 %v1511
        %1782 = vmatprep.subr.mxu0 0.0
        %1783 = vmatpush1.msra.mxu0 0.0
        %1784 = vmatprep.subr.mxu0 0.0
        %1785 = vmatpush1.msra.mxu0 0.0
        %1786 = vmatprep.subr.mxu0 0.0
        %1787 = vmatpush1.msra.mxu0 0.0
        %1788 = vmatprep.subr.mxu0 0.0
        %1789 = vmatpush1.msra.mxu0 0.0
        %1790 = vmatprep.subr.mxu0 0.0
        %1791 = vmatpush1.msra.mxu0 0.0
        %1792 = vmatprep.subr.mxu0 0.0
        %1793 = vmatpush1.msra.mxu0 0.0
        %1794 = vmatprep.subr.mxu0 0.0
        %1795 = vmatpush1.msra.mxu0 0.0
        %1796 = vmatprep.subr.mxu0 0.0
        %1797 = vmatpush1.msra.mxu0 0.0
        %1798 = vmatprep.subr.mxu0 0.0
        %1799 = vmatpush1.msra.mxu0 0.0
        %1800 = vmatprep.subr.mxu0 0.0
        %1801 = vmatpush1.msra.mxu0 0.0
        %1802 = vmatprep.subr.mxu0 0.0
        %1803 = vmatpush1.msra.mxu0 0.0
        %1804 = vmatprep.subr.mxu0 0.0
        %1805 = vmatpush1.msra.mxu0 0.0
        %1806 = vmatprep.subr.mxu0 0.0
        %1807 = vmatpush1.msra.mxu0 0.0
        %1808 = vmatprep.subr.mxu0 0.0
        %1809 = vmatpush1.msra.mxu0 0.0
        %1810 = vmatprep.subr.mxu0 0.0
        %1811 = vmatpush1.msra.mxu0 0.0
        %1812 = vmatprep.subr.mxu0 0.0
        %1813 = vmatpush1.msra.mxu0 0.0
        %1814 = vmatprep.subr.mxu0 0.0
        %1815 = vmatpush1.msra.mxu0 0.0
        %1816 = vmatprep.subr.mxu0 0.0
        %1817 = vmatpush1.msra.mxu0 0.0
        %1818 = vmatprep.subr.mxu0 0.0
        %1819 = vmatpush1.msra.mxu0 0.0
        %1820 = vmatprep.subr.mxu0 0.0
        %1821 = vmatpush1.msra.mxu0 0.0
        %1822 = vmatprep.subr.mxu0 0.0
        %1823 = vmatpush1.msra.mxu0 0.0
        %1824 = vmatprep.subr.mxu0 0.0
        %1825 = vmatpush1.msra.mxu0 0.0
        %1826 = vmatprep.subr.mxu0 0.0
        %1827 = vmatpush1.msra.mxu0 0.0
        %1828 = vmatprep.subr.mxu0 0.0
        %1829 = vmatpush1.msra.mxu0 0.0
        %1830 = vmatprep.subr.mxu0 0.0
        %1831 = vmatpush1.msra.mxu0 0.0
        %1832 = vmatprep.subr.mxu0 0.0
        %1833 = vmatpush1.msra.mxu0 0.0
        %1834 = vmatprep.subr.mxu0 0.0
        %1835 = vmatpush1.msra.mxu0 0.0
        %1836 = vmatprep.subr.mxu0 0.0
        %1837 = vmatpush1.msra.mxu0 0.0
        %1838 = vmatprep.mubr.f32.mxu0 0.0
        %1839 = vmatmul.mubr.f32.gmra.mrb[0].mxu0 %v1772
        %v1840 = vpop.f32.mrb[0].mxu0
        %v1841 = vadd.f32 %v1767, %v1840
        %v1842 = vpop.f32.mrb[0].mxu0
        %v1843 = vadd.f32 %v1769, %v1842
        %1844 = vdwg.mxu0
        %1845 = vrot.lane.b32.xlu0 %v1028, 64
        %v1846 = vpop.permute.xlu0 %1845
        %1847 = vrot.lane.b32.xlu0 %v1175, 64
        %v1848 = vpop.permute.xlu0 %1847
        %1849 = vrot.lane.b32.xlu0 %v1181, 64
        %v1850 = vpop.permute.xlu0 %1849
        %v1851 = vsel %vm1338, %v1846, 0
        %v1853 = vsel %vm1338, %v1848, 0
        %v1855 = vsel %vm1338, %v1850, 0
        %1857 = vmatprep.subr.mxu0 0.0
        %1858 = vmatpush1.xpose.msra.mxu0 %v1853
        %1859 = vmatprep.subr.mxu0 0.0
        %1860 = vmatpush1.xpose.msra.mxu0 %v1855
        %1861 = vmatprep.subr.mxu0 0.0
        %1862 = vmatpush1.xpose.msra.mxu0 0.0
        %1863 = vmatprep.subr.mxu0 0.0
        %1864 = vmatpush1.xpose.msra.mxu0 0.0
        %1865 = vmatprep.subr.mxu0 0.0
        %1866 = vmatpush1.xpose.msra.mxu0 0.0
        %1867 = vmatprep.subr.mxu0 0.0
        %1868 = vmatpush1.xpose.msra.mxu0 0.0
        %1869 = vmatprep.subr.mxu0 0.0
        %1870 = vmatpush1.xpose.msra.mxu0 0.0
        %1871 = vmatprep.subr.mxu0 0.0
        %1872 = vmatpush1.xpose.msra.mxu0 0.0
        %1873 = vmatprep.subr.mxu0 0.0
        %1874 = vmatpush1.xpose.msra.mxu0 0.0
        %1875 = vmatprep.subr.mxu0 0.0
        %1876 = vmatpush1.xpose.msra.mxu0 0.0
        %1877 = vmatprep.subr.mxu0 0.0
        %1878 = vmatpush1.xpose.msra.mxu0 0.0
        %1879 = vmatprep.subr.mxu0 0.0
        %1880 = vmatpush1.xpose.msra.mxu0 0.0
        %1881 = vmatprep.subr.mxu0 0.0
        %1882 = vmatpush1.xpose.msra.mxu0 0.0
        %1883 = vmatprep.subr.mxu0 0.0
        %1884 = vmatpush1.xpose.msra.mxu0 0.0
        %1885 = vmatprep.subr.mxu0 0.0
        %1886 = vmatpush1.xpose.msra.mxu0 0.0
        %1887 = vmatprep.subr.mxu0 0.0
        %1888 = vmatpush1.xpose.msra.mxu0 0.0
        %1889 = vmatprep.subr.mxu0 0.0
        %1890 = vmatpush1.xpose.msra.mxu0 0.0
        %1891 = vmatprep.subr.mxu0 0.0
        %1892 = vmatpush1.xpose.msra.mxu0 0.0
        %1893 = vmatprep.subr.mxu0 0.0
        %1894 = vmatpush1.xpose.msra.mxu0 0.0
        %1895 = vmatprep.subr.mxu0 0.0
        %1896 = vmatpush1.xpose.msra.mxu0 0.0
        %1897 = vmatprep.subr.mxu0 0.0
        %1898 = vmatpush1.xpose.msra.mxu0 0.0
        %1899 = vmatprep.subr.mxu0 0.0
        %1900 = vmatpush1.xpose.msra.mxu0 0.0
        %1901 = vmatprep.subr.mxu0 0.0
        %1902 = vmatpush1.xpose.msra.mxu0 0.0
        %1903 = vmatprep.subr.mxu0 0.0
        %1904 = vmatpush1.xpose.msra.mxu0 0.0
        %1905 = vmatprep.subr.mxu0 0.0
        %1906 = vmatpush1.xpose.msra.mxu0 0.0
        %1907 = vmatprep.subr.mxu0 0.0
        %1908 = vmatpush1.xpose.msra.mxu0 0.0
        %1909 = vmatprep.subr.mxu0 0.0
        %1910 = vmatpush1.xpose.msra.mxu0 0.0
        %1911 = vmatprep.subr.mxu0 0.0
        %1912 = vmatpush1.xpose.msra.mxu0 0.0
        %1913 = vmatprep.subr.mxu0 0.0
        %1914 = vmatpush1.xpose.msra.mxu0 0.0
        %1915 = vmatprep.subr.mxu0 0.0
        %1916 = vmatpush1.xpose.msra.mxu0 0.0
        %1917 = vmatprep.subr.mxu0 0.0
        %1918 = vmatpush1.xpose.msra.mxu0 0.0
        %1919 = vmatprep.subr.mxu0 0.0
        %1920 = vmatpush1.xpose.msra.mxu0 0.0
        %1921 = vmatprep.mubr.f32.mxu0 0.0
        %1922 = vmatmul.mubr.f32.gmra.mrb[0].mxu0 %v1851
        %v1923 = vpop.f32.mrb[0].mxu0
        %v1924 = vadd.f32 0.0, %v1923
        %v1925 = vpop.f32.mrb[0].mxu0
        %1926 = vdwg.mxu0
        %v1927 = vmul.f32 %v1924, 0.17677669
        %v1928 = vsel %vm1419, %v1927, -inf
        %1929 = vmax.xlane.f32.xlu0 %v1928
        %v1930 = vpop.xlane.xlu0 %1929
        %v1931 = vsub.f32 %v1927, %v1930
        %v1932 = vmul.f32 %v1931, 1.442695
        %v1933 = vpow.pop %v1932
        %v1934 = vsel %vm1419, %v1933, 0.0
        %1935 = vadd.xlane.f32.xlu0 %v1934
        %v1936 = vpop.xlane.xlu0 %1935
        %v1937 = vrcp.pop %v1936
        %v1938 = vmul.f32 %v1933, %v1937
        %v1939 = vadd.f32 %v1607, %v1938
        %1940 = vrot.lane.b32.xlu0 %v1328, 64
        %v1941 = vpop.permute.xlu0 %1940
        %1942 = vrot.lane.b32.xlu0 %v1334, 64
        %v1943 = vpop.permute.xlu0 %1942
        %v1947 = vsel %vm1419, %v1938, 0
        %1949 = vmatprep.subr.mxu0 0.0
        %1950 = vmatpush1.msra.mxu0 %v1941
        %1951 = vmatprep.subr.mxu0 0.0
        %1952 = vmatpush1.msra.mxu0 %v1943
        %1953 = vmatprep.subr.mxu0 0.0
        %1954 = vmatpush1.msra.mxu0 0.0
        %1955 = vmatprep.subr.mxu0 0.0
        %1956 = vmatpush1.msra.mxu0 0.0
        %1957 = vmatprep.subr.mxu0 0.0
        %1958 = vmatpush1.msra.mxu0 0.0
        %1959 = vmatprep.subr.mxu0 0.0
        %1960 = vmatpush1.msra.mxu0 0.0
        %1961 = vmatprep.subr.mxu0 0.0
        %1962 = vmatpush1.msra.mxu0 0.0
        %1963 = vmatprep.subr.mxu0 0.0
        %1964 = vmatpush1.msra.mxu0 0.0
        %1965 = vmatprep.subr.mxu0 0.0
        %1966 = vmatpush1.msra.mxu0 0.0
        %1967 = vmatprep.subr.mxu0 0.0
        %1968 = vmatpush1.msra.mxu0 0.0
        %1969 = vmatprep.subr.mxu0 0.0
        %1970 = vmatpush1.msra.mxu0 0.0
        %1971 = vmatprep.subr.mxu0 0.0
        %1972 = vmatpush1.msra.mxu0 0.0
        %1973 = vmatprep.subr.mxu0 0.0
        %1974 = vmatpush1.msra.mxu0 0.0
        %1975 = vmatprep.subr.mxu0 0.0
        %1976 = vmatpush1.msra.mxu0 0.0
        %1977 = vmatprep.subr.mxu0 0.0
        %1978 = vmatpush1.msra.mxu0 0.0
        %1979 = vmatprep.subr.mxu0 0.0
        %1980 = vmatpush1.msra.mxu0 0.0
        %1981 = vmatprep.subr.mxu0 0.0
        %1982 = vmatpush1.msra.mxu0 0.0
        %1983 = vmatprep.subr.mxu0 0.0
        %1984 = vmatpush1.msra.mxu0 0.0
        %1985 = vmatprep.subr.mxu0 0.0
        %1986 = vmatpush1.msra.mxu0 0.0
        %1987 = vmatprep.subr.mxu0 0.0
        %1988 = vmatpush1.msra.mxu0 0.0
        %1989 = vmatprep.subr.mxu0 0.0
        %1990 = vmatpush1.msra.mxu0 0.0
        %1991 = vmatprep.subr.mxu0 0.0
        %1992 = vmatpush1.msra.mxu0 0.0
        %1993 = vmatprep.subr.mxu0 0.0
        %1994 = vmatpush1.msra.mxu0 0.0
        %1995 = vmatprep.subr.mxu0 0.0
        %1996 = vmatpush1.msra.mxu0 0.0
        %1997 = vmatprep.subr.mxu0 0.0
        %1998 = vmatpush1.msra.mxu0 0.0
        %1999 = vmatprep.subr.mxu0 0.0
        %2000 = vmatpush1.msra.mxu0 0.0
        %2001 = vmatprep.subr.mxu0 0.0
        %2002 = vmatpush1.msra.mxu0 0.0
        %2003 = vmatprep.subr.mxu0 0.0
        %2004 = vmatpush1.msra.mxu0 0.0
        %2005 = vmatprep.subr.mxu0 0.0
        %2006 = vmatpush1.msra.mxu0 0.0
        %2007 = vmatprep.subr.mxu0 0.0
        %2008 = vmatpush1.msra.mxu0 0.0
        %2009 = vmatprep.subr.mxu0 0.0
        %2010 = vmatpush1.msra.mxu0 0.0
        %2011 = vmatprep.subr.mxu0 0.0
        %2012 = vmatpush1.msra.mxu0 0.0
        %2013 = vmatprep.mubr.f32.mxu0 0.0
        %2014 = vmatmul.mubr.f32.gmra.mrb[0].mxu0 %v1947
        %v2015 = vpop.f32.mrb[0].mxu0
        %v2016 = vadd.f32 0.0, %v2015
        %v2017 = vpop.f32.mrb[0].mxu0
        %2018 = vdwg.mxu0
        %v2019 = vld [vmem:[#allocation14 + $0x80] sm:$0xff]
        %v2020 = vld [vmem:[#allocation14 + $0x88] sm:$0xff]
        %v2021 = vld [vmem:[#allocation14 + $0x90] sm:$0xff]
        %v2022 = vld [vmem:[#allocation14 + $0x98] sm:$0xff]
        %v2023 = vld [vmem:[#allocation14 + $0xa0] sm:$0xff]
        %v2024 = vld [vmem:[#allocation14 + $0xa8] sm:$0xff]
        %v2025 = vld [vmem:[#allocation14 + $0xb0] sm:$0xff]
        %v2026 = vld [vmem:[#allocation14 + $0xb8] sm:$0xff]
        %v2028 = vsel %vm1338, %v2016, 0
        %2030 = vmatprep.subr.mxu0 %v2020
        %2031 = vmatpush1.msra.mxu0 %v2019
        %2032 = vmatprep.subr.mxu0 %v2022
        %2033 = vmatpush1.msra.mxu0 %v2021
        %2034 = vmatprep.subr.mxu0 %v2024
        %2035 = vmatpush1.msra.mxu0 %v2023
        %2036 = vmatprep.subr.mxu0 %v2026
        %2037 = vmatpush1.msra.mxu0 %v2025
        %2038 = vmatprep.subr.mxu0 0.0
        %2039 = vmatpush1.msra.mxu0 0.0
        %2040 = vmatprep.subr.mxu0 0.0
        %2041 = vmatpush1.msra.mxu0 0.0
        %2042 = vmatprep.subr.mxu0 0.0
        %2043 = vmatpush1.msra.mxu0 0.0
        %2044 = vmatprep.subr.mxu0 0.0
        %2045 = vmatpush1.msra.mxu0 0.0
        %2046 = vmatprep.subr.mxu0 0.0
        %2047 = vmatpush1.msra.mxu0 0.0
        %2048 = vmatprep.subr.mxu0 0.0
        %2049 = vmatpush1.msra.mxu0 0.0
        %2050 = vmatprep.subr.mxu0 0.0
        %2051 = vmatpush1.msra.mxu0 0.0
        %2052 = vmatprep.subr.mxu0 0.0
        %2053 = vmatpush1.msra.mxu0 0.0
        %2054 = vmatprep.subr.mxu0 0.0
        %2055 = vmatpush1.msra.mxu0 0.0
        %2056 = vmatprep.subr.mxu0 0.0
        %2057 = vmatpush1.msra.mxu0 0.0
        %2058 = vmatprep.subr.mxu0 0.0
        %2059 = vmatpush1.msra.mxu0 0.0
        %2060 = vmatprep.subr.mxu0 0.0
        %2061 = vmatpush1.msra.mxu0 0.0
        %2062 = vmatprep.subr.mxu0 0.0
        %2063 = vmatpush1.msra.mxu0 0.0
        %2064 = vmatprep.subr.mxu0 0.0
        %2065 = vmatpush1.msra.mxu0 0.0
        %2066 = vmatprep.subr.mxu0 0.0
        %2067 = vmatpush1.msra.mxu0 0.0
        %2068 = vmatprep.subr.mxu0 0.0
        %2069 = vmatpush1.msra.mxu0 0.0
        %2070 = vmatprep.subr.mxu0 0.0
        %2071 = vmatpush1.msra.mxu0 0.0
        %2072 = vmatprep.subr.mxu0 0.0
        %2073 = vmatpush1.msra.mxu0 0.0
        %2074 = vmatprep.subr.mxu0 0.0
        %2075 = vmatpush1.msra.mxu0 0.0
        %2076 = vmatprep.subr.mxu0 0.0
        %2077 = vmatpush1.msra.mxu0 0.0
        %2078 = vmatprep.subr.mxu0 0.0
        %2079 = vmatpush1.msra.mxu0 0.0
        %2080 = vmatprep.subr.mxu0 0.0
        %2081 = vmatpush1.msra.mxu0 0.0
        %2082 = vmatprep.subr.mxu0 0.0
        %2083 = vmatpush1.msra.mxu0 0.0
        %2084 = vmatprep.subr.mxu0 0.0
        %2085 = vmatpush1.msra.mxu0 0.0
        %2086 = vmatprep.subr.mxu0 0.0
        %2087 = vmatpush1.msra.mxu0 0.0
        %2088 = vmatprep.subr.mxu0 0.0
        %2089 = vmatpush1.msra.mxu0 0.0
        %2090 = vmatprep.subr.mxu0 0.0
        %2091 = vmatpush1.msra.mxu0 0.0
        %2092 = vmatprep.subr.mxu0 0.0
        %2093 = vmatpush1.msra.mxu0 0.0
        %2094 = vmatprep.mubr.f32.mxu0 0.0
        %2095 = vmatmul.mubr.f32.gmra.mrb[0].mxu0 %v2028
        %v2096 = vpop.f32.mrb[0].mxu0
        %v2097 = vadd.f32 0.0, %v2096
        %v2098 = vpop.f32.mrb[0].mxu0
        %v2099 = vadd.f32 0.0, %v2098
        %2100 = vdwg.mxu0
        %v2101 = vadd.f32 %v1841, %v2097
        %v2102 = vadd.f32 %v1843, %v2099
        %2103 = vrot.lane.b32.xlu0 %v1028, 32
        %v2104 = vpop.permute.xlu0 %2103
        %2105 = vrot.lane.b32.xlu0 %v1175, 32
        %v2106 = vpop.permute.xlu0 %2105
        %2107 = vrot.lane.b32.xlu0 %v1181, 32
        %v2108 = vpop.permute.xlu0 %2107
        %v2109 = vsel %vm1338, %v2104, 0
        %v2111 = vsel %vm1338, %v2106, 0
        %v2113 = vsel %vm1338, %v2108, 0
        %2115 = vmatprep.subr.mxu0 0.0
        %2116 = vmatpush1.xpose.msra.mxu0 %v2111
        %2117 = vmatprep.subr.mxu0 0.0
        %2118 = vmatpush1.xpose.msra.mxu0 %v2113
        %2119 = vmatprep.subr.mxu0 0.0
        %2120 = vmatpush1.xpose.msra.mxu0 0.0
        %2121 = vmatprep.subr.mxu0 0.0
        %2122 = vmatpush1.xpose.msra.mxu0 0.0
        %2123 = vmatprep.subr.mxu0 0.0
        %2124 = vmatpush1.xpose.msra.mxu0 0.0
        %2125 = vmatprep.subr.mxu0 0.0
        %2126 = vmatpush1.xpose.msra.mxu0 0.0
        %2127 = vmatprep.subr.mxu0 0.0
        %2128 = vmatpush1.xpose.msra.mxu0 0.0
        %2129 = vmatprep.subr.mxu0 0.0
        %2130 = vmatpush1.xpose.msra.mxu0 0.0
        %2131 = vmatprep.subr.mxu0 0.0
        %2132 = vmatpush1.xpose.msra.mxu0 0.0
        %2133 = vmatprep.subr.mxu0 0.0
        %2134 = vmatpush1.xpose.msra.mxu0 0.0
        %2135 = vmatprep.subr.mxu0 0.0
        %2136 = vmatpush1.xpose.msra.mxu0 0.0
        %2137 = vmatprep.subr.mxu0 0.0
        %2138 = vmatpush1.xpose.msra.mxu0 0.0
        %2139 = vmatprep.subr.mxu0 0.0
        %2140 = vmatpush1.xpose.msra.mxu0 0.0
        %2141 = vmatprep.subr.mxu0 0.0
        %2142 = vmatpush1.xpose.msra.mxu0 0.0
        %2143 = vmatprep.subr.mxu0 0.0
        %2144 = vmatpush1.xpose.msra.mxu0 0.0
        %2145 = vmatprep.subr.mxu0 0.0
        %2146 = vmatpush1.xpose.msra.mxu0 0.0
        %2147 = vmatprep.subr.mxu0 0.0
        %2148 = vmatpush1.xpose.msra.mxu0 0.0
        %2149 = vmatprep.subr.mxu0 0.0
        %2150 = vmatpush1.xpose.msra.mxu0 0.0
        %2151 = vmatprep.subr.mxu0 0.0
        %2152 = vmatpush1.xpose.msra.mxu0 0.0
        %2153 = vmatprep.subr.mxu0 0.0
        %2154 = vmatpush1.xpose.msra.mxu0 0.0
        %2155 = vmatprep.subr.mxu0 0.0
        %2156 = vmatpush1.xpose.msra.mxu0 0.0
        %2157 = vmatprep.subr.mxu0 0.0
        %2158 = vmatpush1.xpose.msra.mxu0 0.0
        %2159 = vmatprep.subr.mxu0 0.0
        %2160 = vmatpush1.xpose.msra.mxu0 0.0
        %2161 = vmatprep.subr.mxu0 0.0
        %2162 = vmatpush1.xpose.msra.mxu0 0.0
        %2163 = vmatprep.subr.mxu0 0.0
        %2164 = vmatpush1.xpose.msra.mxu0 0.0
        %2165 = vmatprep.subr.mxu0 0.0
        %2166 = vmatpush1.xpose.msra.mxu0 0.0
        %2167 = vmatprep.subr.mxu0 0.0
        %2168 = vmatpush1.xpose.msra.mxu0 0.0
        %2169 = vmatprep.subr.mxu0 0.0
        %2170 = vmatpush1.xpose.msra.mxu0 0.0
        %2171 = vmatprep.subr.mxu0 0.0
        %2172 = vmatpush1.xpose.msra.mxu0 0.0
        %2173 = vmatprep.subr.mxu0 0.0
        %2174 = vmatpush1.xpose.msra.mxu0 0.0
        %2175 = vmatprep.subr.mxu0 0.0
        %2176 = vmatpush1.xpose.msra.mxu0 0.0
        %2177 = vmatprep.subr.mxu0 0.0
        %2178 = vmatpush1.xpose.msra.mxu0 0.0
        %2179 = vmatprep.mubr.f32.mxu0 0.0
        %2180 = vmatmul.mubr.f32.gmra.mrb[0].mxu0 %v2109
        %v2181 = vpop.f32.mrb[0].mxu0
        %v2182 = vadd.f32 0.0, %v2181
        %v2183 = vpop.f32.mrb[0].mxu0
        %2184 = vdwg.mxu0
        %v2185 = vmul.f32 %v2182, 0.17677669
        %v2186 = vsel %vm1419, %v2185, -inf
        %2187 = vmax.xlane.f32.xlu0 %v2186
        %v2188 = vpop.xlane.xlu0 %2187
        %v2189 = vsub.f32 %v2185, %v2188
        %v2190 = vmul.f32 %v2189, 1.442695
        %v2191 = vpow.pop %v2190
        %v2192 = vsel %vm1419, %v2191, 0.0
        %2193 = vadd.xlane.f32.xlu0 %v2192
        %v2194 = vpop.xlane.xlu0 %2193
        %v2195 = vrcp.pop %v2194
        %v2196 = vmul.f32 %v2191, %v2195
        %v2197 = vadd.f32 %v1939, %v2196
        %2198 = vrot.lane.b32.xlu0 %v1328, 32
        %v2199 = vpop.permute.xlu0 %2198
        %2200 = vrot.lane.b32.xlu0 %v1334, 32
        %v2201 = vpop.permute.xlu0 %2200
        %v2205 = vsel %vm1419, %v2196, 0
        %2207 = vmatprep.subr.mxu0 0.0
        %2208 = vmatpush1.msra.mxu0 %v2199
        %2209 = vmatprep.subr.mxu0 0.0
        %2210 = vmatpush1.msra.mxu0 %v2201
        %2211 = vmatprep.subr.mxu0 0.0
        %2212 = vmatpush1.msra.mxu0 0.0
        %2213 = vmatprep.subr.mxu0 0.0
        %2214 = vmatpush1.msra.mxu0 0.0
        %2215 = vmatprep.subr.mxu0 0.0
        %2216 = vmatpush1.msra.mxu0 0.0
        %2217 = vmatprep.subr.mxu0 0.0
        %2218 = vmatpush1.msra.mxu0 0.0
        %2219 = vmatprep.subr.mxu0 0.0
        %2220 = vmatpush1.msra.mxu0 0.0
        %2221 = vmatprep.subr.mxu0 0.0
        %2222 = vmatpush1.msra.mxu0 0.0
        %2223 = vmatprep.subr.mxu0 0.0
        %2224 = vmatpush1.msra.mxu0 0.0
        %2225 = vmatprep.subr.mxu0 0.0
        %2226 = vmatpush1.msra.mxu0 0.0
        %2227 = vmatprep.subr.mxu0 0.0
        %2228 = vmatpush1.msra.mxu0 0.0
        %2229 = vmatprep.subr.mxu0 0.0
        %2230 = vmatpush1.msra.mxu0 0.0
        %2231 = vmatprep.subr.mxu0 0.0
        %2232 = vmatpush1.msra.mxu0 0.0
        %2233 = vmatprep.subr.mxu0 0.0
        %2234 = vmatpush1.msra.mxu0 0.0
        %2235 = vmatprep.subr.mxu0 0.0
        %2236 = vmatpush1.msra.mxu0 0.0
        %2237 = vmatprep.subr.mxu0 0.0
        %2238 = vmatpush1.msra.mxu0 0.0
        %2239 = vmatprep.subr.mxu0 0.0
        %2240 = vmatpush1.msra.mxu0 0.0
        %2241 = vmatprep.subr.mxu0 0.0
        %2242 = vmatpush1.msra.mxu0 0.0
        %2243 = vmatprep.subr.mxu0 0.0
        %2244 = vmatpush1.msra.mxu0 0.0
        %2245 = vmatprep.subr.mxu0 0.0
        %2246 = vmatpush1.msra.mxu0 0.0
        %2247 = vmatprep.subr.mxu0 0.0
        %2248 = vmatpush1.msra.mxu0 0.0
        %2249 = vmatprep.subr.mxu0 0.0
        %2250 = vmatpush1.msra.mxu0 0.0
        %2251 = vmatprep.subr.mxu0 0.0
        %2252 = vmatpush1.msra.mxu0 0.0
        %2253 = vmatprep.subr.mxu0 0.0
        %2254 = vmatpush1.msra.mxu0 0.0
        %2255 = vmatprep.subr.mxu0 0.0
        %2256 = vmatpush1.msra.mxu0 0.0
        %2257 = vmatprep.subr.mxu0 0.0
        %2258 = vmatpush1.msra.mxu0 0.0
        %2259 = vmatprep.subr.mxu0 0.0
        %2260 = vmatpush1.msra.mxu0 0.0
        %2261 = vmatprep.subr.mxu0 0.0
        %2262 = vmatpush1.msra.mxu0 0.0
        %2263 = vmatprep.subr.mxu0 0.0
        %2264 = vmatpush1.msra.mxu0 0.0
        %2265 = vmatprep.subr.mxu0 0.0
        %2266 = vmatpush1.msra.mxu0 0.0
        %2267 = vmatprep.subr.mxu0 0.0
        %2268 = vmatpush1.msra.mxu0 0.0
        %2269 = vmatprep.subr.mxu0 0.0
        %2270 = vmatpush1.msra.mxu0 0.0
        %2271 = vmatprep.mubr.f32.mxu0 0.0
        %2272 = vmatmul.mubr.f32.gmra.mrb[0].mxu0 %v2205
        %v2273 = vpop.f32.mrb[0].mxu0
        %v2274 = vadd.f32 0.0, %v2273
        %v2275 = vpop.f32.mrb[0].mxu0
        %2276 = vdwg.mxu0
        %v2277 = vld [vmem:[#allocation14 + $0xc0] sm:$0xff]
        %v2278 = vld [vmem:[#allocation14 + $0xc8] sm:$0xff]
        %v2279 = vld [vmem:[#allocation14 + $0xd0] sm:$0xff]
        %v2280 = vld [vmem:[#allocation14 + $0xd8] sm:$0xff]
        %v2281 = vld [vmem:[#allocation14 + $0xe0] sm:$0xff]
        %v2282 = vld [vmem:[#allocation14 + $0xe8] sm:$0xff]
        %v2283 = vld [vmem:[#allocation14 + $0xf0] sm:$0xff]
        %v2284 = vld [vmem:[#allocation14 + $0xf8] sm:$0xff]
        %v2286 = vsel %vm1338, %v2274, 0
        %2288 = vmatprep.subr.mxu0 %v2278
        %2289 = vmatpush1.msra.mxu0 %v2277
        %2290 = vmatprep.subr.mxu0 %v2280
        %2291 = vmatpush1.msra.mxu0 %v2279
        %2292 = vmatprep.subr.mxu0 %v2282
        %2293 = vmatpush1.msra.mxu0 %v2281
        %2294 = vmatprep.subr.mxu0 %v2284
        %2295 = vmatpush1.msra.mxu0 %v2283
        %2296 = vmatprep.subr.mxu0 0.0
        %2297 = vmatpush1.msra.mxu0 0.0
        %2298 = vmatprep.subr.mxu0 0.0
        %2299 = vmatpush1.msra.mxu0 0.0
        %2300 = vmatprep.subr.mxu0 0.0
        %2301 = vmatpush1.msra.mxu0 0.0
        %2302 = vmatprep.subr.mxu0 0.0
        %2303 = vmatpush1.msra.mxu0 0.0
        %2304 = vmatprep.subr.mxu0 0.0
        %2305 = vmatpush1.msra.mxu0 0.0
        %2306 = vmatprep.subr.mxu0 0.0
        %2307 = vmatpush1.msra.mxu0 0.0
        %2308 = vmatprep.subr.mxu0 0.0
        %2309 = vmatpush1.msra.mxu0 0.0
        %2310 = vmatprep.subr.mxu0 0.0
        %2311 = vmatpush1.msra.mxu0 0.0
        %2312 = vmatprep.subr.mxu0 0.0
        %2313 = vmatpush1.msra.mxu0 0.0
        %2314 = vmatprep.subr.mxu0 0.0
        %2315 = vmatpush1.msra.mxu0 0.0
        %2316 = vmatprep.subr.mxu0 0.0
        %2317 = vmatpush1.msra.mxu0 0.0
        %2318 = vmatprep.subr.mxu0 0.0
        %2319 = vmatpush1.msra.mxu0 0.0
        %2320 = vmatprep.subr.mxu0 0.0
        %2321 = vmatpush1.msra.mxu0 0.0
        %2322 = vmatprep.subr.mxu0 0.0
        %2323 = vmatpush1.msra.mxu0 0.0
        %2324 = vmatprep.subr.mxu0 0.0
        %2325 = vmatpush1.msra.mxu0 0.0
        %2326 = vmatprep.subr.mxu0 0.0
        %2327 = vmatpush1.msra.mxu0 0.0
        %2328 = vmatprep.subr.mxu0 0.0
        %2329 = vmatpush1.msra.mxu0 0.0
        %2330 = vmatprep.subr.mxu0 0.0
        %2331 = vmatpush1.msra.mxu0 0.0
        %2332 = vmatprep.subr.mxu0 0.0
        %2333 = vmatpush1.msra.mxu0 0.0
        %2334 = vmatprep.subr.mxu0 0.0
        %2335 = vmatpush1.msra.mxu0 0.0
        %2336 = vmatprep.subr.mxu0 0.0
        %2337 = vmatpush1.msra.mxu0 0.0
        %2338 = vmatprep.subr.mxu0 0.0
        %2339 = vmatpush1.msra.mxu0 0.0
        %2340 = vmatprep.subr.mxu0 0.0
        %2341 = vmatpush1.msra.mxu0 0.0
        %2342 = vmatprep.subr.mxu0 0.0
        %2343 = vmatpush1.msra.mxu0 0.0
        %2344 = vmatprep.subr.mxu0 0.0
        %2345 = vmatpush1.msra.mxu0 0.0
        %2346 = vmatprep.subr.mxu0 0.0
        %2347 = vmatpush1.msra.mxu0 0.0
        %2348 = vmatprep.subr.mxu0 0.0
        %2349 = vmatpush1.msra.mxu0 0.0
        %2350 = vmatprep.subr.mxu0 0.0
        %2351 = vmatpush1.msra.mxu0 0.0
        %2352 = vmatprep.mubr.f32.mxu0 0.0
        %2353 = vmatmul.mubr.f32.gmra.mrb[0].mxu0 %v2286
        %v2354 = vpop.f32.mrb[0].mxu0
        %v2355 = vadd.f32 0.0, %v2354
        %v2356 = vpop.f32.mrb[0].mxu0
        %v2357 = vadd.f32 0.0, %v2356
        %2358 = vdwg.mxu0
        %v2359 = vadd.f32 %v2101, %v2355
        %v2360 = vadd.f32 %v2102, %v2357
        %v2362 = vsel %vm1338, %v1030, 0
        %v2365 = vsel %vm1338, %v1177, 0
        %v2368 = vsel %vm1338, %v1183, 0
        %2370 = vmatprep.subr.mxu0 0.0
        %2371 = vmatpush1.xpose.msra.mxu0 %v2365
        %2372 = vmatprep.subr.mxu0 0.0
        %2373 = vmatpush1.xpose.msra.mxu0 %v2368
        %2374 = vmatprep.subr.mxu0 0.0
        %2375 = vmatpush1.xpose.msra.mxu0 0.0
        %2376 = vmatprep.subr.mxu0 0.0
        %2377 = vmatpush1.xpose.msra.mxu0 0.0
        %2378 = vmatprep.subr.mxu0 0.0
        %2379 = vmatpush1.xpose.msra.mxu0 0.0
        %2380 = vmatprep.subr.mxu0 0.0
        %2381 = vmatpush1.xpose.msra.mxu0 0.0
        %2382 = vmatprep.subr.mxu0 0.0
        %2383 = vmatpush1.xpose.msra.mxu0 0.0
        %2384 = vmatprep.subr.mxu0 0.0
        %2385 = vmatpush1.xpose.msra.mxu0 0.0
        %2386 = vmatprep.subr.mxu0 0.0
        %2387 = vmatpush1.xpose.msra.mxu0 0.0
        %2388 = vmatprep.subr.mxu0 0.0
        %2389 = vmatpush1.xpose.msra.mxu0 0.0
        %2390 = vmatprep.subr.mxu0 0.0
        %2391 = vmatpush1.xpose.msra.mxu0 0.0
        %2392 = vmatprep.subr.mxu0 0.0
        %2393 = vmatpush1.xpose.msra.mxu0 0.0
        %2394 = vmatprep.subr.mxu0 0.0
        %2395 = vmatpush1.xpose.msra.mxu0 0.0
        %2396 = vmatprep.subr.mxu0 0.0
        %2397 = vmatpush1.xpose.msra.mxu0 0.0
        %2398 = vmatprep.subr.mxu0 0.0
        %2399 = vmatpush1.xpose.msra.mxu0 0.0
        %2400 = vmatprep.subr.mxu0 0.0
        %2401 = vmatpush1.xpose.msra.mxu0 0.0
        %2402 = vmatprep.subr.mxu0 0.0
        %2403 = vmatpush1.xpose.msra.mxu0 0.0
        %2404 = vmatprep.subr.mxu0 0.0
        %2405 = vmatpush1.xpose.msra.mxu0 0.0
        %2406 = vmatprep.subr.mxu0 0.0
        %2407 = vmatpush1.xpose.msra.mxu0 0.0
        %2408 = vmatprep.subr.mxu0 0.0
        %2409 = vmatpush1.xpose.msra.mxu0 0.0
        %2410 = vmatprep.subr.mxu0 0.0
        %2411 = vmatpush1.xpose.msra.mxu0 0.0
        %2412 = vmatprep.subr.mxu0 0.0
        %2413 = vmatpush1.xpose.msra.mxu0 0.0
        %2414 = vmatprep.subr.mxu0 0.0
        %2415 = vmatpush1.xpose.msra.mxu0 0.0
        %2416 = vmatprep.subr.mxu0 0.0
        %2417 = vmatpush1.xpose.msra.mxu0 0.0
        %2418 = vmatprep.subr.mxu0 0.0
        %2419 = vmatpush1.xpose.msra.mxu0 0.0
        %2420 = vmatprep.subr.mxu0 0.0
        %2421 = vmatpush1.xpose.msra.mxu0 0.0
        %2422 = vmatprep.subr.mxu0 0.0
        %2423 = vmatpush1.xpose.msra.mxu0 0.0
        %2424 = vmatprep.subr.mxu0 0.0
        %2425 = vmatpush1.xpose.msra.mxu0 0.0
        %2426 = vmatprep.subr.mxu0 0.0
        %2427 = vmatpush1.xpose.msra.mxu0 0.0
        %2428 = vmatprep.subr.mxu0 0.0
        %2429 = vmatpush1.xpose.msra.mxu0 0.0
        %2430 = vmatprep.subr.mxu0 0.0
        %2431 = vmatpush1.xpose.msra.mxu0 0.0
        %2432 = vmatprep.subr.mxu0 0.0
        %2433 = vmatpush1.xpose.msra.mxu0 0.0
        %2434 = vmatprep.mubr.f32.mxu0 0.0
        %2435 = vmatmul.mubr.f32.gmra.mrb[0].mxu0 %v2362
        %v2436 = vpop.f32.mrb[0].mxu0
        %v2437 = vadd.f32 0.0, %v2436
        %v2438 = vpop.f32.mrb[0].mxu0
        %2439 = vdwg.mxu0
        %v2440 = vmul.f32 %v2437, 0.17677669
        %v2441 = vsel %vm1419, %v2440, -inf
        %2442 = vmax.xlane.f32.xlu0 %v2441
        %v2443 = vpop.xlane.xlu0 %2442
        %v2444 = vsub.f32 %v2440, %v2443
        %v2445 = vmul.f32 %v2444, 1.442695
        %v2446 = vpow.pop %v2445
        %v2447 = vsel %vm1419, %v2446, 0.0
        %2448 = vadd.xlane.f32.xlu0 %v2447
        %v2449 = vpop.xlane.xlu0 %2448
        %v2450 = vrcp.pop %v2449
        %v2451 = vmul.f32 %v2446, %v2450
        %v2452 = vadd.f32 %v2197, %v2451
        %v2454 = vsel %vm1419, %v2451, 0
        %2456 = vmatprep.subr.mxu0 0.0
        %2457 = vmatpush1.msra.mxu0 %v1330
        %2458 = vmatprep.subr.mxu0 0.0
        %2459 = vmatpush1.msra.mxu0 %v1336
        %2460 = vmatprep.subr.mxu0 0.0
        %2461 = vmatpush1.msra.mxu0 0.0
        %2462 = vmatprep.subr.mxu0 0.0
        %2463 = vmatpush1.msra.mxu0 0.0
        %2464 = vmatprep.subr.mxu0 0.0
        %2465 = vmatpush1.msra.mxu0 0.0
        %2466 = vmatprep.subr.mxu0 0.0
        %2467 = vmatpush1.msra.mxu0 0.0
        %2468 = vmatprep.subr.mxu0 0.0
        %2469 = vmatpush1.msra.mxu0 0.0
        %2470 = vmatprep.subr.mxu0 0.0
        %2471 = vmatpush1.msra.mxu0 0.0
        %2472 = vmatprep.subr.mxu0 0.0
        %2473 = vmatpush1.msra.mxu0 0.0
        %2474 = vmatprep.subr.mxu0 0.0
        %2475 = vmatpush1.msra.mxu0 0.0
        %2476 = vmatprep.subr.mxu0 0.0
        %2477 = vmatpush1.msra.mxu0 0.0
        %2478 = vmatprep.subr.mxu0 0.0
        %2479 = vmatpush1.msra.mxu0 0.0
        %2480 = vmatprep.subr.mxu0 0.0
        %2481 = vmatpush1.msra.mxu0 0.0
        %2482 = vmatprep.subr.mxu0 0.0
        %2483 = vmatpush1.msra.mxu0 0.0
        %2484 = vmatprep.subr.mxu0 0.0
        %2485 = vmatpush1.msra.mxu0 0.0
        %2486 = vmatprep.subr.mxu0 0.0
        %2487 = vmatpush1.msra.mxu0 0.0
        %2488 = vmatprep.subr.mxu0 0.0
        %2489 = vmatpush1.msra.mxu0 0.0
        %2490 = vmatprep.subr.mxu0 0.0
        %2491 = vmatpush1.msra.mxu0 0.0
        %2492 = vmatprep.subr.mxu0 0.0
        %2493 = vmatpush1.msra.mxu0 0.0
        %2494 = vmatprep.subr.mxu0 0.0
        %2495 = vmatpush1.msra.mxu0 0.0
        %2496 = vmatprep.subr.mxu0 0.0
        %2497 = vmatpush1.msra.mxu0 0.0
        %2498 = vmatprep.subr.mxu0 0.0
        %2499 = vmatpush1.msra.mxu0 0.0
        %2500 = vmatprep.subr.mxu0 0.0
        %2501 = vmatpush1.msra.mxu0 0.0
        %2502 = vmatprep.subr.mxu0 0.0
        %2503 = vmatpush1.msra.mxu0 0.0
        %2504 = vmatprep.subr.mxu0 0.0
        %2505 = vmatpush1.msra.mxu0 0.0
        %2506 = vmatprep.subr.mxu0 0.0
        %2507 = vmatpush1.msra.mxu0 0.0
        %2508 = vmatprep.subr.mxu0 0.0
        %2509 = vmatpush1.msra.mxu0 0.0
        %2510 = vmatprep.subr.mxu0 0.0
        %2511 = vmatpush1.msra.mxu0 0.0
        %2512 = vmatprep.subr.mxu0 0.0
        %2513 = vmatpush1.msra.mxu0 0.0
        %2514 = vmatprep.subr.mxu0 0.0
        %2515 = vmatpush1.msra.mxu0 0.0
        %2516 = vmatprep.subr.mxu0 0.0
        %2517 = vmatpush1.msra.mxu0 0.0
        %2518 = vmatprep.subr.mxu0 0.0
        %2519 = vmatpush1.msra.mxu0 0.0
        %2520 = vmatprep.mubr.f32.mxu0 0.0
        %2521 = vmatmul.mubr.f32.gmra.mrb[0].mxu0 %v2454
        %v2522 = vpop.f32.mrb[0].mxu0
        %v2523 = vadd.f32 0.0, %v2522
        %v2524 = vpop.f32.mrb[0].mxu0
        %2525 = vdwg.mxu0
        %v2526 = vld [vmem:[#allocation14 + $0x100] sm:$0xff]
        %v2527 = vld [vmem:[#allocation14 + $0x108] sm:$0xff]
        %v2528 = vld [vmem:[#allocation14 + $0x110] sm:$0xff]
        %v2529 = vld [vmem:[#allocation14 + $0x118] sm:$0xff]
        %v2530 = vld [vmem:[#allocation14 + $0x120] sm:$0xff]
        %v2531 = vld [vmem:[#allocation14 + $0x128] sm:$0xff]
        %v2532 = vld [vmem:[#allocation14 + $0x130] sm:$0xff]
        %v2533 = vld [vmem:[#allocation14 + $0x138] sm:$0xff]
        %v2535 = vsel %vm1338, %v2523, 0
        %2537 = vmatprep.subr.mxu0 %v2527
        %2538 = vmatpush1.msra.mxu0 %v2526
        %2539 = vmatprep.subr.mxu0 %v2529
        %2540 = vmatpush1.msra.mxu0 %v2528
        %2541 = vmatprep.subr.mxu0 %v2531
        %2542 = vmatpush1.msra.mxu0 %v2530
        %2543 = vmatprep.subr.mxu0 %v2533
        %2544 = vmatpush1.msra.mxu0 %v2532
        %2545 = vmatprep.subr.mxu0 0.0
        %2546 = vmatpush1.msra.mxu0 0.0
        %2547 = vmatprep.subr.mxu0 0.0
        %2548 = vmatpush1.msra.mxu0 0.0
        %2549 = vmatprep.subr.mxu0 0.0
        %2550 = vmatpush1.msra.mxu0 0.0
        %2551 = vmatprep.subr.mxu0 0.0
        %2552 = vmatpush1.msra.mxu0 0.0
        %2553 = vmatprep.subr.mxu0 0.0
        %2554 = vmatpush1.msra.mxu0 0.0
        %2555 = vmatprep.subr.mxu0 0.0
        %2556 = vmatpush1.msra.mxu0 0.0
        %2557 = vmatprep.subr.mxu0 0.0
        %2558 = vmatpush1.msra.mxu0 0.0
        %2559 = vmatprep.subr.mxu0 0.0
        %2560 = vmatpush1.msra.mxu0 0.0
        %2561 = vmatprep.subr.mxu0 0.0
        %2562 = vmatpush1.msra.mxu0 0.0
        %2563 = vmatprep.subr.mxu0 0.0
        %2564 = vmatpush1.msra.mxu0 0.0
        %2565 = vmatprep.subr.mxu0 0.0
        %2566 = vmatpush1.msra.mxu0 0.0
        %2567 = vmatprep.subr.mxu0 0.0
        %2568 = vmatpush1.msra.mxu0 0.0
        %2569 = vmatprep.subr.mxu0 0.0
        %2570 = vmatpush1.msra.mxu0 0.0
        %2571 = vmatprep.subr.mxu0 0.0
        %2572 = vmatpush1.msra.mxu0 0.0
        %2573 = vmatprep.subr.mxu0 0.0
        %2574 = vmatpush1.msra.mxu0 0.0
        %2575 = vmatprep.subr.mxu0 0.0
        %2576 = vmatpush1.msra.mxu0 0.0
        %2577 = vmatprep.subr.mxu0 0.0
        %2578 = vmatpush1.msra.mxu0 0.0
        %2579 = vmatprep.subr.mxu0 0.0
        %2580 = vmatpush1.msra.mxu0 0.0
        %2581 = vmatprep.subr.mxu0 0.0
        %2582 = vmatpush1.msra.mxu0 0.0
        %2583 = vmatprep.subr.mxu0 0.0
        %2584 = vmatpush1.msra.mxu0 0.0
        %2585 = vmatprep.subr.mxu0 0.0
        %2586 = vmatpush1.msra.mxu0 0.0
        %2587 = vmatprep.subr.mxu0 0.0
        %2588 = vmatpush1.msra.mxu0 0.0
        %2589 = vmatprep.subr.mxu0 0.0
        %2590 = vmatpush1.msra.mxu0 0.0
        %2591 = vmatprep.subr.mxu0 0.0
        %2592 = vmatpush1.msra.mxu0 0.0
        %2593 = vmatprep.subr.mxu0 0.0
        %2594 = vmatpush1.msra.mxu0 0.0
        %2595 = vmatprep.subr.mxu0 0.0
        %2596 = vmatpush1.msra.mxu0 0.0
        %2597 = vmatprep.subr.mxu0 0.0
        %2598 = vmatpush1.msra.mxu0 0.0
        %2599 = vmatprep.subr.mxu0 0.0
        %2600 = vmatpush1.msra.mxu0 0.0
        %2601 = vmatprep.mubr.f32.mxu0 0.0
        %2602 = vmatmul.mubr.f32.gmra.mrb[0].mxu0 %v2535
        %v2603 = vpop.f32.mrb[0].mxu0
        %v2604 = vadd.f32 0.0, %v2603
        %v2605 = vpop.f32.mrb[0].mxu0
        %v2606 = vadd.f32 0.0, %v2605
        %2607 = vdwg.mxu0
        %v2608 = vadd.f32 %v2359, %v2604
        %v2609 = vadd.f32 %v2360, %v2606
        %2610 = vrot.lane.b32.xlu0 %v1030, 96
        %v2611 = vpop.permute.xlu0 %2610
        %2612 = vrot.lane.b32.xlu0 %v1177, 96
        %v2613 = vpop.permute.xlu0 %2612
        %2614 = vrot.lane.b32.xlu0 %v1183, 96
        %v2615 = vpop.permute.xlu0 %2614
        %v2616 = vsel %vm1338, %v2611, 0
        %v2618 = vsel %vm1338, %v2613, 0
        %v2620 = vsel %vm1338, %v2615, 0
        %2622 = vmatprep.subr.mxu0 0.0
        %2623 = vmatpush1.xpose.msra.mxu0 %v2618
        %2624 = vmatprep.subr.mxu0 0.0
        %2625 = vmatpush1.xpose.msra.mxu0 %v2620
        %2626 = vmatprep.subr.mxu0 0.0
        %2627 = vmatpush1.xpose.msra.mxu0 0.0
        %2628 = vmatprep.subr.mxu0 0.0
        %2629 = vmatpush1.xpose.msra.mxu0 0.0
        %2630 = vmatprep.subr.mxu0 0.0
        %2631 = vmatpush1.xpose.msra.mxu0 0.0
        %2632 = vmatprep.subr.mxu0 0.0
        %2633 = vmatpush1.xpose.msra.mxu0 0.0
        %2634 = vmatprep.subr.mxu0 0.0
        %2635 = vmatpush1.xpose.msra.mxu0 0.0
        %2636 = vmatprep.subr.mxu0 0.0
        %2637 = vmatpush1.xpose.msra.mxu0 0.0
        %2638 = vmatprep.subr.mxu0 0.0
        %2639 = vmatpush1.xpose.msra.mxu0 0.0
        %2640 = vmatprep.subr.mxu0 0.0
        %2641 = vmatpush1.xpose.msra.mxu0 0.0
        %2642 = vmatprep.subr.mxu0 0.0
        %2643 = vmatpush1.xpose.msra.mxu0 0.0
        %2644 = vmatprep.subr.mxu0 0.0
        %2645 = vmatpush1.xpose.msra.mxu0 0.0
        %2646 = vmatprep.subr.mxu0 0.0
        %2647 = vmatpush1.xpose.msra.mxu0 0.0
        %2648 = vmatprep.subr.mxu0 0.0
        %2649 = vmatpush1.xpose.msra.mxu0 0.0
        %2650 = vmatprep.subr.mxu0 0.0
        %2651 = vmatpush1.xpose.msra.mxu0 0.0
        %2652 = vmatprep.subr.mxu0 0.0
        %2653 = vmatpush1.xpose.msra.mxu0 0.0
        %2654 = vmatprep.subr.mxu0 0.0
        %2655 = vmatpush1.xpose.msra.mxu0 0.0
        %2656 = vmatprep.subr.mxu0 0.0
        %2657 = vmatpush1.xpose.msra.mxu0 0.0
        %2658 = vmatprep.subr.mxu0 0.0
        %2659 = vmatpush1.xpose.msra.mxu0 0.0
        %2660 = vmatprep.subr.mxu0 0.0
        %2661 = vmatpush1.xpose.msra.mxu0 0.0
        %2662 = vmatprep.subr.mxu0 0.0
        %2663 = vmatpush1.xpose.msra.mxu0 0.0
        %2664 = vmatprep.subr.mxu0 0.0
        %2665 = vmatpush1.xpose.msra.mxu0 0.0
        %2666 = vmatprep.subr.mxu0 0.0
        %2667 = vmatpush1.xpose.msra.mxu0 0.0
        %2668 = vmatprep.subr.mxu0 0.0
        %2669 = vmatpush1.xpose.msra.mxu0 0.0
        %2670 = vmatprep.subr.mxu0 0.0
        %2671 = vmatpush1.xpose.msra.mxu0 0.0
        %2672 = vmatprep.subr.mxu0 0.0
        %2673 = vmatpush1.xpose.msra.mxu0 0.0
        %2674 = vmatprep.subr.mxu0 0.0
        %2675 = vmatpush1.xpose.msra.mxu0 0.0
        %2676 = vmatprep.subr.mxu0 0.0
        %2677 = vmatpush1.xpose.msra.mxu0 0.0
        %2678 = vmatprep.subr.mxu0 0.0
        %2679 = vmatpush1.xpose.msra.mxu0 0.0
        %2680 = vmatprep.subr.mxu0 0.0
        %2681 = vmatpush1.xpose.msra.mxu0 0.0
        %2682 = vmatprep.subr.mxu0 0.0
        %2683 = vmatpush1.xpose.msra.mxu0 0.0
        %2684 = vmatprep.subr.mxu0 0.0
        %2685 = vmatpush1.xpose.msra.mxu0 0.0
        %2686 = vmatprep.mubr.f32.mxu0 0.0
        %2687 = vmatmul.mubr.f32.gmra.mrb[0].mxu0 %v2616
        %v2688 = vpop.f32.mrb[0].mxu0
        %v2689 = vadd.f32 0.0, %v2688
        %v2690 = vpop.f32.mrb[0].mxu0
        %2691 = vdwg.mxu0
        %v2692 = vmul.f32 %v2689, 0.17677669
        %v2693 = vsel %vm1419, %v2692, -inf
        %2694 = vmax.xlane.f32.xlu0 %v2693
        %v2695 = vpop.xlane.xlu0 %2694
        %v2696 = vsub.f32 %v2692, %v2695
        %v2697 = vmul.f32 %v2696, 1.442695
        %v2698 = vpow.pop %v2697
        %v2699 = vsel %vm1419, %v2698, 0.0
        %2700 = vadd.xlane.f32.xlu0 %v2699
        %v2701 = vpop.xlane.xlu0 %2700
        %v2702 = vrcp.pop %v2701
        %v2703 = vmul.f32 %v2698, %v2702
        %v2704 = vadd.f32 %v2452, %v2703
        %2707 = vrot.lane.b32.xlu0 %v1330, 96
        %v2708 = vpop.permute.xlu0 %2707
        %2709 = vrot.lane.b32.xlu0 %v1336, 96
        %v2710 = vpop.permute.xlu0 %2709
        %v2714 = vsel %vm1419, %v2703, 0
        %2716 = vmatprep.subr.mxu0 0.0
        %2717 = vmatpush1.msra.mxu0 %v2708
        %2718 = vmatprep.subr.mxu0 0.0
        %2719 = vmatpush1.msra.mxu0 %v2710
        %2720 = vmatprep.subr.mxu0 0.0
        %2721 = vmatpush1.msra.mxu0 0.0
        %2722 = vmatprep.subr.mxu0 0.0
        %2723 = vmatpush1.msra.mxu0 0.0
        %2724 = vmatprep.subr.mxu0 0.0
        %2725 = vmatpush1.msra.mxu0 0.0
        %2726 = vmatprep.subr.mxu0 0.0
        %2727 = vmatpush1.msra.mxu0 0.0
        %2728 = vmatprep.subr.mxu0 0.0
        %2729 = vmatpush1.msra.mxu0 0.0
        %2730 = vmatprep.subr.mxu0 0.0
        %2731 = vmatpush1.msra.mxu0 0.0
        %2732 = vmatprep.subr.mxu0 0.0
        %2733 = vmatpush1.msra.mxu0 0.0
        %2734 = vmatprep.subr.mxu0 0.0
        %2735 = vmatpush1.msra.mxu0 0.0
        %2736 = vmatprep.subr.mxu0 0.0
        %2737 = vmatpush1.msra.mxu0 0.0
        %2738 = vmatprep.subr.mxu0 0.0
        %2739 = vmatpush1.msra.mxu0 0.0
        %2740 = vmatprep.subr.mxu0 0.0
        %2741 = vmatpush1.msra.mxu0 0.0
        %2742 = vmatprep.subr.mxu0 0.0
        %2743 = vmatpush1.msra.mxu0 0.0
        %2744 = vmatprep.subr.mxu0 0.0
        %2745 = vmatpush1.msra.mxu0 0.0
        %2746 = vmatprep.subr.mxu0 0.0
        %2747 = vmatpush1.msra.mxu0 0.0
        %2748 = vmatprep.subr.mxu0 0.0
        %2749 = vmatpush1.msra.mxu0 0.0
        %2750 = vmatprep.subr.mxu0 0.0
        %2751 = vmatpush1.msra.mxu0 0.0
        %2752 = vmatprep.subr.mxu0 0.0
        %2753 = vmatpush1.msra.mxu0 0.0
        %2754 = vmatprep.subr.mxu0 0.0
        %2755 = vmatpush1.msra.mxu0 0.0
        %2756 = vmatprep.subr.mxu0 0.0
        %2757 = vmatpush1.msra.mxu0 0.0
        %2758 = vmatprep.subr.mxu0 0.0
        %2759 = vmatpush1.msra.mxu0 0.0
        %2760 = vmatprep.subr.mxu0 0.0
        %2761 = vmatpush1.msra.mxu0 0.0
        %2762 = vmatprep.subr.mxu0 0.0
        %2763 = vmatpush1.msra.mxu0 0.0
        %2764 = vmatprep.subr.mxu0 0.0
        %2765 = vmatpush1.msra.mxu0 0.0
        %2766 = vmatprep.subr.mxu0 0.0
        %2767 = vmatpush1.msra.mxu0 0.0
        %2768 = vmatprep.subr.mxu0 0.0
        %2769 = vmatpush1.msra.mxu0 0.0
        %2770 = vmatprep.subr.mxu0 0.0
        %2771 = vmatpush1.msra.mxu0 0.0
        %2772 = vmatprep.subr.mxu0 0.0
        %2773 = vmatpush1.msra.mxu0 0.0
        %2774 = vmatprep.subr.mxu0 0.0
        %2775 = vmatpush1.msra.mxu0 0.0
        %2776 = vmatprep.subr.mxu0 0.0
        %2777 = vmatpush1.msra.mxu0 0.0
        %2778 = vmatprep.subr.mxu0 0.0
        %2779 = vmatpush1.msra.mxu0 0.0
        %2780 = vmatprep.mubr.f32.mxu0 0.0
        %2781 = vmatmul.mubr.f32.gmra.mrb[0].mxu0 %v2714
        %v2782 = vpop.f32.mrb[0].mxu0
        %v2783 = vadd.f32 0.0, %v2782
        %v2784 = vpop.f32.mrb[0].mxu0
        %2785 = vdwg.mxu0
        %v2786 = vld [vmem:[#allocation14 + $0x140] sm:$0xff]
        %v2787 = vld [vmem:[#allocation14 + $0x148] sm:$0xff]
        %v2788 = vld [vmem:[#allocation14 + $0x150] sm:$0xff]
        %v2789 = vld [vmem:[#allocation14 + $0x158] sm:$0xff]
        %v2790 = vld [vmem:[#allocation14 + $0x160] sm:$0xff]
        %v2791 = vld [vmem:[#allocation14 + $0x168] sm:$0xff]
        %v2792 = vld [vmem:[#allocation14 + $0x170] sm:$0xff]
        %v2793 = vld [vmem:[#allocation14 + $0x178] sm:$0xff]
        %v2795 = vsel %vm1338, %v2783, 0
        %2797 = vmatprep.subr.mxu0 %v2787
        %2798 = vmatpush1.msra.mxu0 %v2786
        %2799 = vmatprep.subr.mxu0 %v2789
        %2800 = vmatpush1.msra.mxu0 %v2788
        %2801 = vmatprep.subr.mxu0 %v2791
        %2802 = vmatpush1.msra.mxu0 %v2790
        %2803 = vmatprep.subr.mxu0 %v2793
        %2804 = vmatpush1.msra.mxu0 %v2792
        %2805 = vmatprep.subr.mxu0 0.0
        %2806 = vmatpush1.msra.mxu0 0.0
        %2807 = vmatprep.subr.mxu0 0.0
        %2808 = vmatpush1.msra.mxu0 0.0
        %2809 = vmatprep.subr.mxu0 0.0
        %2810 = vmatpush1.msra.mxu0 0.0
        %2811 = vmatprep.subr.mxu0 0.0
        %2812 = vmatpush1.msra.mxu0 0.0
        %2813 = vmatprep.subr.mxu0 0.0
        %2814 = vmatpush1.msra.mxu0 0.0
        %2815 = vmatprep.subr.mxu0 0.0
        %2816 = vmatpush1.msra.mxu0 0.0
        %2817 = vmatprep.subr.mxu0 0.0
        %2818 = vmatpush1.msra.mxu0 0.0
        %2819 = vmatprep.subr.mxu0 0.0
        %2820 = vmatpush1.msra.mxu0 0.0
        %2821 = vmatprep.subr.mxu0 0.0
        %2822 = vmatpush1.msra.mxu0 0.0
        %2823 = vmatprep.subr.mxu0 0.0
        %2824 = vmatpush1.msra.mxu0 0.0
        %2825 = vmatprep.subr.mxu0 0.0
        %2826 = vmatpush1.msra.mxu0 0.0
        %2827 = vmatprep.subr.mxu0 0.0
        %2828 = vmatpush1.msra.mxu0 0.0
        %2829 = vmatprep.subr.mxu0 0.0
        %2830 = vmatpush1.msra.mxu0 0.0
        %2831 = vmatprep.subr.mxu0 0.0
        %2832 = vmatpush1.msra.mxu0 0.0
        %2833 = vmatprep.subr.mxu0 0.0
        %2834 = vmatpush1.msra.mxu0 0.0
        %2835 = vmatprep.subr.mxu0 0.0
        %2836 = vmatpush1.msra.mxu0 0.0
        %2837 = vmatprep.subr.mxu0 0.0
        %2838 = vmatpush1.msra.mxu0 0.0
        %2839 = vmatprep.subr.mxu0 0.0
        %2840 = vmatpush1.msra.mxu0 0.0
        %2841 = vmatprep.subr.mxu0 0.0
        %2842 = vmatpush1.msra.mxu0 0.0
        %2843 = vmatprep.subr.mxu0 0.0
        %2844 = vmatpush1.msra.mxu0 0.0
        %2845 = vmatprep.subr.mxu0 0.0
        %2846 = vmatpush1.msra.mxu0 0.0
        %2847 = vmatprep.subr.mxu0 0.0
        %2848 = vmatpush1.msra.mxu0 0.0
        %2849 = vmatprep.subr.mxu0 0.0
        %2850 = vmatpush1.msra.mxu0 0.0
        %2851 = vmatprep.subr.mxu0 0.0
        %2852 = vmatpush1.msra.mxu0 0.0
        %2853 = vmatprep.subr.mxu0 0.0
        %2854 = vmatpush1.msra.mxu0 0.0
        %2855 = vmatprep.subr.mxu0 0.0
        %2856 = vmatpush1.msra.mxu0 0.0
        %2857 = vmatprep.subr.mxu0 0.0
        %2858 = vmatpush1.msra.mxu0 0.0
        %2859 = vmatprep.subr.mxu0 0.0
        %2860 = vmatpush1.msra.mxu0 0.0
        %2861 = vmatprep.mubr.f32.mxu0 0.0
        %2862 = vmatmul.mubr.f32.gmra.mrb[0].mxu0 %v2795
        %v2863 = vpop.f32.mrb[0].mxu0
        %v2864 = vadd.f32 0.0, %v2863
        %v2865 = vpop.f32.mrb[0].mxu0
        %v2866 = vadd.f32 0.0, %v2865
        %2867 = vdwg.mxu0
        %v2868 = vadd.f32 %v2608, %v2864
        %v2869 = vadd.f32 %v2609, %v2866
        %2870 = vrot.lane.b32.xlu0 %v1030, 64
        %v2871 = vpop.permute.xlu0 %2870
        %2872 = vrot.lane.b32.xlu0 %v1177, 64
        %v2873 = vpop.permute.xlu0 %2872
        %2874 = vrot.lane.b32.xlu0 %v1183, 64
        %v2875 = vpop.permute.xlu0 %2874
        %v2876 = vsel %vm1338, %v2871, 0
        %v2878 = vsel %vm1338, %v2873, 0
        %v2880 = vsel %vm1338, %v2875, 0
        %2882 = vmatprep.subr.mxu0 0.0
        %2883 = vmatpush1.xpose.msra.mxu0 %v2878
        %2884 = vmatprep.subr.mxu0 0.0
        %2885 = vmatpush1.xpose.msra.mxu0 %v2880
        %2886 = vmatprep.subr.mxu0 0.0
        %2887 = vmatpush1.xpose.msra.mxu0 0.0
        %2888 = vmatprep.subr.mxu0 0.0
        %2889 = vmatpush1.xpose.msra.mxu0 0.0
        %2890 = vmatprep.subr.mxu0 0.0
        %2891 = vmatpush1.xpose.msra.mxu0 0.0
        %2892 = vmatprep.subr.mxu0 0.0
        %2893 = vmatpush1.xpose.msra.mxu0 0.0
        %2894 = vmatprep.subr.mxu0 0.0
        %2895 = vmatpush1.xpose.msra.mxu0 0.0
        %2896 = vmatprep.subr.mxu0 0.0
        %2897 = vmatpush1.xpose.msra.mxu0 0.0
        %2898 = vmatprep.subr.mxu0 0.0
        %2899 = vmatpush1.xpose.msra.mxu0 0.0
        %2900 = vmatprep.subr.mxu0 0.0
        %2901 = vmatpush1.xpose.msra.mxu0 0.0
        %2902 = vmatprep.subr.mxu0 0.0
        %2903 = vmatpush1.xpose.msra.mxu0 0.0
        %2904 = vmatprep.subr.mxu0 0.0
        %2905 = vmatpush1.xpose.msra.mxu0 0.0
        %2906 = vmatprep.subr.mxu0 0.0
        %2907 = vmatpush1.xpose.msra.mxu0 0.0
        %2908 = vmatprep.subr.mxu0 0.0
        %2909 = vmatpush1.xpose.msra.mxu0 0.0
        %2910 = vmatprep.subr.mxu0 0.0
        %2911 = vmatpush1.xpose.msra.mxu0 0.0
        %2912 = vmatprep.subr.mxu0 0.0
        %2913 = vmatpush1.xpose.msra.mxu0 0.0
        %2914 = vmatprep.subr.mxu0 0.0
        %2915 = vmatpush1.xpose.msra.mxu0 0.0
        %2916 = vmatprep.subr.mxu0 0.0
        %2917 = vmatpush1.xpose.msra.mxu0 0.0
        %2918 = vmatprep.subr.mxu0 0.0
        %2919 = vmatpush1.xpose.msra.mxu0 0.0
        %2920 = vmatprep.subr.mxu0 0.0
        %2921 = vmatpush1.xpose.msra.mxu0 0.0
        %2922 = vmatprep.subr.mxu0 0.0
        %2923 = vmatpush1.xpose.msra.mxu0 0.0
        %2924 = vmatprep.subr.mxu0 0.0
        %2925 = vmatpush1.xpose.msra.mxu0 0.0
        %2926 = vmatprep.subr.mxu0 0.0
        %2927 = vmatpush1.xpose.msra.mxu0 0.0
        %2928 = vmatprep.subr.mxu0 0.0
        %2929 = vmatpush1.xpose.msra.mxu0 0.0
        %2930 = vmatprep.subr.mxu0 0.0
        %2931 = vmatpush1.xpose.msra.mxu0 0.0
        %2932 = vmatprep.subr.mxu0 0.0
        %2933 = vmatpush1.xpose.msra.mxu0 0.0
        %2934 = vmatprep.subr.mxu0 0.0
        %2935 = vmatpush1.xpose.msra.mxu0 0.0
        %2936 = vmatprep.subr.mxu0 0.0
        %2937 = vmatpush1.xpose.msra.mxu0 0.0
        %2938 = vmatprep.subr.mxu0 0.0
        %2939 = vmatpush1.xpose.msra.mxu0 0.0
        %2940 = vmatprep.subr.mxu0 0.0
        %2941 = vmatpush1.xpose.msra.mxu0 0.0
        %2942 = vmatprep.subr.mxu0 0.0
        %2943 = vmatpush1.xpose.msra.mxu0 0.0
        %2944 = vmatprep.subr.mxu0 0.0
        %2945 = vmatpush1.xpose.msra.mxu0 0.0
        %2946 = vmatprep.mubr.f32.mxu0 0.0
        %2947 = vmatmul.mubr.f32.gmra.mrb[0].mxu0 %v2876
        %v2948 = vpop.f32.mrb[0].mxu0
        %v2949 = vadd.f32 0.0, %v2948
        %v2950 = vpop.f32.mrb[0].mxu0
        %2951 = vdwg.mxu0
        %v2952 = vmul.f32 %v2949, 0.17677669
        %v2953 = vsel %vm1419, %v2952, -inf
        %2954 = vmax.xlane.f32.xlu0 %v2953
        %v2955 = vpop.xlane.xlu0 %2954
        %v2956 = vsub.f32 %v2952, %v2955
        %v2957 = vmul.f32 %v2956, 1.442695
        %v2958 = vpow.pop %v2957
        %v2959 = vsel %vm1419, %v2958, 0.0
        %2960 = vadd.xlane.f32.xlu0 %v2959
        %v2961 = vpop.xlane.xlu0 %2960
        %v2962 = vrcp.pop %v2961
        %v2963 = vmul.f32 %v2958, %v2962
        %v2964 = vadd.f32 %v2704, %v2963
        %2965 = vrot.lane.b32.xlu0 %v1330, 64
        %v2966 = vpop.permute.xlu0 %2965
        %2967 = vrot.lane.b32.xlu0 %v1336, 64
        %v2968 = vpop.permute.xlu0 %2967
        %v2972 = vsel %vm1419, %v2963, 0
        %2974 = vmatprep.subr.mxu0 0.0
        %2975 = vmatpush1.msra.mxu0 %v2966
        %2976 = vmatprep.subr.mxu0 0.0
        %2977 = vmatpush1.msra.mxu0 %v2968
        %2978 = vmatprep.subr.mxu0 0.0
        %2979 = vmatpush1.msra.mxu0 0.0
        %2980 = vmatprep.subr.mxu0 0.0
        %2981 = vmatpush1.msra.mxu0 0.0
        %2982 = vmatprep.subr.mxu0 0.0
        %2983 = vmatpush1.msra.mxu0 0.0
        %2984 = vmatprep.subr.mxu0 0.0
        %2985 = vmatpush1.msra.mxu0 0.0
        %2986 = vmatprep.subr.mxu0 0.0
        %2987 = vmatpush1.msra.mxu0 0.0
        %2988 = vmatprep.subr.mxu0 0.0
        %2989 = vmatpush1.msra.mxu0 0.0
        %2990 = vmatprep.subr.mxu0 0.0
        %2991 = vmatpush1.msra.mxu0 0.0
        %2992 = vmatprep.subr.mxu0 0.0
        %2993 = vmatpush1.msra.mxu0 0.0
        %2994 = vmatprep.subr.mxu0 0.0
        %2995 = vmatpush1.msra.mxu0 0.0
        %2996 = vmatprep.subr.mxu0 0.0
        %2997 = vmatpush1.msra.mxu0 0.0
        %2998 = vmatprep.subr.mxu0 0.0
        %2999 = vmatpush1.msra.mxu0 0.0
        %3000 = vmatprep.subr.mxu0 0.0
        %3001 = vmatpush1.msra.mxu0 0.0
        %3002 = vmatprep.subr.mxu0 0.0
        %3003 = vmatpush1.msra.mxu0 0.0
        %3004 = vmatprep.subr.mxu0 0.0
        %3005 = vmatpush1.msra.mxu0 0.0
        %3006 = vmatprep.subr.mxu0 0.0
        %3007 = vmatpush1.msra.mxu0 0.0
        %3008 = vmatprep.subr.mxu0 0.0
        %3009 = vmatpush1.msra.mxu0 0.0
        %3010 = vmatprep.subr.mxu0 0.0
        %3011 = vmatpush1.msra.mxu0 0.0
        %3012 = vmatprep.subr.mxu0 0.0
        %3013 = vmatpush1.msra.mxu0 0.0
        %3014 = vmatprep.subr.mxu0 0.0
        %3015 = vmatpush1.msra.mxu0 0.0
        %3016 = vmatprep.subr.mxu0 0.0
        %3017 = vmatpush1.msra.mxu0 0.0
        %3018 = vmatprep.subr.mxu0 0.0
        %3019 = vmatpush1.msra.mxu0 0.0
        %3020 = vmatprep.subr.mxu0 0.0
        %3021 = vmatpush1.msra.mxu0 0.0
        %3022 = vmatprep.subr.mxu0 0.0
        %3023 = vmatpush1.msra.mxu0 0.0
        %3024 = vmatprep.subr.mxu0 0.0
        %3025 = vmatpush1.msra.mxu0 0.0
        %3026 = vmatprep.subr.mxu0 0.0
        %3027 = vmatpush1.msra.mxu0 0.0
        %3028 = vmatprep.subr.mxu0 0.0
        %3029 = vmatpush1.msra.mxu0 0.0
        %3030 = vmatprep.subr.mxu0 0.0
        %3031 = vmatpush1.msra.mxu0 0.0
        %3032 = vmatprep.subr.mxu0 0.0
        %3033 = vmatpush1.msra.mxu0 0.0
        %3034 = vmatprep.subr.mxu0 0.0
        %3035 = vmatpush1.msra.mxu0 0.0
        %3036 = vmatprep.subr.mxu0 0.0
        %3037 = vmatpush1.msra.mxu0 0.0
        %3038 = vmatprep.mubr.f32.mxu0 0.0
        %3039 = vmatmul.mubr.f32.gmra.mrb[0].mxu0 %v2972
        %v3040 = vpop.f32.mrb[0].mxu0
        %v3041 = vadd.f32 0.0, %v3040
        %v3042 = vpop.f32.mrb[0].mxu0
        %3043 = vdwg.mxu0
        %v3044 = vld [vmem:[#allocation14 + $0x180] sm:$0xff]
        %v3045 = vld [vmem:[#allocation14 + $0x188] sm:$0xff]
        %v3046 = vld [vmem:[#allocation14 + $0x190] sm:$0xff]
        %v3047 = vld [vmem:[#allocation14 + $0x198] sm:$0xff]
        %v3048 = vld [vmem:[#allocation14 + $0x1a0] sm:$0xff]
        %v3049 = vld [vmem:[#allocation14 + $0x1a8] sm:$0xff]
        %v3050 = vld [vmem:[#allocation14 + $0x1b0] sm:$0xff]
        %v3051 = vld [vmem:[#allocation14 + $0x1b8] sm:$0xff]
        %v3053 = vsel %vm1338, %v3041, 0
        %3055 = vmatprep.subr.mxu0 %v3045
        %3056 = vmatpush1.msra.mxu0 %v3044
        %3057 = vmatprep.subr.mxu0 %v3047
        %3058 = vmatpush1.msra.mxu0 %v3046
        %3059 = vmatprep.subr.mxu0 %v3049
        %3060 = vmatpush1.msra.mxu0 %v3048
        %3061 = vmatprep.subr.mxu0 %v3051
        %3062 = vmatpush1.msra.mxu0 %v3050
        %3063 = vmatprep.subr.mxu0 0.0
        %3064 = vmatpush1.msra.mxu0 0.0
        %3065 = vmatprep.subr.mxu0 0.0
        %3066 = vmatpush1.msra.mxu0 0.0
        %3067 = vmatprep.subr.mxu0 0.0
        %3068 = vmatpush1.msra.mxu0 0.0
        %3069 = vmatprep.subr.mxu0 0.0
        %3070 = vmatpush1.msra.mxu0 0.0
        %3071 = vmatprep.subr.mxu0 0.0
        %3072 = vmatpush1.msra.mxu0 0.0
        %3073 = vmatprep.subr.mxu0 0.0
        %3074 = vmatpush1.msra.mxu0 0.0
        %3075 = vmatprep.subr.mxu0 0.0
        %3076 = vmatpush1.msra.mxu0 0.0
        %3077 = vmatprep.subr.mxu0 0.0
        %3078 = vmatpush1.msra.mxu0 0.0
        %3079 = vmatprep.subr.mxu0 0.0
        %3080 = vmatpush1.msra.mxu0 0.0
        %3081 = vmatprep.subr.mxu0 0.0
        %3082 = vmatpush1.msra.mxu0 0.0
        %3083 = vmatprep.subr.mxu0 0.0
        %3084 = vmatpush1.msra.mxu0 0.0
        %3085 = vmatprep.subr.mxu0 0.0
        %3086 = vmatpush1.msra.mxu0 0.0
        %3087 = vmatprep.subr.mxu0 0.0
        %3088 = vmatpush1.msra.mxu0 0.0
        %3089 = vmatprep.subr.mxu0 0.0
        %3090 = vmatpush1.msra.mxu0 0.0
        %3091 = vmatprep.subr.mxu0 0.0
        %3092 = vmatpush1.msra.mxu0 0.0
        %3093 = vmatprep.subr.mxu0 0.0
        %3094 = vmatpush1.msra.mxu0 0.0
        %3095 = vmatprep.subr.mxu0 0.0
        %3096 = vmatpush1.msra.mxu0 0.0
        %3097 = vmatprep.subr.mxu0 0.0
        %3098 = vmatpush1.msra.mxu0 0.0
        %3099 = vmatprep.subr.mxu0 0.0
        %3100 = vmatpush1.msra.mxu0 0.0
        %3101 = vmatprep.subr.mxu0 0.0
        %3102 = vmatpush1.msra.mxu0 0.0
        %3103 = vmatprep.subr.mxu0 0.0
        %3104 = vmatpush1.msra.mxu0 0.0
        %3105 = vmatprep.subr.mxu0 0.0
        %3106 = vmatpush1.msra.mxu0 0.0
        %3107 = vmatprep.subr.mxu0 0.0
        %3108 = vmatpush1.msra.mxu0 0.0
        %3109 = vmatprep.subr.mxu0 0.0
        %3110 = vmatpush1.msra.mxu0 0.0
        %3111 = vmatprep.subr.mxu0 0.0
        %3112 = vmatpush1.msra.mxu0 0.0
        %3113 = vmatprep.subr.mxu0 0.0
        %3114 = vmatpush1.msra.mxu0 0.0
        %3115 = vmatprep.subr.mxu0 0.0
        %3116 = vmatpush1.msra.mxu0 0.0
        %3117 = vmatprep.subr.mxu0 0.0
        %3118 = vmatpush1.msra.mxu0 0.0
        %3119 = vmatprep.mubr.f32.mxu0 0.0
        %3120 = vmatmul.mubr.f32.gmra.mrb[0].mxu0 %v3053
        %v3121 = vpop.f32.mrb[0].mxu0
        %v3122 = vadd.f32 0.0, %v3121
        %v3123 = vpop.f32.mrb[0].mxu0
        %v3124 = vadd.f32 0.0, %v3123
        %3125 = vdwg.mxu0
        %v3126 = vadd.f32 %v2868, %v3122
        %v3127 = vadd.f32 %v2869, %v3124
        %3128 = vrot.lane.b32.xlu0 %v1030, 32
        %v3129 = vpop.permute.xlu0 %3128
        %3130 = vrot.lane.b32.xlu0 %v1177, 32
        %v3131 = vpop.permute.xlu0 %3130
        %3132 = vrot.lane.b32.xlu0 %v1183, 32
        %v3133 = vpop.permute.xlu0 %3132
        %v3134 = vsel %vm1338, %v3129, 0
        %v3136 = vsel %vm1338, %v3131, 0
        %v3138 = vsel %vm1338, %v3133, 0
        %3140 = vmatprep.subr.mxu0 0.0
        %3141 = vmatpush1.xpose.msra.mxu0 %v3136
        %3142 = vmatprep.subr.mxu0 0.0
        %3143 = vmatpush1.xpose.msra.mxu0 %v3138
        %3144 = vmatprep.subr.mxu0 0.0
        %3145 = vmatpush1.xpose.msra.mxu0 0.0
        %3146 = vmatprep.subr.mxu0 0.0
        %3147 = vmatpush1.xpose.msra.mxu0 0.0
        %3148 = vmatprep.subr.mxu0 0.0
        %3149 = vmatpush1.xpose.msra.mxu0 0.0
        %3150 = vmatprep.subr.mxu0 0.0
        %3151 = vmatpush1.xpose.msra.mxu0 0.0
        %3152 = vmatprep.subr.mxu0 0.0
        %3153 = vmatpush1.xpose.msra.mxu0 0.0
        %3154 = vmatprep.subr.mxu0 0.0
        %3155 = vmatpush1.xpose.msra.mxu0 0.0
        %3156 = vmatprep.subr.mxu0 0.0
        %3157 = vmatpush1.xpose.msra.mxu0 0.0
        %3158 = vmatprep.subr.mxu0 0.0
        %3159 = vmatpush1.xpose.msra.mxu0 0.0
        %3160 = vmatprep.subr.mxu0 0.0
        %3161 = vmatpush1.xpose.msra.mxu0 0.0
        %3162 = vmatprep.subr.mxu0 0.0
        %3163 = vmatpush1.xpose.msra.mxu0 0.0
        %3164 = vmatprep.subr.mxu0 0.0
        %3165 = vmatpush1.xpose.msra.mxu0 0.0
        %3166 = vmatprep.subr.mxu0 0.0
        %3167 = vmatpush1.xpose.msra.mxu0 0.0
        %3168 = vmatprep.subr.mxu0 0.0
        %3169 = vmatpush1.xpose.msra.mxu0 0.0
        %3170 = vmatprep.subr.mxu0 0.0
        %3171 = vmatpush1.xpose.msra.mxu0 0.0
        %3172 = vmatprep.subr.mxu0 0.0
        %3173 = vmatpush1.xpose.msra.mxu0 0.0
        %3174 = vmatprep.subr.mxu0 0.0
        %3175 = vmatpush1.xpose.msra.mxu0 0.0
        %3176 = vmatprep.subr.mxu0 0.0
        %3177 = vmatpush1.xpose.msra.mxu0 0.0
        %3178 = vmatprep.subr.mxu0 0.0
        %3179 = vmatpush1.xpose.msra.mxu0 0.0
        %3180 = vmatprep.subr.mxu0 0.0
        %3181 = vmatpush1.xpose.msra.mxu0 0.0
        %3182 = vmatprep.subr.mxu0 0.0
        %3183 = vmatpush1.xpose.msra.mxu0 0.0
        %3184 = vmatprep.subr.mxu0 0.0
        %3185 = vmatpush1.xpose.msra.mxu0 0.0
        %3186 = vmatprep.subr.mxu0 0.0
        %3187 = vmatpush1.xpose.msra.mxu0 0.0
        %3188 = vmatprep.subr.mxu0 0.0
        %3189 = vmatpush1.xpose.msra.mxu0 0.0
        %3190 = vmatprep.subr.mxu0 0.0
        %3191 = vmatpush1.xpose.msra.mxu0 0.0
        %3192 = vmatprep.subr.mxu0 0.0
        %3193 = vmatpush1.xpose.msra.mxu0 0.0
        %3194 = vmatprep.subr.mxu0 0.0
        %3195 = vmatpush1.xpose.msra.mxu0 0.0
        %3196 = vmatprep.subr.mxu0 0.0
        %3197 = vmatpush1.xpose.msra.mxu0 0.0
        %3198 = vmatprep.subr.mxu0 0.0
        %3199 = vmatpush1.xpose.msra.mxu0 0.0
        %3200 = vmatprep.subr.mxu0 0.0
        %3201 = vmatpush1.xpose.msra.mxu0 0.0
        %3202 = vmatprep.subr.mxu0 0.0
        %3203 = vmatpush1.xpose.msra.mxu0 0.0
        %3204 = vmatprep.mubr.f32.mxu0 0.0
        %3205 = vmatmul.mubr.f32.gmra.mrb[0].mxu0 %v3134
        %v3206 = vpop.f32.mrb[0].mxu0
        %v3207 = vadd.f32 0.0, %v3206
        %v3208 = vpop.f32.mrb[0].mxu0
        %3209 = vdwg.mxu0
        %v3210 = vmul.f32 %v3207, 0.17677669
        %v3211 = vsel %vm1419, %v3210, -inf
        %3212 = vmax.xlane.f32.xlu0 %v3211
        %v3213 = vpop.xlane.xlu0 %3212
        %v3214 = vsub.f32 %v3210, %v3213
        %v3215 = vmul.f32 %v3214, 1.442695
        %v3216 = vpow.pop %v3215
        %v3217 = vsel %vm1419, %v3216, 0.0
        %3218 = vadd.xlane.f32.xlu0 %v3217
        %v3219 = vpop.xlane.xlu0 %3218
        %v3220 = vrcp.pop %v3219
        %v3221 = vmul.f32 %v3216, %v3220
        %v3222 = vadd.f32 %v2964, %v3221
        %3223 = vrot.lane.b32.xlu0 %v1330, 32
        %v3224 = vpop.permute.xlu0 %3223
        %3225 = vrot.lane.b32.xlu0 %v1336, 32
        %v3226 = vpop.permute.xlu0 %3225
        %v3230 = vsel %vm1419, %v3221, 0
        %3232 = vmatprep.subr.mxu0 0.0
        %3233 = vmatpush1.msra.mxu0 %v3224
        %3234 = vmatprep.subr.mxu0 0.0
        %3235 = vmatpush1.msra.mxu0 %v3226
        %3236 = vmatprep.subr.mxu0 0.0
        %3237 = vmatpush1.msra.mxu0 0.0
        %3238 = vmatprep.subr.mxu0 0.0
        %3239 = vmatpush1.msra.mxu0 0.0
        %3240 = vmatprep.subr.mxu0 0.0
        %3241 = vmatpush1.msra.mxu0 0.0
        %3242 = vmatprep.subr.mxu0 0.0
        %3243 = vmatpush1.msra.mxu0 0.0
        %3244 = vmatprep.subr.mxu0 0.0
        %3245 = vmatpush1.msra.mxu0 0.0
        %3246 = vmatprep.subr.mxu0 0.0
        %3247 = vmatpush1.msra.mxu0 0.0
        %3248 = vmatprep.subr.mxu0 0.0
        %3249 = vmatpush1.msra.mxu0 0.0
        %3250 = vmatprep.subr.mxu0 0.0
        %3251 = vmatpush1.msra.mxu0 0.0
        %3252 = vmatprep.subr.mxu0 0.0
        %3253 = vmatpush1.msra.mxu0 0.0
        %3254 = vmatprep.subr.mxu0 0.0
        %3255 = vmatpush1.msra.mxu0 0.0
        %3256 = vmatprep.subr.mxu0 0.0
        %3257 = vmatpush1.msra.mxu0 0.0
        %3258 = vmatprep.subr.mxu0 0.0
        %3259 = vmatpush1.msra.mxu0 0.0
        %3260 = vmatprep.subr.mxu0 0.0
        %3261 = vmatpush1.msra.mxu0 0.0
        %3262 = vmatprep.subr.mxu0 0.0
        %3263 = vmatpush1.msra.mxu0 0.0
        %3264 = vmatprep.subr.mxu0 0.0
        %3265 = vmatpush1.msra.mxu0 0.0
        %3266 = vmatprep.subr.mxu0 0.0
        %3267 = vmatpush1.msra.mxu0 0.0
        %3268 = vmatprep.subr.mxu0 0.0
        %3269 = vmatpush1.msra.mxu0 0.0
        %3270 = vmatprep.subr.mxu0 0.0
        %3271 = vmatpush1.msra.mxu0 0.0
        %3272 = vmatprep.subr.mxu0 0.0
        %3273 = vmatpush1.msra.mxu0 0.0
        %3274 = vmatprep.subr.mxu0 0.0
        %3275 = vmatpush1.msra.mxu0 0.0
        %3276 = vmatprep.subr.mxu0 0.0
        %3277 = vmatpush1.msra.mxu0 0.0
        %3278 = vmatprep.subr.mxu0 0.0
        %3279 = vmatpush1.msra.mxu0 0.0
        %3280 = vmatprep.subr.mxu0 0.0
        %3281 = vmatpush1.msra.mxu0 0.0
        %3282 = vmatprep.subr.mxu0 0.0
        %3283 = vmatpush1.msra.mxu0 0.0
        %3284 = vmatprep.subr.mxu0 0.0
        %3285 = vmatpush1.msra.mxu0 0.0
        %3286 = vmatprep.subr.mxu0 0.0
        %3287 = vmatpush1.msra.mxu0 0.0
        %3288 = vmatprep.subr.mxu0 0.0
        %3289 = vmatpush1.msra.mxu0 0.0
        %3290 = vmatprep.subr.mxu0 0.0
        %3291 = vmatpush1.msra.mxu0 0.0
        %3292 = vmatprep.subr.mxu0 0.0
        %3293 = vmatpush1.msra.mxu0 0.0
        %3294 = vmatprep.subr.mxu0 0.0
        %3295 = vmatpush1.msra.mxu0 0.0
        %3296 = vmatprep.mubr.f32.mxu0 0.0
        %3297 = vmatmul.mubr.f32.gmra.mrb[0].mxu0 %v3230
        %v3298 = vpop.f32.mrb[0].mxu0
        %v3299 = vadd.f32 0.0, %v3298
        %v3300 = vpop.f32.mrb[0].mxu0
        %3301 = vdwg.mxu0
        %v3302 = vld [vmem:[#allocation14 + $0x1c0] sm:$0xff]
        %v3303 = vld [vmem:[#allocation14 + $0x1c8] sm:$0xff]
        %v3304 = vld [vmem:[#allocation14 + $0x1d0] sm:$0xff]
        %v3305 = vld [vmem:[#allocation14 + $0x1d8] sm:$0xff]
        %v3306 = vld [vmem:[#allocation14 + $0x1e0] sm:$0xff]
        %v3307 = vld [vmem:[#allocation14 + $0x1e8] sm:$0xff]
        %v3308 = vld [vmem:[#allocation14 + $0x1f0] sm:$0xff]
        %v3309 = vld [vmem:[#allocation14 + $0x1f8] sm:$0xff]
        %v3311 = vsel %vm1338, %v3299, 0
        %3313 = vmatprep.subr.mxu0 %v3303
        %3314 = vmatpush1.msra.mxu0 %v3302
        %3315 = vmatprep.subr.mxu0 %v3305
        %3316 = vmatpush1.msra.mxu0 %v3304
        %3317 = vmatprep.subr.mxu0 %v3307
        %3318 = vmatpush1.msra.mxu0 %v3306
        %3319 = vmatprep.subr.mxu0 %v3309
        %3320 = vmatpush1.msra.mxu0 %v3308
        %3321 = vmatprep.subr.mxu0 0.0
        %3322 = vmatpush1.msra.mxu0 0.0
        %3323 = vmatprep.subr.mxu0 0.0
        %3324 = vmatpush1.msra.mxu0 0.0
        %3325 = vmatprep.subr.mxu0 0.0
        %3326 = vmatpush1.msra.mxu0 0.0
        %3327 = vmatprep.subr.mxu0 0.0
        %3328 = vmatpush1.msra.mxu0 0.0
        %3329 = vmatprep.subr.mxu0 0.0
        %3330 = vmatpush1.msra.mxu0 0.0
        %3331 = vmatprep.subr.mxu0 0.0
        %3332 = vmatpush1.msra.mxu0 0.0
        %3333 = vmatprep.subr.mxu0 0.0
        %3334 = vmatpush1.msra.mxu0 0.0
        %3335 = vmatprep.subr.mxu0 0.0
        %3336 = vmatpush1.msra.mxu0 0.0
        %3337 = vmatprep.subr.mxu0 0.0
        %3338 = vmatpush1.msra.mxu0 0.0
        %3339 = vmatprep.subr.mxu0 0.0
        %3340 = vmatpush1.msra.mxu0 0.0
        %3341 = vmatprep.subr.mxu0 0.0
        %3342 = vmatpush1.msra.mxu0 0.0
        %3343 = vmatprep.subr.mxu0 0.0
        %3344 = vmatpush1.msra.mxu0 0.0
        %3345 = vmatprep.subr.mxu0 0.0
        %3346 = vmatpush1.msra.mxu0 0.0
        %3347 = vmatprep.subr.mxu0 0.0
        %3348 = vmatpush1.msra.mxu0 0.0
        %3349 = vmatprep.subr.mxu0 0.0
        %3350 = vmatpush1.msra.mxu0 0.0
        %3351 = vmatprep.subr.mxu0 0.0
        %3352 = vmatpush1.msra.mxu0 0.0
        %3353 = vmatprep.subr.mxu0 0.0
        %3354 = vmatpush1.msra.mxu0 0.0
        %3355 = vmatprep.subr.mxu0 0.0
        %3356 = vmatpush1.msra.mxu0 0.0
        %3357 = vmatprep.subr.mxu0 0.0
        %3358 = vmatpush1.msra.mxu0 0.0
        %3359 = vmatprep.subr.mxu0 0.0
        %3360 = vmatpush1.msra.mxu0 0.0
        %3361 = vmatprep.subr.mxu0 0.0
        %3362 = vmatpush1.msra.mxu0 0.0
        %3363 = vmatprep.subr.mxu0 0.0
        %3364 = vmatpush1.msra.mxu0 0.0
        %3365 = vmatprep.subr.mxu0 0.0
        %3366 = vmatpush1.msra.mxu0 0.0
        %3367 = vmatprep.subr.mxu0 0.0
        %3368 = vmatpush1.msra.mxu0 0.0
        %3369 = vmatprep.subr.mxu0 0.0
        %3370 = vmatpush1.msra.mxu0 0.0
        %3371 = vmatprep.subr.mxu0 0.0
        %3372 = vmatpush1.msra.mxu0 0.0
        %3373 = vmatprep.subr.mxu0 0.0
        %3374 = vmatpush1.msra.mxu0 0.0
        %3375 = vmatprep.subr.mxu0 0.0
        %3376 = vmatpush1.msra.mxu0 0.0
        %3377 = vmatprep.mubr.f32.mxu0 0.0
        %3378 = vmatmul.mubr.f32.gmra.mrb[0].mxu0 %v3311
        %v3379 = vpop.f32.mrb[0].mxu0
        %v3380 = vadd.f32 0.0, %v3379
        %v3381 = vpop.f32.mrb[0].mxu0
        %v3382 = vadd.f32 0.0, %v3381
        %3383 = vdwg.mxu0
        %v3384 = vadd.f32 %v3126, %v3380
        %v3385 = vadd.f32 %v3127, %v3382
        %v3386 = vld [vmem:[%s15] sm:$0x3]
        %v3388 = vlaneseq
        %v3389 = vshrl.u32 %v3388, 7
        %v3390 = vsub.s32 0, %v3389
        %v3391 = vrot.slane %v3386, %v3390
        %v3392 = vlaneseq
        %v3393 = vshrl.u32 %v3392, 7
        %v3394 = vsub.s32 1, %v3393
        %v3395 = vrot.slane %v3386, %v3394
        %v3398 = vadd.f32 %v3384, %v3391
        %v3399 = vadd.f32 %v3385, %v3395
        %v3400 = vadd.f32 %v3398, %v749
        %v3401 = vadd.f32 %v3399, %v750
        %3402 = vst [vmem:[%s741] sm:$0xff] %v3400
        %3403 = vst [vmem:[%s741 + $0x8] sm:$0xff] %v3401
        %v3404 = vmul.f32 %v3222, 0.125
        %3405 = vst.msk [vmem:[%s748] sm:$0xff] %vm1419, %v3404
        %s3406 = sand.u32 %s410, 1
        %s3407 = scalar_lea.sflag [#allocation4], %s3406
        %s3408 = sand.u32 %s410, 1
        %s3409 = smul.addr %s3408, 16
        %s3410 = scalar_lea.vmem [#allocation16], %s3409
        %s3411 = sand.u32 %s436, 1
        %s3412 = scalar_lea.sflag [#allocation18], %s3411
        %s3413 = sand.u32 %s436, 1
        %s3414 = smul.addr %s3413, 8
        %s3415 = scalar_lea.vmem [#allocation17], %s3414
        // Predicated region
        $region117: #{tpu_custom_call.1} parent=83 // pred_check
          %p3416 = pneg %p420
        $region118: #{tpu_custom_call.1} parent=83 // pred_check_branch
          %3418 = sbr.rel (%p3416) target = $region120
        $region119: #{tpu_custom_call.1} parent=83 // pred_region
          %s3420 = ssub.s32 256, 256
          %3421 = vsyncadd %s3407, %s3420
          %s3422 = smul.addr %s46, 2
          %s3423 = smul.addr %s3422, 128
          %s3424 = scalar_lea.hbm %s16, %s3423
          %s3426 = sshll.u32 %s3410, 4
          %s3427 = int_to_ptr.vmem [resolvable:$true] %s3426
          %3429 = dma.vmem_to_hbm [thread:$0]  %s3427, 256, %s3424, %s3407
        $region120: #{tpu_custom_call.1} parent=83 // pred_fallthru
          _
        // Predicated region
        $region121: #{tpu_custom_call.1} parent=83 // pred_check
          %p3430 = pneg %p446
        $region122: #{tpu_custom_call.1} parent=83 // pred_check_branch
          %3432 = sbr.rel (%p3430) target = $region124
        $region123: #{tpu_custom_call.1} parent=83 // pred_region
          %s3434 = ssub.s32 128, 128
          %3435 = vsyncadd %s3412, %s3434
          %s3436 = smul.addr %s46, 128
          %s3437 = scalar_lea.hbm %s17, %s3436
          %s3439 = sshll.u32 %s3415, 4
          %s3440 = int_to_ptr.vmem [resolvable:$true] %s3439
          %3442 = dma.vmem_to_hbm [thread:$0]  %s3440, 128, %s3437, %s3412
        $region124: #{tpu_custom_call.1} parent=83 // pred_fallthru
          _
      $region84: #{tpu_custom_call.1} parent=5 // pred_fallthru
        _
      %p3443 = scmp.le.s32.totalorder 2, %s41
      // Predicated region
      $region125: #{tpu_custom_call.1} parent=5 // pred_check
        %p3444 = pneg %p3443
      $region126: #{tpu_custom_call.1} parent=5 // pred_check_branch
        %3446 = sbr.rel (%p3444) target = $region128
      $region127: #{tpu_custom_call.1} parent=5 // pred_region
        %s3447 = ssub.s32 %s41, 2
        // Predicated region
        $region129: #{tpu_custom_call.1} parent=127 // pred_check
          %p3448 = pneg %p426
        $region130: #{tpu_custom_call.1} parent=127 // pred_check_branch
          %3450 = sbr.rel (%p3448) target = $region132
        $region131: #{tpu_custom_call.1} parent=127 // pred_region
          %s3451 = sand.u32 %s411, 1
          %s3452 = scalar_lea.sflag [#allocation4], %s3451
          %s3453 = sand.u32 %s411, 1
          %s3454 = smul.addr %s3453, 16
          %s3455 = scalar_lea.vmem [#allocation16], %s3454
          %3456 = dma.done %s3452, 256
        $region132: #{tpu_custom_call.1} parent=127 // pred_fallthru
          _
        // Predicated region
        $region133: #{tpu_custom_call.1} parent=127 // pred_check
          %p3457 = pneg %p452
        $region134: #{tpu_custom_call.1} parent=127 // pred_check_branch
          %3459 = sbr.rel (%p3457) target = $region136
        $region135: #{tpu_custom_call.1} parent=127 // pred_region
          %s3460 = sand.u32 %s437, 1
          %s3461 = scalar_lea.sflag [#allocation18], %s3460
          %s3462 = sand.u32 %s437, 1
          %s3463 = smul.addr %s3462, 8
          %s3464 = scalar_lea.vmem [#allocation17], %s3463
          %3465 = dma.done %s3461, 128
        $region136: #{tpu_custom_call.1} parent=127 // pred_fallthru
          _
      $region128: #{tpu_custom_call.1} parent=5 // pred_fallthru
        _
    $region6: #{tpu_custom_call.1} parent=1 // loop_footer
      %s45 = sadd.s32 1, %s41
    $region7: #{tpu_custom_call.1} parent=1 // loop_footer_branch
      %40 = sbr.rel target = $region3
    $region8: #{tpu_custom_call.1} parent=1 // loop_exit
      _
    %3466 = vsyncpa [#allocation3], 1
    %s3467 = scalar_lea.sflag [#allocation3], 1
    %3468 = vsyncpa %s3467, 1
    %3469 = vsyncpa [#allocation6], 1
    %s3470 = scalar_lea.sflag [#allocation6], 1
    %3471 = vsyncpa %s3470, 1
    %3472 = vsyncpa [#allocation9], 1
    %s3473 = scalar_lea.sflag [#allocation9], 1
    %3474 = vsyncpa %s3473, 1
    %3475 = vsyncpa [#allocation12], 1
    %3476 = vsyncpa [#allocation15], 1
    %3477 = vsyncpa [#allocation4], 1
    %s3478 = scalar_lea.sflag [#allocation4], 1
    %3479 = vsyncpa %s3478, 1
    %3480 = vsyncpa [#allocation18], 1
    %s3481 = scalar_lea.sflag [#allocation18], 1
    %3482 = vsyncpa %s3481, 1

</llo_original>
